<compile_context>
chip_gen: v7x
topology: tpu7x:2x2x1
jax: 0.10.0
libtpu: 0.0.40
codegen_flags: <defaults>
</compile_context>

<pallas_src>
import math
import functools

import jax
import jax.numpy as jnp
from jax import lax
from jax.experimental import pallas as pl
from jax.experimental.pallas import tpu as pltpu


def _round_up(v, m):
    return (v + m - 1) // m * m


def _make_knots(grid_range, num_knots, spline_order):
    """Uniform extended knot vector, identical to SplineLinearLayer._calculate_knots."""
    h = (grid_range[1] - grid_range[0]) / num_knots
    return tuple(grid_range[0] + i * h
                 for i in range(-spline_order, num_knots + spline_order + 1))


def _vmem_capacity_bytes():
    """Physical VMEM per TensorCore: 64 MiB on v7x, 128 MiB on v5e/v6e."""
    try:
        kind = jax.devices()[0].device_kind.lower()
    except Exception:
        kind = ""
    if "7" in kind:
        return 64 * 1024 * 1024
    return 128 * 1024 * 1024 if kind else 64 * 1024 * 1024   # unknown -> conservative


def spline_linear_kernel(x_ref, w_ref, o_ref, feat_ref, *, knots, spline_order, unroll):
    """x_ref: (tm, Dp) f32; w_ref: ((nb+1)*Dp, tn) matmul_dtype; o_ref: (tm, tn);
    feat_ref: VMEM scratch (tm, (nb+1)*Dp) matmul_dtype = [SiLU(x) | bases...]."""
    t = knots
    nk = len(t)
    nb = nk - 1 - spline_order            # number of final B-spline bases
    tm, Dp = x_ref.shape
    h = t[1] - t[0]                       # uniform knot spacing
    fdt = feat_ref.dtype

    # Build the feature slab only on the first output tile of each batch tile;
    # the scratch persists across the (sequential, "arbitrary") j axis.
    @pl.when(pl.program_id(1) == 0)
    def _build_slab():
        def chunk_body(r, carry):
            row = pl.multiple_of(r * 8, 8)
            x = x_ref[pl.ds(row, 8), :]                       # (8, Dp) f32

            # ---- base path: SiLU(x) -> feature block 0 ----
            feat_ref[pl.ds(row, 8), pl.ds(0, Dp)] = (x * jax.nn.sigmoid(x)).astype(fdt)

            # ---- degree-0 bases: half-open intervals [t_j, t_{j+1}) ----
            ge = [x >= t[j] for j in range(nk)]
            bases = [jnp.where(jnp.logical_and(ge[j], jnp.logical_not(ge[j + 1])),
                               jnp.float32(1.0), jnp.float32(0.0))
                     for j in range(nk - 1)]

            # ---- uniform-knot Cox-de Boor: hoist d[j] = x - t[j], no divides ----
            d = [x - t[j] for j in range(nk)]
            for k in range(1, spline_order + 1):
                inv_k = 1.0 / (k * h)                 # == 1/(t[j+k]-t[j]) for all j
                bases = [(d[j] * bases[j] - d[j + k + 1] * bases[j + 1]) * inv_k
                         for j in range(nk - 1 - k)]

            for j in range(nb):
                feat_ref[pl.ds(row, 8), pl.ds((j + 1) * Dp, Dp)] = bases[j].astype(fdt)
            return carry

        lax.fori_loop(0, tm // 8, chunk_body, 0, unroll=unroll)

    # ---- single fused matmul: (tm, (nb+1)*Dp) @ ((nb+1)*Dp, tn), f32 accumulation ----
    o_ref[...] = jnp.dot(feat_ref[...], w_ref[...],
                         preferred_element_type=jnp.float32).astype(o_ref.dtype)


@functools.partial(jax.jit, static_argnames=(
    "num_knots", "spline_order", "grid_range", "block_m", "block_n", "matmul_dtype"))
def spline_linear_forward(x, base_w, spline_w, spline_scales, *,
                          num_knots=5, spline_order=3, grid_range=(-1.0, 1.0),
                          block_m=256, block_n=512, matmul_dtype=jnp.bfloat16):
    """x: (B, D); base_w: (O, D); spline_w: (O, D, nb); spline_scales: (O, D)."""
    B, D = x.shape
    O = base_w.shape[0]
    nb = num_knots + spline_order
    knots = _make_knots(grid_range, num_knots, spline_order)
    out_dtype = x.dtype

    # Lane-dense padded dims (padding carries zero weights -> exact result).
    Dp = _round_up(D, 128)
    Op = _round_up(O, 128)
    K = (nb + 1) * Dp
    msize = jnp.dtype(matmul_dtype).itemsize
    osize = jnp.dtype(out_dtype).itemsize

    # ---- tile selection under an exact, generation-aware VMEM budget ----
    vmem_phys = _vmem_capacity_bytes()
    vmem_budget = int(0.80 * vmem_phys)

    Bp8 = _round_up(B, 8)
    tm = _round_up(min(block_m, Bp8), 8)
    # Keep >=2 batch tiles for megacore (v7x) when there is enough work.
    if tm >= Bp8 and Bp8 >= 256:
        tm = _round_up((Bp8 + 1) // 2, 8)

    def usage(tm_, tn_):
        return (2 * tm_ * Dp * 4          # x blocks (f32, double-buffered)
                + 2 * K * tn_ * msize     # weight blocks (double-buffered)
                + 2 * tm_ * tn_ * osize   # output blocks (double-buffered)
                + tm_ * K * msize)        # feature-slab scratch (single-buffered)

    # Prefer a fully resident weight (tn = Op -> fetched from HBM exactly once).
    tn_cands = []
    for c in (Op, min(_round_up(block_n, 128), Op), 512, 256, 128):
        c = min(c, Op)
        if c % 128 == 0 and Op % c == 0 and c not in tn_cands:
            tn_cands.append(c)
    tn = next((c for c in tn_cands if usage(tm, c) <= vmem_budget), None)
    while tn is None and tm > 8:
        tm = _round_up(max(tm // 2, 8), 8)
        tn = next((c for c in tn_cands if usage(tm, c) <= vmem_budget), None)
    if tn is None:
        tn = 128

    Bp = _round_up(B, tm)
    grid = (Bp // tm, Op // tn)
    n_chunks = tm // 8
    unroll = True if n_chunks <= 16 else 4

    vmem_limit = int(min(max(usage(tm, tn) + 4 * 1024 * 1024, 32 * 1024 * 1024),
                         int(0.85 * vmem_phys)))

    # ---- pre-scaled, pre-transposed, pre-concatenated weight (off the hot path) ----
    xf = x.astype(jnp.float32)
    x_p = jnp.pad(xf, ((0, Bp - B), (0, Dp - D)))
    base_w_p = jnp.pad(base_w.astype(jnp.float32), ((0, Op - O), (0, Dp - D)))
    scaled = (spline_w.astype(jnp.float32)
              * spline_scales.astype(jnp.float32)[:, :, None])          # (O, D, nb)
    scaled_p = jnp.pad(scaled, ((0, Op - O), (0, Dp - D), (0, 0)))       # (Op, Dp, nb)
    w_cat = jnp.concatenate(
        [base_w_p.T[None], jnp.transpose(scaled_p, (2, 1, 0))], axis=0)  # (nb+1, Dp, Op)
    w_cat = w_cat.reshape(K, Op).astype(matmul_dtype)

    kernel = functools.partial(spline_linear_kernel, knots=knots,
                               spline_order=spline_order, unroll=unroll)
    out = pl.pallas_call(
        kernel,
        out_shape=jax.ShapeDtypeStruct((Bp, Op), out_dtype),
        grid_spec=pltpu.PrefetchScalarGridSpec(
            num_scalar_prefetch=0,
            grid=grid,
            in_specs=[
                pl.BlockSpec((tm, Dp), lambda i, j: (i, 0)),
                pl.BlockSpec((K, tn), lambda i, j: (0, j)),
            ],
            out_specs=pl.BlockSpec((tm, tn), lambda i, j: (i, j)),
            scratch_shapes=[pltpu.VMEM((tm, K), matmul_dtype)],
        ),
        compiler_params=pltpu.CompilerParams(
            # j MUST be "arbitrary": the slab built at j==0 is reused for j>0.
            dimension_semantics=("parallel", "arbitrary"),
            vmem_limit_bytes=vmem_limit),
    )(x_p, w_cat)

    return out[:B, :O]


def reference_forward(x, base_w, spline_w, spline_scales, *,
                      num_knots, spline_order, grid_range):
    """Pure-JAX (f32) transcription of SplineLinearLayer.forward (for verification)."""
    D = x.shape[1]
    knots = jnp.asarray(_make_knots(grid_range, num_knots, spline_order), jnp.float32)
    knots = jnp.broadcast_to(knots, (D, knots.shape[0]))              # (D, nk)
    xe = x[:, :, None]
    bases = ((xe >= knots[:, :-1]) & (xe < knots[:, 1:])).astype(x.dtype)
    for k in range(1, spline_order + 1):
        bases = ((xe - knots[:, :-(k + 1)]) /
                 (knots[:, k:-1] - knots[:, :-(k + 1)]) * bases[:, :, :-1]
                 + (knots[:, k + 1:] - xe) /
                 (knots[:, k + 1:] - knots[:, 1:-k]) * bases[:, :, 1:])
    silu = x * jax.nn.sigmoid(x)
    base_out = silu @ base_w.T
    scaled_w = spline_w * spline_scales[:, :, None]
    spline_out = bases.reshape(x.shape[0], -1) @ scaled_w.reshape(base_w.shape[0], -1).T
    return base_out + spline_out


if __name__ == "__main__":
    key = jax.random.PRNGKey(0)
    # Small but non-trivial shapes: exercise batch/output tiling and D/O padding.
    B, D, O = 32, 96, 192                # batch, input_dim, output_dim
    num_knots, spline_order = 5, 3
    nb = num_knots + spline_order
    grid_range = (-1.0, 1.0)

    k1, k2, k3, k4 = jax.random.split(key, 4)
    x = jax.random.uniform(k1, (B, D), jnp.float32, minval=-1.0, maxval=1.0)

    # Deterministic parameter init (shapes from the module's __init__).
    gain = math.sqrt(2.0)
    bound = gain * math.sqrt(6.0 / (D + O))   # xavier_uniform bound
    base_w = jax.random.uniform(k2, (O, D), jnp.float32, minval=-bound, maxval=bound)
    spline_w = 0.1 * (jax.random.uniform(k3, (O, D, nb), jnp.float32) - 0.5)
    spline_scales = jax.random.uniform(k4, (O, D), jnp.float32, minval=-bound, maxval=bound)

    ref = reference_forward(x, base_w, spline_w, spline_scales,
                            num_knots=num_knots, spline_order=spline_order,
                            grid_range=grid_range)

    # Exact-precision path (f32 matmul inputs) -- matches reference at 1e-4.
    out_f32 = spline_linear_forward(x, base_w, spline_w, spline_scales,
                                    num_knots=num_knots, spline_order=spline_order,
                                    grid_range=grid_range, matmul_dtype=jnp.float32)
    out_f32 = jax.block_until_ready(out_f32)
    assert out_f32.shape == (B, O)
    assert jnp.allclose(out_f32, ref, atol=1e-4, rtol=1e-4), "f32 path mismatch vs reference"

    # Default fast path: bf16 feature slab & weights, f32 accumulation on the MXU.
    out_bf16 = spline_linear_forward(x, base_w, spline_w, spline_scales,
                                     num_knots=num_knots, spline_order=spline_order,
                                     grid_range=grid_range)
    out_bf16 = jax.block_until_ready(out_bf16)
    assert out_bf16.shape == (B, O)
    assert jnp.allclose(out_bf16, ref, atol=3e-2, rtol=3e-2), "bf16 path outside tolerance"

    print("KERNEL_OK")
</pallas_src>

<mosaic_0001>
module attributes {stable_mosaic.version = 11 : i64} {
  func.func @spline_linear_kernel(%arg0: i32, %arg1: i32, %arg2: memref<32x128xf32, #tpu.memory_space<vmem>>, %arg3: memref<1152x256xf32, #tpu.memory_space<vmem>>, %arg4: memref<32x256xf32, #tpu.memory_space<vmem>>, %arg5: memref<32x1152xf32, #tpu.memory_space<vmem>>) attributes {dimension_semantics = [#tpu.dimension_semantics<parallel>, #tpu.dimension_semantics<arbitrary>], iteration_bounds = array<i64: 1, 1>, scalar_prefetch = 0 : i64, scratch_operands = 1 : i64, tpu.core_type = #tpu.core_type<tc>, window_params = [{transform_indices = @transform_0, window_bounds = array<i64: 32, 128>}, {transform_indices = @transform_1, window_bounds = array<i64: 1152, 256>}, {transform_indices = @transform_2, window_bounds = array<i64: 32, 256>}]} {
    %c0_i32 = arith.constant 0 : i32
    %0 = arith.cmpi eq, %arg1, %c0_i32 : i32
    %1 = arith.extui %0 : i1 to i32
    %c0_i32_0 = arith.constant 0 : i32
    %2 = arith.cmpi ne, %1, %c0_i32_0 : i32
    scf.if %2 {
      %c0_i32_6 = arith.constant 0 : i32
      %c8_i32 = arith.constant 8 : i32
      %7 = arith.muli %c0_i32_6, %c8_i32 : i32
      %8 = tpu.assume_multiple %7, 8 : i32
      %9 = arith.index_cast %8 : i32 to index
      %c0_7 = arith.constant 0 : index
      %10 = vector.load %arg2[%9, %c0_7] : memref<32x128xf32, #tpu.memory_space<vmem>>, vector<8x128xf32>
      %11 = arith.negf %10 : vector<8x128xf32>
      %12 = math.exp %11 : vector<8x128xf32>
      %cst_8 = arith.constant 1.000000e+00 : f32
      %13 = vector.broadcast %cst_8 : f32 to vector<8x128xf32>
      %14 = arith.addf %13, %12 : vector<8x128xf32>
      %15 = arith.divf %13, %14 : vector<8x128xf32>
      %16 = arith.mulf %10, %15 : vector<8x128xf32>
      %17 = arith.index_cast %8 : i32 to index
      %c0_9 = arith.constant 0 : index
      %18 = vector.load %arg5[%17, %c0_9] : memref<32x1152xf32, #tpu.memory_space<vmem>>, vector<8x128xf32>
      tpu.vector_store %arg5[%17, %c0_9], %16 {strides = array<i32>} : memref<32x1152xf32, #tpu.memory_space<vmem>>, vector<8x128xf32>,
      %cst_10 = arith.constant -2.200000e+00 : f32
      %19 = vector.broadcast %cst_10 : f32 to vector<8x128xf32>
      %20 = arith.cmpf oge, %10, %19 : vector<8x128xf32>
      %cst_11 = arith.constant -1.800000e+00 : f32
      %21 = vector.broadcast %cst_11 : f32 to vector<8x128xf32>
      %22 = arith.cmpf oge, %10, %21 : vector<8x128xf32>
      %cst_12 = arith.constant -1.400000e+00 : f32
      %23 = vector.broadcast %cst_12 : f32 to vector<8x128xf32>
      %24 = arith.cmpf oge, %10, %23 : vector<8x128xf32>
      %cst_13 = arith.constant -1.000000e+00 : f32
      %25 = vector.broadcast %cst_13 : f32 to vector<8x128xf32>
      %26 = arith.cmpf oge, %10, %25 : vector<8x128xf32>
      %cst_14 = arith.constant -6.000000e-01 : f32
      %27 = vector.broadcast %cst_14 : f32 to vector<8x128xf32>
      %28 = arith.cmpf oge, %10, %27 : vector<8x128xf32>
      %cst_15 = arith.constant -2.000000e-01 : f32
      %29 = vector.broadcast %cst_15 : f32 to vector<8x128xf32>
      %30 = arith.cmpf oge, %10, %29 : vector<8x128xf32>
      %cst_16 = arith.constant 2.000000e-01 : f32
      %31 = vector.broadcast %cst_16 : f32 to vector<8x128xf32>
      %32 = arith.cmpf oge, %10, %31 : vector<8x128xf32>
      %cst_17 = arith.constant 6.000000e-01 : f32
      %33 = vector.broadcast %cst_17 : f32 to vector<8x128xf32>
      %34 = arith.cmpf oge, %10, %33 : vector<8x128xf32>
      %cst_18 = arith.constant 1.000000e+00 : f32
      %35 = vector.broadcast %cst_18 : f32 to vector<8x128xf32>
      %36 = arith.cmpf oge, %10, %35 : vector<8x128xf32>
      %cst_19 = arith.constant 1.400000e+00 : f32
      %37 = vector.broadcast %cst_19 : f32 to vector<8x128xf32>
      %38 = arith.cmpf oge, %10, %37 : vector<8x128xf32>
      %cst_20 = arith.constant 1.800000e+00 : f32
      %39 = vector.broadcast %cst_20 : f32 to vector<8x128xf32>
      %40 = arith.cmpf oge, %10, %39 : vector<8x128xf32>
      %cst_21 = arith.constant 2.200000e+00 : f32
      %41 = vector.broadcast %cst_21 : f32 to vector<8x128xf32>
      %42 = arith.cmpf oge, %10, %41 : vector<8x128xf32>
      %cst_22 = arith.constant dense<true> : vector<8x128xi1>
      %43 = arith.xori %22, %cst_22 : vector<8x128xi1>
      %44 = arith.andi %20, %43 : vector<8x128xi1>
      %cst_23 = arith.constant 1.000000e+00 : f32
      %cst_24 = arith.constant 0.000000e+00 : f32
      %45 = vector.broadcast %cst_23 : f32 to vector<8x128xf32>
      %46 = vector.broadcast %cst_24 : f32 to vector<8x128xf32>
      %47 = arith.select %44, %45, %46 : vector<8x128xi1>, vector<8x128xf32>
      %cst_25 = arith.constant dense<true> : vector<8x128xi1>
      %48 = arith.xori %24, %cst_25 : vector<8x128xi1>
      %49 = arith.andi %22, %48 : vector<8x128xi1>
      %cst_26 = arith.constant 1.000000e+00 : f32
      %cst_27 = arith.constant 0.000000e+00 : f32
      %50 = vector.broadcast %cst_26 : f32 to vector<8x128xf32>
      %51 = vector.broadcast %cst_27 : f32 to vector<8x128xf32>
      %52 = arith.select %49, %50, %51 : vector<8x128xi1>, vector<8x128xf32>
      %cst_28 = arith.constant dense<true> : vector<8x128xi1>
      %53 = arith.xori %26, %cst_28 : vector<8x128xi1>
      %54 = arith.andi %24, %53 : vector<8x128xi1>
      %cst_29 = arith.constant 1.000000e+00 : f32
      %cst_30 = arith.constant 0.000000e+00 : f32
      %55 = vector.broadcast %cst_29 : f32 to vector<8x128xf32>
      %56 = vector.broadcast %cst_30 : f32 to vector<8x128xf32>
      %57 = arith.select %54, %55, %56 : vector<8x128xi1>, vector<8x128xf32>
      %cst_31 = arith.constant dense<true> : vector<8x128xi1>
      %58 = arith.xori %28, %cst_31 : vector<8x128xi1>
      %59 = arith.andi %26, %58 : vector<8x128xi1>
      %cst_32 = arith.constant 1.000000e+00 : f32
      %cst_33 = arith.constant 0.000000e+00 : f32
      %60 = vector.broadcast %cst_32 : f32 to vector<8x128xf32>
      %61 = vector.broadcast %cst_33 : f32 to vector<8x128xf32>
      %62 = arith.select %59, %60, %61 : vector<8x128xi1>, vector<8x128xf32>
      %cst_34 = arith.constant dense<true> : vector<8x128xi1>
      %63 = arith.xori %30, %cst_34 : vector<8x128xi1>
      %64 = arith.andi %28, %63 : vector<8x128xi1>
      %cst_35 = arith.constant 1.000000e+00 : f32
      %cst_36 = arith.constant 0.000000e+00 : f32
      %65 = vector.broadcast %cst_35 : f32 to vector<8x128xf32>
      %66 = vector.broadcast %cst_36 : f32 to vector<8x128xf32>
      %67 = arith.select %64, %65, %66 : vector<8x128xi1>, vector<8x128xf32>
      %cst_37 = arith.constant dense<true> : vector<8x128xi1>
      %68 = arith.xori %32, %cst_37 : vector<8x128xi1>
      %69 = arith.andi %30, %68 : vector<8x128xi1>
      %cst_38 = arith.constant 1.000000e+00 : f32
      %cst_39 = arith.constant 0.000000e+00 : f32
      %70 = vector.broadcast %cst_38 : f32 to vector<8x128xf32>
      %71 = vector.broadcast %cst_39 : f32 to vector<8x128xf32>
      %72 = arith.select %69, %70, %71 : vector<8x128xi1>, vector<8x128xf32>
      %cst_40 = arith.constant dense<true> : vector<8x128xi1>
      %73 = arith.xori %34, %cst_40 : vector<8x128xi1>
      %74 = arith.andi %32, %73 : vector<8x128xi1>
      %cst_41 = arith.constant 1.000000e+00 : f32
      %cst_42 = arith.constant 0.000000e+00 : f32
      %75 = vector.broadcast %cst_41 : f32 to vector<8x128xf32>
      %76 = vector.broadcast %cst_42 : f32 to vector<8x128xf32>
      %77 = arith.select %74, %75, %76 : vector<8x128xi1>, vector<8x128xf32>
      %cst_43 = arith.constant dense<true> : vector<8x128xi1>
      %78 = arith.xori %36, %cst_43 : vector<8x128xi1>
      %79 = arith.andi %34, %78 : vector<8x128xi1>
      %cst_44 = arith.constant 1.000000e+00 : f32
      %cst_45 = arith.constant 0.000000e+00 : f32
      %80 = vector.broadcast %cst_44 : f32 to vector<8x128xf32>
      %81 = vector.broadcast %cst_45 : f32 to vector<8x128xf32>
      %82 = arith.select %79, %80, %81 : vector<8x128xi1>, vector<8x128xf32>
      %cst_46 = arith.constant dense<true> : vector<8x128xi1>
      %83 = arith.xori %38, %cst_46 : vector<8x128xi1>
      %84 = arith.andi %36, %83 : vector<8x128xi1>
      %cst_47 = arith.constant 1.000000e+00 : f32
      %cst_48 = arith.constant 0.000000e+00 : f32
      %85 = vector.broadcast %cst_47 : f32 to vector<8x128xf32>
      %86 = vector.broadcast %cst_48 : f32 to vector<8x128xf32>
      %87 = arith.select %84, %85, %86 : vector<8x128xi1>, vector<8x128xf32>
      %cst_49 = arith.constant dense<true> : vector<8x128xi1>
      %88 = arith.xori %40, %cst_49 : vector<8x128xi1>
      %89 = arith.andi %38, %88 : vector<8x128xi1>
      %cst_50 = arith.constant 1.000000e+00 : f32
      %cst_51 = arith.constant 0.000000e+00 : f32
      %90 = vector.broadcast %cst_50 : f32 to vector<8x128xf32>
      %91 = vector.broadcast %cst_51 : f32 to vector<8x128xf32>
      %92 = arith.select %89, %90, %91 : vector<8x128xi1>, vector<8x128xf32>
      %cst_52 = arith.constant dense<true> : vector<8x128xi1>
      %93 = arith.xori %42, %cst_52 : vector<8x128xi1>
      %94 = arith.andi %40, %93 : vector<8x128xi1>
      %cst_53 = arith.constant 1.000000e+00 : f32
      %cst_54 = arith.constant 0.000000e+00 : f32
      %95 = vector.broadcast %cst_53 : f32 to vector<8x128xf32>
      %96 = vector.broadcast %cst_54 : f32 to vector<8x128xf32>
      %97 = arith.select %94, %95, %96 : vector<8x128xi1>, vector<8x128xf32>
      %cst_55 = arith.constant -2.200000e+00 : f32
      %98 = vector.broadcast %cst_55 : f32 to vector<8x128xf32>
      %99 = arith.subf %10, %98 : vector<8x128xf32>
      %cst_56 = arith.constant -1.800000e+00 : f32
      %100 = vector.broadcast %cst_56 : f32 to vector<8x128xf32>
      %101 = arith.subf %10, %100 : vector<8x128xf32>
      %cst_57 = arith.constant -1.400000e+00 : f32
      %102 = vector.broadcast %cst_57 : f32 to vector<8x128xf32>
      %103 = arith.subf %10, %102 : vector<8x128xf32>
      %cst_58 = arith.constant -1.000000e+00 : f32
      %104 = vector.broadcast %cst_58 : f32 to vector<8x128xf32>
      %105 = arith.subf %10, %104 : vector<8x128xf32>
      %cst_59 = arith.constant -6.000000e-01 : f32
      %106 = vector.broadcast %cst_59 : f32 to vector<8x128xf32>
      %107 = arith.subf %10, %106 : vector<8x128xf32>
      %cst_60 = arith.constant -2.000000e-01 : f32
      %108 = vector.broadcast %cst_60 : f32 to vector<8x128xf32>
      %109 = arith.subf %10, %108 : vector<8x128xf32>
      %cst_61 = arith.constant 2.000000e-01 : f32
      %110 = vector.broadcast %cst_61 : f32 to vector<8x128xf32>
      %111 = arith.subf %10, %110 : vector<8x128xf32>
      %cst_62 = arith.constant 6.000000e-01 : f32
      %112 = vector.broadcast %cst_62 : f32 to vector<8x128xf32>
      %113 = arith.subf %10, %112 : vector<8x128xf32>
      %cst_63 = arith.constant 1.000000e+00 : f32
      %114 = vector.broadcast %cst_63 : f32 to vector<8x128xf32>
      %115 = arith.subf %10, %114 : vector<8x128xf32>
      %cst_64 = arith.constant 1.400000e+00 : f32
      %116 = vector.broadcast %cst_64 : f32 to vector<8x128xf32>
      %117 = arith.subf %10, %116 : vector<8x128xf32>
      %cst_65 = arith.constant 1.800000e+00 : f32
      %118 = vector.broadcast %cst_65 : f32 to vector<8x128xf32>
      %119 = arith.subf %10, %118 : vector<8x128xf32>
      %cst_66 = arith.constant 2.200000e+00 : f32
      %120 = vector.broadcast %cst_66 : f32 to vector<8x128xf32>
      %121 = arith.subf %10, %120 : vector<8x128xf32>
      %122 = arith.mulf %99, %47 : vector<8x128xf32>
      %123 = arith.mulf %103, %52 : vector<8x128xf32>
      %124 = arith.subf %122, %123 : vector<8x128xf32>
      %cst_67 = arith.constant 2.500000e+00 : f32
      %125 = vector.broadcast %cst_67 : f32 to vector<8x128xf32>
      %126 = arith.mulf %124, %125 : vector<8x128xf32>
      %127 = arith.mulf %101, %52 : vector<8x128xf32>
      %128 = arith.mulf %105, %57 : vector<8x128xf32>
      %129 = arith.subf %127, %128 : vector<8x128xf32>
      %cst_68 = arith.constant 2.500000e+00 : f32
      %130 = vector.broadcast %cst_68 : f32 to vector<8x128xf32>
      %131 = arith.mulf %129, %130 : vector<8x128xf32>
      %132 = arith.mulf %103, %57 : vector<8x128xf32>
      %133 = arith.mulf %107, %62 : vector<8x128xf32>
      %134 = arith.subf %132, %133 : vector<8x128xf32>
      %cst_69 = arith.constant 2.500000e+00 : f32
      %135 = vector.broadcast %cst_69 : f32 to vector<8x128xf32>
      %136 = arith.mulf %134, %135 : vector<8x128xf32>
      %137 = arith.mulf %105, %62 : vector<8x128xf32>
      %138 = arith.mulf %109, %67 : vector<8x128xf32>
      %139 = arith.subf %137, %138 : vector<8x128xf32>
      %cst_70 = arith.constant 2.500000e+00 : f32
      %140 = vector.broadcast %cst_70 : f32 to vector<8x128xf32>
      %141 = arith.mulf %139, %140 : vector<8x128xf32>
      %142 = arith.mulf %107, %67 : vector<8x128xf32>
      %143 = arith.mulf %111, %72 : vector<8x128xf32>
      %144 = arith.subf %142, %143 : vector<8x128xf32>
      %cst_71 = arith.constant 2.500000e+00 : f32
      %145 = vector.broadcast %cst_71 : f32 to vector<8x128xf32>
      %146 = arith.mulf %144, %145 : vector<8x128xf32>
      %147 = arith.mulf %109, %72 : vector<8x128xf32>
      %148 = arith.mulf %113, %77 : vector<8x128xf32>
      %149 = arith.subf %147, %148 : vector<8x128xf32>
      %cst_72 = arith.constant 2.500000e+00 : f32
      %150 = vector.broadcast %cst_72 : f32 to vector<8x128xf32>
      %151 = arith.mulf %149, %150 : vector<8x128xf32>
      %152 = arith.mulf %111, %77 : vector<8x128xf32>
      %153 = arith.mulf %115, %82 : vector<8x128xf32>
      %154 = arith.subf %152, %153 : vector<8x128xf32>
      %cst_73 = arith.constant 2.500000e+00 : f32
      %155 = vector.broadcast %cst_73 : f32 to vector<8x128xf32>
      %156 = arith.mulf %154, %155 : vector<8x128xf32>
      %157 = arith.mulf %113, %82 : vector<8x128xf32>
      %158 = arith.mulf %117, %87 : vector<8x128xf32>
      %159 = arith.subf %157, %158 : vector<8x128xf32>
      %cst_74 = arith.constant 2.500000e+00 : f32
      %160 = vector.broadcast %cst_74 : f32 to vector<8x128xf32>
      %161 = arith.mulf %159, %160 : vector<8x128xf32>
      %162 = arith.mulf %115, %87 : vector<8x128xf32>
      %163 = arith.mulf %119, %92 : vector<8x128xf32>
      %164 = arith.subf %162, %163 : vector<8x128xf32>
      %cst_75 = arith.constant 2.500000e+00 : f32
      %165 = vector.broadcast %cst_75 : f32 to vector<8x128xf32>
      %166 = arith.mulf %164, %165 : vector<8x128xf32>
      %167 = arith.mulf %117, %92 : vector<8x128xf32>
      %168 = arith.mulf %121, %97 : vector<8x128xf32>
      %169 = arith.subf %167, %168 : vector<8x128xf32>
      %cst_76 = arith.constant 2.500000e+00 : f32
      %170 = vector.broadcast %cst_76 : f32 to vector<8x128xf32>
      %171 = arith.mulf %169, %170 : vector<8x128xf32>
      %172 = arith.mulf %99, %126 : vector<8x128xf32>
      %173 = arith.mulf %105, %131 : vector<8x128xf32>
      %174 = arith.subf %172, %173 : vector<8x128xf32>
      %cst_77 = arith.constant 1.250000e+00 : f32
      %175 = vector.broadcast %cst_77 : f32 to vector<8x128xf32>
      %176 = arith.mulf %174, %175 : vector<8x128xf32>
      %177 = arith.mulf %101, %131 : vector<8x128xf32>
      %178 = arith.mulf %107, %136 : vector<8x128xf32>
      %179 = arith.subf %177, %178 : vector<8x128xf32>
      %cst_78 = arith.constant 1.250000e+00 : f32
      %180 = vector.broadcast %cst_78 : f32 to vector<8x128xf32>
      %181 = arith.mulf %179, %180 : vector<8x128xf32>
      %182 = arith.mulf %103, %136 : vector<8x128xf32>
      %183 = arith.mulf %109, %141 : vector<8x128xf32>
      %184 = arith.subf %182, %183 : vector<8x128xf32>
      %cst_79 = arith.constant 1.250000e+00 : f32
      %185 = vector.broadcast %cst_79 : f32 to vector<8x128xf32>
      %186 = arith.mulf %184, %185 : vector<8x128xf32>
      %187 = arith.mulf %105, %141 : vector<8x128xf32>
      %188 = arith.mulf %111, %146 : vector<8x128xf32>
      %189 = arith.subf %187, %188 : vector<8x128xf32>
      %cst_80 = arith.constant 1.250000e+00 : f32
      %190 = vector.broadcast %cst_80 : f32 to vector<8x128xf32>
      %191 = arith.mulf %189, %190 : vector<8x128xf32>
      %192 = arith.mulf %107, %146 : vector<8x128xf32>
      %193 = arith.mulf %113, %151 : vector<8x128xf32>
      %194 = arith.subf %192, %193 : vector<8x128xf32>
      %cst_81 = arith.constant 1.250000e+00 : f32
      %195 = vector.broadcast %cst_81 : f32 to vector<8x128xf32>
      %196 = arith.mulf %194, %195 : vector<8x128xf32>
      %197 = arith.mulf %109, %151 : vector<8x128xf32>
      %198 = arith.mulf %115, %156 : vector<8x128xf32>
      %199 = arith.subf %197, %198 : vector<8x128xf32>
      %cst_82 = arith.constant 1.250000e+00 : f32
      %200 = vector.broadcast %cst_82 : f32 to vector<8x128xf32>
      %201 = arith.mulf %199, %200 : vector<8x128xf32>
      %202 = arith.mulf %111, %156 : vector<8x128xf32>
      %203 = arith.mulf %117, %161 : vector<8x128xf32>
      %204 = arith.subf %202, %203 : vector<8x128xf32>
      %cst_83 = arith.constant 1.250000e+00 : f32
      %205 = vector.broadcast %cst_83 : f32 to vector<8x128xf32>
      %206 = arith.mulf %204, %205 : vector<8x128xf32>
      %207 = arith.mulf %113, %161 : vector<8x128xf32>
      %208 = arith.mulf %119, %166 : vector<8x128xf32>
      %209 = arith.subf %207, %208 : vector<8x128xf32>
      %cst_84 = arith.constant 1.250000e+00 : f32
      %210 = vector.broadcast %cst_84 : f32 to vector<8x128xf32>
      %211 = arith.mulf %209, %210 : vector<8x128xf32>
      %212 = arith.mulf %115, %166 : vector<8x128xf32>
      %213 = arith.mulf %121, %171 : vector<8x128xf32>
      %214 = arith.subf %212, %213 : vector<8x128xf32>
      %cst_85 = arith.constant 1.250000e+00 : f32
      %215 = vector.broadcast %cst_85 : f32 to vector<8x128xf32>
      %216 = arith.mulf %214, %215 : vector<8x128xf32>
      %217 = arith.mulf %99, %176 : vector<8x128xf32>
      %218 = arith.mulf %107, %181 : vector<8x128xf32>
      %219 = arith.subf %217, %218 : vector<8x128xf32>
      %cst_86 = arith.constant 0.833333313 : f32
      %220 = vector.broadcast %cst_86 : f32 to vector<8x128xf32>
      %221 = arith.mulf %219, %220 : vector<8x128xf32>
      %222 = arith.mulf %101, %181 : vector<8x128xf32>
      %223 = arith.mulf %109, %186 : vector<8x128xf32>
      %224 = arith.subf %222, %223 : vector<8x128xf32>
      %cst_87 = arith.constant 0.833333313 : f32
      %225 = vector.broadcast %cst_87 : f32 to vector<8x128xf32>
      %226 = arith.mulf %224, %225 : vector<8x128xf32>
      %227 = arith.mulf %103, %186 : vector<8x128xf32>
      %228 = arith.mulf %111, %191 : vector<8x128xf32>
      %229 = arith.subf %227, %228 : vector<8x128xf32>
      %cst_88 = arith.constant 0.833333313 : f32
      %230 = vector.broadcast %cst_88 : f32 to vector<8x128xf32>
      %231 = arith.mulf %229, %230 : vector<8x128xf32>
      %232 = arith.mulf %105, %191 : vector<8x128xf32>
      %233 = arith.mulf %113, %196 : vector<8x128xf32>
      %234 = arith.subf %232, %233 : vector<8x128xf32>
      %cst_89 = arith.constant 0.833333313 : f32
      %235 = vector.broadcast %cst_89 : f32 to vector<8x128xf32>
      %236 = arith.mulf %234, %235 : vector<8x128xf32>
      %237 = arith.mulf %107, %196 : vector<8x128xf32>
      %238 = arith.mulf %115, %201 : vector<8x128xf32>
      %239 = arith.subf %237, %238 : vector<8x128xf32>
      %cst_90 = arith.constant 0.833333313 : f32
      %240 = vector.broadcast %cst_90 : f32 to vector<8x128xf32>
      %241 = arith.mulf %239, %240 : vector<8x128xf32>
      %242 = arith.mulf %109, %201 : vector<8x128xf32>
      %243 = arith.mulf %117, %206 : vector<8x128xf32>
      %244 = arith.subf %242, %243 : vector<8x128xf32>
      %cst_91 = arith.constant 0.833333313 : f32
      %245 = vector.broadcast %cst_91 : f32 to vector<8x128xf32>
      %246 = arith.mulf %244, %245 : vector<8x128xf32>
      %247 = arith.mulf %111, %206 : vector<8x128xf32>
      %248 = arith.mulf %119, %211 : vector<8x128xf32>
      %249 = arith.subf %247, %248 : vector<8x128xf32>
      %cst_92 = arith.constant 0.833333313 : f32
      %250 = vector.broadcast %cst_92 : f32 to vector<8x128xf32>
      %251 = arith.mulf %249, %250 : vector<8x128xf32>
      %252 = arith.mulf %113, %211 : vector<8x128xf32>
      %253 = arith.mulf %121, %216 : vector<8x128xf32>
      %254 = arith.subf %252, %253 : vector<8x128xf32>
      %cst_93 = arith.constant 0.833333313 : f32
      %255 = vector.broadcast %cst_93 : f32 to vector<8x128xf32>
      %256 = arith.mulf %254, %255 : vector<8x128xf32>
      %257 = arith.index_cast %8 : i32 to index
      %c128 = arith.constant 128 : index
      %258 = vector.load %arg5[%257, %c128] : memref<32x1152xf32, #tpu.memory_space<vmem>>, vector<8x128xf32>
      tpu.vector_store %arg5[%257, %c128], %221 {strides = array<i32>} : memref<32x1152xf32, #tpu.memory_space<vmem>>, vector<8x128xf32>,
      %259 = arith.index_cast %8 : i32 to index
      %c256 = arith.constant 256 : index
      %260 = vector.load %arg5[%259, %c256] : memref<32x1152xf32, #tpu.memory_space<vmem>>, vector<8x128xf32>
      tpu.vector_store %arg5[%259, %c256], %226 {strides = array<i32>} : memref<32x1152xf32, #tpu.memory_space<vmem>>, vector<8x128xf32>,
      %261 = arith.index_cast %8 : i32 to index
      %c384 = arith.constant 384 : index
      %262 = vector.load %arg5[%261, %c384] : memref<32x1152xf32, #tpu.memory_space<vmem>>, vector<8x128xf32>
      tpu.vector_store %arg5[%261, %c384], %231 {strides = array<i32>} : memref<32x1152xf32, #tpu.memory_space<vmem>>, vector<8x128xf32>,
      %263 = arith.index_cast %8 : i32 to index
      %c512 = arith.constant 512 : index
      %264 = vector.load %arg5[%263, %c512] : memref<32x1152xf32, #tpu.memory_space<vmem>>, vector<8x128xf32>
      tpu.vector_store %arg5[%263, %c512], %236 {strides = array<i32>} : memref<32x1152xf32, #tpu.memory_space<vmem>>, vector<8x128xf32>,
      %265 = arith.index_cast %8 : i32 to index
      %c640 = arith.constant 640 : index
      %266 = vector.load %arg5[%265, %c640] : memref<32x1152xf32, #tpu.memory_space<vmem>>, vector<8x128xf32>
      tpu.vector_store %arg5[%265, %c640], %241 {strides = array<i32>} : memref<32x1152xf32, #tpu.memory_space<vmem>>, vector<8x128xf32>,
      %267 = arith.index_cast %8 : i32 to index
      %c768 = arith.constant 768 : index
      %268 = vector.load %arg5[%267, %c768] : memref<32x1152xf32, #tpu.memory_space<vmem>>, vector<8x128xf32>
      tpu.vector_store %arg5[%267, %c768], %246 {strides = array<i32>} : memref<32x1152xf32, #tpu.memory_space<vmem>>, vector<8x128xf32>,
      %269 = arith.index_cast %8 : i32 to index
      %c896 = arith.constant 896 : index
      %270 = vector.load %arg5[%269, %c896] : memref<32x1152xf32, #tpu.memory_space<vmem>>, vector<8x128xf32>
      tpu.vector_store %arg5[%269, %c896], %251 {strides = array<i32>} : memref<32x1152xf32, #tpu.memory_space<vmem>>, vector<8x128xf32>,
      %271 = arith.index_cast %8 : i32 to index
      %c1024 = arith.constant 1024 : index
      %272 = vector.load %arg5[%271, %c1024] : memref<32x1152xf32, #tpu.memory_space<vmem>>, vector<8x128xf32>
      tpu.vector_store %arg5[%271, %c1024], %256 {strides = array<i32>} : memref<32x1152xf32, #tpu.memory_space<vmem>>, vector<8x128xf32>,
      %c1_i32 = arith.constant 1 : i32
      %c8_i32_94 = arith.constant 8 : i32
      %273 = arith.muli %c1_i32, %c8_i32_94 : i32
      %274 = tpu.assume_multiple %273, 8 : i32
      %275 = arith.index_cast %274 : i32 to index
      %c0_95 = arith.constant 0 : index
      %276 = vector.load %arg2[%275, %c0_95] : memref<32x128xf32, #tpu.memory_space<vmem>>, vector<8x128xf32>
      %277 = arith.negf %276 : vector<8x128xf32>
      %278 = math.exp %277 : vector<8x128xf32>
      %cst_96 = arith.constant 1.000000e+00 : f32
      %279 = vector.broadcast %cst_96 : f32 to vector<8x128xf32>
      %280 = arith.addf %279, %278 : vector<8x128xf32>
      %281 = arith.divf %279, %280 : vector<8x128xf32>
      %282 = arith.mulf %276, %281 : vector<8x128xf32>
      %283 = arith.index_cast %274 : i32 to index
      %c0_97 = arith.constant 0 : index
      %284 = vector.load %arg5[%283, %c0_97] : memref<32x1152xf32, #tpu.memory_space<vmem>>, vector<8x128xf32>
      tpu.vector_store %arg5[%283, %c0_97], %282 {strides = array<i32>} : memref<32x1152xf32, #tpu.memory_space<vmem>>, vector<8x128xf32>,
      %cst_98 = arith.constant -2.200000e+00 : f32
      %285 = vector.broadcast %cst_98 : f32 to vector<8x128xf32>
      %286 = arith.cmpf oge, %276, %285 : vector<8x128xf32>
      %cst_99 = arith.constant -1.800000e+00 : f32
      %287 = vector.broadcast %cst_99 : f32 to vector<8x128xf32>
      %288 = arith.cmpf oge, %276, %287 : vector<8x128xf32>
      %cst_100 = arith.constant -1.400000e+00 : f32
      %289 = vector.broadcast %cst_100 : f32 to vector<8x128xf32>
      %290 = arith.cmpf oge, %276, %289 : vector<8x128xf32>
      %cst_101 = arith.constant -1.000000e+00 : f32
      %291 = vector.broadcast %cst_101 : f32 to vector<8x128xf32>
      %292 = arith.cmpf oge, %276, %291 : vector<8x128xf32>
      %cst_102 = arith.constant -6.000000e-01 : f32
      %293 = vector.broadcast %cst_102 : f32 to vector<8x128xf32>
      %294 = arith.cmpf oge, %276, %293 : vector<8x128xf32>
      %cst_103 = arith.constant -2.000000e-01 : f32
      %295 = vector.broadcast %cst_103 : f32 to vector<8x128xf32>
      %296 = arith.cmpf oge, %276, %295 : vector<8x128xf32>
      %cst_104 = arith.constant 2.000000e-01 : f32
      %297 = vector.broadcast %cst_104 : f32 to vector<8x128xf32>
      %298 = arith.cmpf oge, %276, %297 : vector<8x128xf32>
      %cst_105 = arith.constant 6.000000e-01 : f32
      %299 = vector.broadcast %cst_105 : f32 to vector<8x128xf32>
      %300 = arith.cmpf oge, %276, %299 : vector<8x128xf32>
      %cst_106 = arith.constant 1.000000e+00 : f32
      %301 = vector.broadcast %cst_106 : f32 to vector<8x128xf32>
      %302 = arith.cmpf oge, %276, %301 : vector<8x128xf32>
      %cst_107 = arith.constant 1.400000e+00 : f32
      %303 = vector.broadcast %cst_107 : f32 to vector<8x128xf32>
      %304 = arith.cmpf oge, %276, %303 : vector<8x128xf32>
      %cst_108 = arith.constant 1.800000e+00 : f32
      %305 = vector.broadcast %cst_108 : f32 to vector<8x128xf32>
      %306 = arith.cmpf oge, %276, %305 : vector<8x128xf32>
      %cst_109 = arith.constant 2.200000e+00 : f32
      %307 = vector.broadcast %cst_109 : f32 to vector<8x128xf32>
      %308 = arith.cmpf oge, %276, %307 : vector<8x128xf32>
      %cst_110 = arith.constant dense<true> : vector<8x128xi1>
      %309 = arith.xori %288, %cst_110 : vector<8x128xi1>
      %310 = arith.andi %286, %309 : vector<8x128xi1>
      %cst_111 = arith.constant 1.000000e+00 : f32
      %cst_112 = arith.constant 0.000000e+00 : f32
      %311 = vector.broadcast %cst_111 : f32 to vector<8x128xf32>
      %312 = vector.broadcast %cst_112 : f32 to vector<8x128xf32>
      %313 = arith.select %310, %311, %312 : vector<8x128xi1>, vector<8x128xf32>
      %cst_113 = arith.constant dense<true> : vector<8x128xi1>
      %314 = arith.xori %290, %cst_113 : vector<8x128xi1>
      %315 = arith.andi %288, %314 : vector<8x128xi1>
      %cst_114 = arith.constant 1.000000e+00 : f32
      %cst_115 = arith.constant 0.000000e+00 : f32
      %316 = vector.broadcast %cst_114 : f32 to vector<8x128xf32>
      %317 = vector.broadcast %cst_115 : f32 to vector<8x128xf32>
      %318 = arith.select %315, %316, %317 : vector<8x128xi1>, vector<8x128xf32>
      %cst_116 = arith.constant dense<true> : vector<8x128xi1>
      %319 = arith.xori %292, %cst_116 : vector<8x128xi1>
      %320 = arith.andi %290, %319 : vector<8x128xi1>
      %cst_117 = arith.constant 1.000000e+00 : f32
      %cst_118 = arith.constant 0.000000e+00 : f32
      %321 = vector.broadcast %cst_117 : f32 to vector<8x128xf32>
      %322 = vector.broadcast %cst_118 : f32 to vector<8x128xf32>
      %323 = arith.select %320, %321, %322 : vector<8x128xi1>, vector<8x128xf32>
      %cst_119 = arith.constant dense<true> : vector<8x128xi1>
      %324 = arith.xori %294, %cst_119 : vector<8x128xi1>
      %325 = arith.andi %292, %324 : vector<8x128xi1>
      %cst_120 = arith.constant 1.000000e+00 : f32
      %cst_121 = arith.constant 0.000000e+00 : f32
      %326 = vector.broadcast %cst_120 : f32 to vector<8x128xf32>
      %327 = vector.broadcast %cst_121 : f32 to vector<8x128xf32>
      %328 = arith.select %325, %326, %327 : vector<8x128xi1>, vector<8x128xf32>
      %cst_122 = arith.constant dense<true> : vector<8x128xi1>
      %329 = arith.xori %296, %cst_122 : vector<8x128xi1>
      %330 = arith.andi %294, %329 : vector<8x128xi1>
      %cst_123 = arith.constant 1.000000e+00 : f32
      %cst_124 = arith.constant 0.000000e+00 : f32
      %331 = vector.broadcast %cst_123 : f32 to vector<8x128xf32>
      %332 = vector.broadcast %cst_124 : f32 to vector<8x128xf32>
      %333 = arith.select %330, %331, %332 : vector<8x128xi1>, vector<8x128xf32>
      %cst_125 = arith.constant dense<true> : vector<8x128xi1>
      %334 = arith.xori %298, %cst_125 : vector<8x128xi1>
      %335 = arith.andi %296, %334 : vector<8x128xi1>
      %cst_126 = arith.constant 1.000000e+00 : f32
      %cst_127 = arith.constant 0.000000e+00 : f32
      %336 = vector.broadcast %cst_126 : f32 to vector<8x128xf32>
      %337 = vector.broadcast %cst_127 : f32 to vector<8x128xf32>
      %338 = arith.select %335, %336, %337 : vector<8x128xi1>, vector<8x128xf32>
      %cst_128 = arith.constant dense<true> : vector<8x128xi1>
      %339 = arith.xori %300, %cst_128 : vector<8x128xi1>
      %340 = arith.andi %298, %339 : vector<8x128xi1>
      %cst_129 = arith.constant 1.000000e+00 : f32
      %cst_130 = arith.constant 0.000000e+00 : f32
      %341 = vector.broadcast %cst_129 : f32 to vector<8x128xf32>
      %342 = vector.broadcast %cst_130 : f32 to vector<8x128xf32>
      %343 = arith.select %340, %341, %342 : vector<8x128xi1>, vector<8x128xf32>
      %cst_131 = arith.constant dense<true> : vector<8x128xi1>
      %344 = arith.xori %302, %cst_131 : vector<8x128xi1>
      %345 = arith.andi %300, %344 : vector<8x128xi1>
      %cst_132 = arith.constant 1.000000e+00 : f32
      %cst_133 = arith.constant 0.000000e+00 : f32
      %346 = vector.broadcast %cst_132 : f32 to vector<8x128xf32>
      %347 = vector.broadcast %cst_133 : f32 to vector<8x128xf32>
      %348 = arith.select %345, %346, %347 : vector<8x128xi1>, vector<8x128xf32>
      %cst_134 = arith.constant dense<true> : vector<8x128xi1>
      %349 = arith.xori %304, %cst_134 : vector<8x128xi1>
      %350 = arith.andi %302, %349 : vector<8x128xi1>
      %cst_135 = arith.constant 1.000000e+00 : f32
      %cst_136 = arith.constant 0.000000e+00 : f32
      %351 = vector.broadcast %cst_135 : f32 to vector<8x128xf32>
      %352 = vector.broadcast %cst_136 : f32 to vector<8x128xf32>
      %353 = arith.select %350, %351, %352 : vector<8x128xi1>, vector<8x128xf32>
      %cst_137 = arith.constant dense<true> : vector<8x128xi1>
      %354 = arith.xori %306, %cst_137 : vector<8x128xi1>
      %355 = arith.andi %304, %354 : vector<8x128xi1>
      %cst_138 = arith.constant 1.000000e+00 : f32
      %cst_139 = arith.constant 0.000000e+00 : f32
      %356 = vector.broadcast %cst_138 : f32 to vector<8x128xf32>
      %357 = vector.broadcast %cst_139 : f32 to vector<8x128xf32>
      %358 = arith.select %355, %356, %357 : vector<8x128xi1>, vector<8x128xf32>
      %cst_140 = arith.constant dense<true> : vector<8x128xi1>
      %359 = arith.xori %308, %cst_140 : vector<8x128xi1>
      %360 = arith.andi %306, %359 : vector<8x128xi1>
      %cst_141 = arith.constant 1.000000e+00 : f32
      %cst_142 = arith.constant 0.000000e+00 : f32
      %361 = vector.broadcast %cst_141 : f32 to vector<8x128xf32>
      %362 = vector.broadcast %cst_142 : f32 to vector<8x128xf32>
      %363 = arith.select %360, %361, %362 : vector<8x128xi1>, vector<8x128xf32>
      %cst_143 = arith.constant -2.200000e+00 : f32
      %364 = vector.broadcast %cst_143 : f32 to vector<8x128xf32>
      %365 = arith.subf %276, %364 : vector<8x128xf32>
      %cst_144 = arith.constant -1.800000e+00 : f32
      %366 = vector.broadcast %cst_144 : f32 to vector<8x128xf32>
      %367 = arith.subf %276, %366 : vector<8x128xf32>
      %cst_145 = arith.constant -1.400000e+00 : f32
      %368 = vector.broadcast %cst_145 : f32 to vector<8x128xf32>
      %369 = arith.subf %276, %368 : vector<8x128xf32>
      %cst_146 = arith.constant -1.000000e+00 : f32
      %370 = vector.broadcast %cst_146 : f32 to vector<8x128xf32>
      %371 = arith.subf %276, %370 : vector<8x128xf32>
      %cst_147 = arith.constant -6.000000e-01 : f32
      %372 = vector.broadcast %cst_147 : f32 to vector<8x128xf32>
      %373 = arith.subf %276, %372 : vector<8x128xf32>
      %cst_148 = arith.constant -2.000000e-01 : f32
      %374 = vector.broadcast %cst_148 : f32 to vector<8x128xf32>
      %375 = arith.subf %276, %374 : vector<8x128xf32>
      %cst_149 = arith.constant 2.000000e-01 : f32
      %376 = vector.broadcast %cst_149 : f32 to vector<8x128xf32>
      %377 = arith.subf %276, %376 : vector<8x128xf32>
      %cst_150 = arith.constant 6.000000e-01 : f32
      %378 = vector.broadcast %cst_150 : f32 to vector<8x128xf32>
      %379 = arith.subf %276, %378 : vector<8x128xf32>
      %cst_151 = arith.constant 1.000000e+00 : f32
      %380 = vector.broadcast %cst_151 : f32 to vector<8x128xf32>
      %381 = arith.subf %276, %380 : vector<8x128xf32>
      %cst_152 = arith.constant 1.400000e+00 : f32
      %382 = vector.broadcast %cst_152 : f32 to vector<8x128xf32>
      %383 = arith.subf %276, %382 : vector<8x128xf32>
      %cst_153 = arith.constant 1.800000e+00 : f32
      %384 = vector.broadcast %cst_153 : f32 to vector<8x128xf32>
      %385 = arith.subf %276, %384 : vector<8x128xf32>
      %cst_154 = arith.constant 2.200000e+00 : f32
      %386 = vector.broadcast %cst_154 : f32 to vector<8x128xf32>
      %387 = arith.subf %276, %386 : vector<8x128xf32>
      %388 = arith.mulf %365, %313 : vector<8x128xf32>
      %389 = arith.mulf %369, %318 : vector<8x128xf32>
      %390 = arith.subf %388, %389 : vector<8x128xf32>
      %cst_155 = arith.constant 2.500000e+00 : f32
      %391 = vector.broadcast %cst_155 : f32 to vector<8x128xf32>
      %392 = arith.mulf %390, %391 : vector<8x128xf32>
      %393 = arith.mulf %367, %318 : vector<8x128xf32>
      %394 = arith.mulf %371, %323 : vector<8x128xf32>
      %395 = arith.subf %393, %394 : vector<8x128xf32>
      %cst_156 = arith.constant 2.500000e+00 : f32
      %396 = vector.broadcast %cst_156 : f32 to vector<8x128xf32>
      %397 = arith.mulf %395, %396 : vector<8x128xf32>
      %398 = arith.mulf %369, %323 : vector<8x128xf32>
      %399 = arith.mulf %373, %328 : vector<8x128xf32>
      %400 = arith.subf %398, %399 : vector<8x128xf32>
      %cst_157 = arith.constant 2.500000e+00 : f32
      %401 = vector.broadcast %cst_157 : f32 to vector<8x128xf32>
      %402 = arith.mulf %400, %401 : vector<8x128xf32>
      %403 = arith.mulf %371, %328 : vector<8x128xf32>
      %404 = arith.mulf %375, %333 : vector<8x128xf32>
      %405 = arith.subf %403, %404 : vector<8x128xf32>
      %cst_158 = arith.constant 2.500000e+00 : f32
      %406 = vector.broadcast %cst_158 : f32 to vector<8x128xf32>
      %407 = arith.mulf %405, %406 : vector<8x128xf32>
      %408 = arith.mulf %373, %333 : vector<8x128xf32>
      %409 = arith.mulf %377, %338 : vector<8x128xf32>
      %410 = arith.subf %408, %409 : vector<8x128xf32>
      %cst_159 = arith.constant 2.500000e+00 : f32
      %411 = vector.broadcast %cst_159 : f32 to vector<8x128xf32>
      %412 = arith.mulf %410, %411 : vector<8x128xf32>
      %413 = arith.mulf %375, %338 : vector<8x128xf32>
      %414 = arith.mulf %379, %343 : vector<8x128xf32>
      %415 = arith.subf %413, %414 : vector<8x128xf32>
      %cst_160 = arith.constant 2.500000e+00 : f32
      %416 = vector.broadcast %cst_160 : f32 to vector<8x128xf32>
      %417 = arith.mulf %415, %416 : vector<8x128xf32>
      %418 = arith.mulf %377, %343 : vector<8x128xf32>
      %419 = arith.mulf %381, %348 : vector<8x128xf32>
      %420 = arith.subf %418, %419 : vector<8x128xf32>
      %cst_161 = arith.constant 2.500000e+00 : f32
      %421 = vector.broadcast %cst_161 : f32 to vector<8x128xf32>
      %422 = arith.mulf %420, %421 : vector<8x128xf32>
      %423 = arith.mulf %379, %348 : vector<8x128xf32>
      %424 = arith.mulf %383, %353 : vector<8x128xf32>
      %425 = arith.subf %423, %424 : vector<8x128xf32>
      %cst_162 = arith.constant 2.500000e+00 : f32
      %426 = vector.broadcast %cst_162 : f32 to vector<8x128xf32>
      %427 = arith.mulf %425, %426 : vector<8x128xf32>
      %428 = arith.mulf %381, %353 : vector<8x128xf32>
      %429 = arith.mulf %385, %358 : vector<8x128xf32>
      %430 = arith.subf %428, %429 : vector<8x128xf32>
      %cst_163 = arith.constant 2.500000e+00 : f32
      %431 = vector.broadcast %cst_163 : f32 to vector<8x128xf32>
      %432 = arith.mulf %430, %431 : vector<8x128xf32>
      %433 = arith.mulf %383, %358 : vector<8x128xf32>
      %434 = arith.mulf %387, %363 : vector<8x128xf32>
      %435 = arith.subf %433, %434 : vector<8x128xf32>
      %cst_164 = arith.constant 2.500000e+00 : f32
      %436 = vector.broadcast %cst_164 : f32 to vector<8x128xf32>
      %437 = arith.mulf %435, %436 : vector<8x128xf32>
      %438 = arith.mulf %365, %392 : vector<8x128xf32>
      %439 = arith.mulf %371, %397 : vector<8x128xf32>
      %440 = arith.subf %438, %439 : vector<8x128xf32>
      %cst_165 = arith.constant 1.250000e+00 : f32
      %441 = vector.broadcast %cst_165 : f32 to vector<8x128xf32>
      %442 = arith.mulf %440, %441 : vector<8x128xf32>
      %443 = arith.mulf %367, %397 : vector<8x128xf32>
      %444 = arith.mulf %373, %402 : vector<8x128xf32>
      %445 = arith.subf %443, %444 : vector<8x128xf32>
      %cst_166 = arith.constant 1.250000e+00 : f32
      %446 = vector.broadcast %cst_166 : f32 to vector<8x128xf32>
      %447 = arith.mulf %445, %446 : vector<8x128xf32>
      %448 = arith.mulf %369, %402 : vector<8x128xf32>
      %449 = arith.mulf %375, %407 : vector<8x128xf32>
      %450 = arith.subf %448, %449 : vector<8x128xf32>
      %cst_167 = arith.constant 1.250000e+00 : f32
      %451 = vector.broadcast %cst_167 : f32 to vector<8x128xf32>
      %452 = arith.mulf %450, %451 : vector<8x128xf32>
      %453 = arith.mulf %371, %407 : vector<8x128xf32>
      %454 = arith.mulf %377, %412 : vector<8x128xf32>
      %455 = arith.subf %453, %454 : vector<8x128xf32>
      %cst_168 = arith.constant 1.250000e+00 : f32
      %456 = vector.broadcast %cst_168 : f32 to vector<8x128xf32>
      %457 = arith.mulf %455, %456 : vector<8x128xf32>
      %458 = arith.mulf %373, %412 : vector<8x128xf32>
      %459 = arith.mulf %379, %417 : vector<8x128xf32>
      %460 = arith.subf %458, %459 : vector<8x128xf32>
      %cst_169 = arith.constant 1.250000e+00 : f32
      %461 = vector.broadcast %cst_169 : f32 to vector<8x128xf32>
      %462 = arith.mulf %460, %461 : vector<8x128xf32>
      %463 = arith.mulf %375, %417 : vector<8x128xf32>
      %464 = arith.mulf %381, %422 : vector<8x128xf32>
      %465 = arith.subf %463, %464 : vector<8x128xf32>
      %cst_170 = arith.constant 1.250000e+00 : f32
      %466 = vector.broadcast %cst_170 : f32 to vector<8x128xf32>
      %467 = arith.mulf %465, %466 : vector<8x128xf32>
      %468 = arith.mulf %377, %422 : vector<8x128xf32>
      %469 = arith.mulf %383, %427 : vector<8x128xf32>
      %470 = arith.subf %468, %469 : vector<8x128xf32>
      %cst_171 = arith.constant 1.250000e+00 : f32
      %471 = vector.broadcast %cst_171 : f32 to vector<8x128xf32>
      %472 = arith.mulf %470, %471 : vector<8x128xf32>
      %473 = arith.mulf %379, %427 : vector<8x128xf32>
      %474 = arith.mulf %385, %432 : vector<8x128xf32>
      %475 = arith.subf %473, %474 : vector<8x128xf32>
      %cst_172 = arith.constant 1.250000e+00 : f32
      %476 = vector.broadcast %cst_172 : f32 to vector<8x128xf32>
      %477 = arith.mulf %475, %476 : vector<8x128xf32>
      %478 = arith.mulf %381, %432 : vector<8x128xf32>
      %479 = arith.mulf %387, %437 : vector<8x128xf32>
      %480 = arith.subf %478, %479 : vector<8x128xf32>
      %cst_173 = arith.constant 1.250000e+00 : f32
      %481 = vector.broadcast %cst_173 : f32 to vector<8x128xf32>
      %482 = arith.mulf %480, %481 : vector<8x128xf32>
      %483 = arith.mulf %365, %442 : vector<8x128xf32>
      %484 = arith.mulf %373, %447 : vector<8x128xf32>
      %485 = arith.subf %483, %484 : vector<8x128xf32>
      %cst_174 = arith.constant 0.833333313 : f32
      %486 = vector.broadcast %cst_174 : f32 to vector<8x128xf32>
      %487 = arith.mulf %485, %486 : vector<8x128xf32>
      %488 = arith.mulf %367, %447 : vector<8x128xf32>
      %489 = arith.mulf %375, %452 : vector<8x128xf32>
      %490 = arith.subf %488, %489 : vector<8x128xf32>
      %cst_175 = arith.constant 0.833333313 : f32
      %491 = vector.broadcast %cst_175 : f32 to vector<8x128xf32>
      %492 = arith.mulf %490, %491 : vector<8x128xf32>
      %493 = arith.mulf %369, %452 : vector<8x128xf32>
      %494 = arith.mulf %377, %457 : vector<8x128xf32>
      %495 = arith.subf %493, %494 : vector<8x128xf32>
      %cst_176 = arith.constant 0.833333313 : f32
      %496 = vector.broadcast %cst_176 : f32 to vector<8x128xf32>
      %497 = arith.mulf %495, %496 : vector<8x128xf32>
      %498 = arith.mulf %371, %457 : vector<8x128xf32>
      %499 = arith.mulf %379, %462 : vector<8x128xf32>
      %500 = arith.subf %498, %499 : vector<8x128xf32>
      %cst_177 = arith.constant 0.833333313 : f32
      %501 = vector.broadcast %cst_177 : f32 to vector<8x128xf32>
      %502 = arith.mulf %500, %501 : vector<8x128xf32>
      %503 = arith.mulf %373, %462 : vector<8x128xf32>
      %504 = arith.mulf %381, %467 : vector<8x128xf32>
      %505 = arith.subf %503, %504 : vector<8x128xf32>
      %cst_178 = arith.constant 0.833333313 : f32
      %506 = vector.broadcast %cst_178 : f32 to vector<8x128xf32>
      %507 = arith.mulf %505, %506 : vector<8x128xf32>
      %508 = arith.mulf %375, %467 : vector<8x128xf32>
      %509 = arith.mulf %383, %472 : vector<8x128xf32>
      %510 = arith.subf %508, %509 : vector<8x128xf32>
      %cst_179 = arith.constant 0.833333313 : f32
      %511 = vector.broadcast %cst_179 : f32 to vector<8x128xf32>
      %512 = arith.mulf %510, %511 : vector<8x128xf32>
      %513 = arith.mulf %377, %472 : vector<8x128xf32>
      %514 = arith.mulf %385, %477 : vector<8x128xf32>
      %515 = arith.subf %513, %514 : vector<8x128xf32>
      %cst_180 = arith.constant 0.833333313 : f32
      %516 = vector.broadcast %cst_180 : f32 to vector<8x128xf32>
      %517 = arith.mulf %515, %516 : vector<8x128xf32>
      %518 = arith.mulf %379, %477 : vector<8x128xf32>
      %519 = arith.mulf %387, %482 : vector<8x128xf32>
      %520 = arith.subf %518, %519 : vector<8x128xf32>
      %cst_181 = arith.constant 0.833333313 : f32
      %521 = vector.broadcast %cst_181 : f32 to vector<8x128xf32>
      %522 = arith.mulf %520, %521 : vector<8x128xf32>
      %523 = arith.index_cast %274 : i32 to index
      %c128_182 = arith.constant 128 : index
      %524 = vector.load %arg5[%523, %c128_182] : memref<32x1152xf32, #tpu.memory_space<vmem>>, vector<8x128xf32>
      tpu.vector_store %arg5[%523, %c128_182], %487 {strides = array<i32>} : memref<32x1152xf32, #tpu.memory_space<vmem>>, vector<8x128xf32>,
      %525 = arith.index_cast %274 : i32 to index
      %c256_183 = arith.constant 256 : index
      %526 = vector.load %arg5[%525, %c256_183] : memref<32x1152xf32, #tpu.memory_space<vmem>>, vector<8x128xf32>
      tpu.vector_store %arg5[%525, %c256_183], %492 {strides = array<i32>} : memref<32x1152xf32, #tpu.memory_space<vmem>>, vector<8x128xf32>,
      %527 = arith.index_cast %274 : i32 to index
      %c384_184 = arith.constant 384 : index
      %528 = vector.load %arg5[%527, %c384_184] : memref<32x1152xf32, #tpu.memory_space<vmem>>, vector<8x128xf32>
      tpu.vector_store %arg5[%527, %c384_184], %497 {strides = array<i32>} : memref<32x1152xf32, #tpu.memory_space<vmem>>, vector<8x128xf32>,
      %529 = arith.index_cast %274 : i32 to index
      %c512_185 = arith.constant 512 : index
      %530 = vector.load %arg5[%529, %c512_185] : memref<32x1152xf32, #tpu.memory_space<vmem>>, vector<8x128xf32>
      tpu.vector_store %arg5[%529, %c512_185], %502 {strides = array<i32>} : memref<32x1152xf32, #tpu.memory_space<vmem>>, vector<8x128xf32>,
      %531 = arith.index_cast %274 : i32 to index
      %c640_186 = arith.constant 640 : index
      %532 = vector.load %arg5[%531, %c640_186] : memref<32x1152xf32, #tpu.memory_space<vmem>>, vector<8x128xf32>
      tpu.vector_store %arg5[%531, %c640_186], %507 {strides = array<i32>} : memref<32x1152xf32, #tpu.memory_space<vmem>>, vector<8x128xf32>,
      %533 = arith.index_cast %274 : i32 to index
      %c768_187 = arith.constant 768 : index
      %534 = vector.load %arg5[%533, %c768_187] : memref<32x1152xf32, #tpu.memory_space<vmem>>, vector<8x128xf32>
      tpu.vector_store %arg5[%533, %c768_187], %512 {strides = array<i32>} : memref<32x1152xf32, #tpu.memory_space<vmem>>, vector<8x128xf32>,
      %535 = arith.index_cast %274 : i32 to index
      %c896_188 = arith.constant 896 : index
      %536 = vector.load %arg5[%535, %c896_188] : memref<32x1152xf32, #tpu.memory_space<vmem>>, vector<8x128xf32>
      tpu.vector_store %arg5[%535, %c896_188], %517 {strides = array<i32>} : memref<32x1152xf32, #tpu.memory_space<vmem>>, vector<8x128xf32>,
      %537 = arith.index_cast %274 : i32 to index
      %c1024_189 = arith.constant 1024 : index
      %538 = vector.load %arg5[%537, %c1024_189] : memref<32x1152xf32, #tpu.memory_space<vmem>>, vector<8x128xf32>
      tpu.vector_store %arg5[%537, %c1024_189], %522 {strides = array<i32>} : memref<32x1152xf32, #tpu.memory_space<vmem>>, vector<8x128xf32>,
      %c2_i32 = arith.constant 2 : i32
      %c8_i32_190 = arith.constant 8 : i32
      %539 = arith.muli %c2_i32, %c8_i32_190 : i32
      %540 = tpu.assume_multiple %539, 8 : i32
      %541 = arith.index_cast %540 : i32 to index
      %c0_191 = arith.constant 0 : index
      %542 = vector.load %arg2[%541, %c0_191] : memref<32x128xf32, #tpu.memory_space<vmem>>, vector<8x128xf32>
      %543 = arith.negf %542 : vector<8x128xf32>
      %544 = math.exp %543 : vector<8x128xf32>
      %cst_192 = arith.constant 1.000000e+00 : f32
      %545 = vector.broadcast %cst_192 : f32 to vector<8x128xf32>
      %546 = arith.addf %545, %544 : vector<8x128xf32>
      %547 = arith.divf %545, %546 : vector<8x128xf32>
      %548 = arith.mulf %542, %547 : vector<8x128xf32>
      %549 = arith.index_cast %540 : i32 to index
      %c0_193 = arith.constant 0 : index
      %550 = vector.load %arg5[%549, %c0_193] : memref<32x1152xf32, #tpu.memory_space<vmem>>, vector<8x128xf32>
      tpu.vector_store %arg5[%549, %c0_193], %548 {strides = array<i32>} : memref<32x1152xf32, #tpu.memory_space<vmem>>, vector<8x128xf32>,
      %cst_194 = arith.constant -2.200000e+00 : f32
      %551 = vector.broadcast %cst_194 : f32 to vector<8x128xf32>
      %552 = arith.cmpf oge, %542, %551 : vector<8x128xf32>
      %cst_195 = arith.constant -1.800000e+00 : f32
      %553 = vector.broadcast %cst_195 : f32 to vector<8x128xf32>
      %554 = arith.cmpf oge, %542, %553 : vector<8x128xf32>
      %cst_196 = arith.constant -1.400000e+00 : f32
      %555 = vector.broadcast %cst_196 : f32 to vector<8x128xf32>
      %556 = arith.cmpf oge, %542, %555 : vector<8x128xf32>
      %cst_197 = arith.constant -1.000000e+00 : f32
      %557 = vector.broadcast %cst_197 : f32 to vector<8x128xf32>
      %558 = arith.cmpf oge, %542, %557 : vector<8x128xf32>
      %cst_198 = arith.constant -6.000000e-01 : f32
      %559 = vector.broadcast %cst_198 : f32 to vector<8x128xf32>
      %560 = arith.cmpf oge, %542, %559 : vector<8x128xf32>
      %cst_199 = arith.constant -2.000000e-01 : f32
      %561 = vector.broadcast %cst_199 : f32 to vector<8x128xf32>
      %562 = arith.cmpf oge, %542, %561 : vector<8x128xf32>
      %cst_200 = arith.constant 2.000000e-01 : f32
      %563 = vector.broadcast %cst_200 : f32 to vector<8x128xf32>
      %564 = arith.cmpf oge, %542, %563 : vector<8x128xf32>
      %cst_201 = arith.constant 6.000000e-01 : f32
      %565 = vector.broadcast %cst_201 : f32 to vector<8x128xf32>
      %566 = arith.cmpf oge, %542, %565 : vector<8x128xf32>
      %cst_202 = arith.constant 1.000000e+00 : f32
      %567 = vector.broadcast %cst_202 : f32 to vector<8x128xf32>
      %568 = arith.cmpf oge, %542, %567 : vector<8x128xf32>
      %cst_203 = arith.constant 1.400000e+00 : f32
      %569 = vector.broadcast %cst_203 : f32 to vector<8x128xf32>
      %570 = arith.cmpf oge, %542, %569 : vector<8x128xf32>
      %cst_204 = arith.constant 1.800000e+00 : f32
      %571 = vector.broadcast %cst_204 : f32 to vector<8x128xf32>
      %572 = arith.cmpf oge, %542, %571 : vector<8x128xf32>
      %cst_205 = arith.constant 2.200000e+00 : f32
      %573 = vector.broadcast %cst_205 : f32 to vector<8x128xf32>
      %574 = arith.cmpf oge, %542, %573 : vector<8x128xf32>
      %cst_206 = arith.constant dense<true> : vector<8x128xi1>
      %575 = arith.xori %554, %cst_206 : vector<8x128xi1>
      %576 = arith.andi %552, %575 : vector<8x128xi1>
      %cst_207 = arith.constant 1.000000e+00 : f32
      %cst_208 = arith.constant 0.000000e+00 : f32
      %577 = vector.broadcast %cst_207 : f32 to vector<8x128xf32>
      %578 = vector.broadcast %cst_208 : f32 to vector<8x128xf32>
      %579 = arith.select %576, %577, %578 : vector<8x128xi1>, vector<8x128xf32>
      %cst_209 = arith.constant dense<true> : vector<8x128xi1>
      %580 = arith.xori %556, %cst_209 : vector<8x128xi1>
      %581 = arith.andi %554, %580 : vector<8x128xi1>
      %cst_210 = arith.constant 1.000000e+00 : f32
      %cst_211 = arith.constant 0.000000e+00 : f32
      %582 = vector.broadcast %cst_210 : f32 to vector<8x128xf32>
      %583 = vector.broadcast %cst_211 : f32 to vector<8x128xf32>
      %584 = arith.select %581, %582, %583 : vector<8x128xi1>, vector<8x128xf32>
      %cst_212 = arith.constant dense<true> : vector<8x128xi1>
      %585 = arith.xori %558, %cst_212 : vector<8x128xi1>
      %586 = arith.andi %556, %585 : vector<8x128xi1>
      %cst_213 = arith.constant 1.000000e+00 : f32
      %cst_214 = arith.constant 0.000000e+00 : f32
      %587 = vector.broadcast %cst_213 : f32 to vector<8x128xf32>
      %588 = vector.broadcast %cst_214 : f32 to vector<8x128xf32>
      %589 = arith.select %586, %587, %588 : vector<8x128xi1>, vector<8x128xf32>
      %cst_215 = arith.constant dense<true> : vector<8x128xi1>
      %590 = arith.xori %560, %cst_215 : vector<8x128xi1>
      %591 = arith.andi %558, %590 : vector<8x128xi1>
      %cst_216 = arith.constant 1.000000e+00 : f32
      %cst_217 = arith.constant 0.000000e+00 : f32
      %592 = vector.broadcast %cst_216 : f32 to vector<8x128xf32>
      %593 = vector.broadcast %cst_217 : f32 to vector<8x128xf32>
      %594 = arith.select %591, %592, %593 : vector<8x128xi1>, vector<8x128xf32>
      %cst_218 = arith.constant dense<true> : vector<8x128xi1>
      %595 = arith.xori %562, %cst_218 : vector<8x128xi1>
      %596 = arith.andi %560, %595 : vector<8x128xi1>
      %cst_219 = arith.constant 1.000000e+00 : f32
      %cst_220 = arith.constant 0.000000e+00 : f32
      %597 = vector.broadcast %cst_219 : f32 to vector<8x128xf32>
      %598 = vector.broadcast %cst_220 : f32 to vector<8x128xf32>
      %599 = arith.select %596, %597, %598 : vector<8x128xi1>, vector<8x128xf32>
      %cst_221 = arith.constant dense<true> : vector<8x128xi1>
      %600 = arith.xori %564, %cst_221 : vector<8x128xi1>
      %601 = arith.andi %562, %600 : vector<8x128xi1>
      %cst_222 = arith.constant 1.000000e+00 : f32
      %cst_223 = arith.constant 0.000000e+00 : f32
      %602 = vector.broadcast %cst_222 : f32 to vector<8x128xf32>
      %603 = vector.broadcast %cst_223 : f32 to vector<8x128xf32>
      %604 = arith.select %601, %602, %603 : vector<8x128xi1>, vector<8x128xf32>
      %cst_224 = arith.constant dense<true> : vector<8x128xi1>
      %605 = arith.xori %566, %cst_224 : vector<8x128xi1>
      %606 = arith.andi %564, %605 : vector<8x128xi1>
      %cst_225 = arith.constant 1.000000e+00 : f32
      %cst_226 = arith.constant 0.000000e+00 : f32
      %607 = vector.broadcast %cst_225 : f32 to vector<8x128xf32>
      %608 = vector.broadcast %cst_226 : f32 to vector<8x128xf32>
      %609 = arith.select %606, %607, %608 : vector<8x128xi1>, vector<8x128xf32>
      %cst_227 = arith.constant dense<true> : vector<8x128xi1>
      %610 = arith.xori %568, %cst_227 : vector<8x128xi1>
      %611 = arith.andi %566, %610 : vector<8x128xi1>
      %cst_228 = arith.constant 1.000000e+00 : f32
      %cst_229 = arith.constant 0.000000e+00 : f32
      %612 = vector.broadcast %cst_228 : f32 to vector<8x128xf32>
      %613 = vector.broadcast %cst_229 : f32 to vector<8x128xf32>
      %614 = arith.select %611, %612, %613 : vector<8x128xi1>, vector<8x128xf32>
      %cst_230 = arith.constant dense<true> : vector<8x128xi1>
      %615 = arith.xori %570, %cst_230 : vector<8x128xi1>
      %616 = arith.andi %568, %615 : vector<8x128xi1>
      %cst_231 = arith.constant 1.000000e+00 : f32
      %cst_232 = arith.constant 0.000000e+00 : f32
      %617 = vector.broadcast %cst_231 : f32 to vector<8x128xf32>
      %618 = vector.broadcast %cst_232 : f32 to vector<8x128xf32>
      %619 = arith.select %616, %617, %618 : vector<8x128xi1>, vector<8x128xf32>
      %cst_233 = arith.constant dense<true> : vector<8x128xi1>
      %620 = arith.xori %572, %cst_233 : vector<8x128xi1>
      %621 = arith.andi %570, %620 : vector<8x128xi1>
      %cst_234 = arith.constant 1.000000e+00 : f32
      %cst_235 = arith.constant 0.000000e+00 : f32
      %622 = vector.broadcast %cst_234 : f32 to vector<8x128xf32>
      %623 = vector.broadcast %cst_235 : f32 to vector<8x128xf32>
      %624 = arith.select %621, %622, %623 : vector<8x128xi1>, vector<8x128xf32>
      %cst_236 = arith.constant dense<true> : vector<8x128xi1>
      %625 = arith.xori %574, %cst_236 : vector<8x128xi1>
      %626 = arith.andi %572, %625 : vector<8x128xi1>
      %cst_237 = arith.constant 1.000000e+00 : f32
      %cst_238 = arith.constant 0.000000e+00 : f32
      %627 = vector.broadcast %cst_237 : f32 to vector<8x128xf32>
      %628 = vector.broadcast %cst_238 : f32 to vector<8x128xf32>
      %629 = arith.select %626, %627, %628 : vector<8x128xi1>, vector<8x128xf32>
      %cst_239 = arith.constant -2.200000e+00 : f32
      %630 = vector.broadcast %cst_239 : f32 to vector<8x128xf32>
      %631 = arith.subf %542, %630 : vector<8x128xf32>
      %cst_240 = arith.constant -1.800000e+00 : f32
      %632 = vector.broadcast %cst_240 : f32 to vector<8x128xf32>
      %633 = arith.subf %542, %632 : vector<8x128xf32>
      %cst_241 = arith.constant -1.400000e+00 : f32
      %634 = vector.broadcast %cst_241 : f32 to vector<8x128xf32>
      %635 = arith.subf %542, %634 : vector<8x128xf32>
      %cst_242 = arith.constant -1.000000e+00 : f32
      %636 = vector.broadcast %cst_242 : f32 to vector<8x128xf32>
      %637 = arith.subf %542, %636 : vector<8x128xf32>
      %cst_243 = arith.constant -6.000000e-01 : f32
      %638 = vector.broadcast %cst_243 : f32 to vector<8x128xf32>
      %639 = arith.subf %542, %638 : vector<8x128xf32>
      %cst_244 = arith.constant -2.000000e-01 : f32
      %640 = vector.broadcast %cst_244 : f32 to vector<8x128xf32>
      %641 = arith.subf %542, %640 : vector<8x128xf32>
      %cst_245 = arith.constant 2.000000e-01 : f32
      %642 = vector.broadcast %cst_245 : f32 to vector<8x128xf32>
      %643 = arith.subf %542, %642 : vector<8x128xf32>
      %cst_246 = arith.constant 6.000000e-01 : f32
      %644 = vector.broadcast %cst_246 : f32 to vector<8x128xf32>
      %645 = arith.subf %542, %644 : vector<8x128xf32>
      %cst_247 = arith.constant 1.000000e+00 : f32
      %646 = vector.broadcast %cst_247 : f32 to vector<8x128xf32>
      %647 = arith.subf %542, %646 : vector<8x128xf32>
      %cst_248 = arith.constant 1.400000e+00 : f32
      %648 = vector.broadcast %cst_248 : f32 to vector<8x128xf32>
      %649 = arith.subf %542, %648 : vector<8x128xf32>
      %cst_249 = arith.constant 1.800000e+00 : f32
      %650 = vector.broadcast %cst_249 : f32 to vector<8x128xf32>
      %651 = arith.subf %542, %650 : vector<8x128xf32>
      %cst_250 = arith.constant 2.200000e+00 : f32
      %652 = vector.broadcast %cst_250 : f32 to vector<8x128xf32>
      %653 = arith.subf %542, %652 : vector<8x128xf32>
      %654 = arith.mulf %631, %579 : vector<8x128xf32>
      %655 = arith.mulf %635, %584 : vector<8x128xf32>
      %656 = arith.subf %654, %655 : vector<8x128xf32>
      %cst_251 = arith.constant 2.500000e+00 : f32
      %657 = vector.broadcast %cst_251 : f32 to vector<8x128xf32>
      %658 = arith.mulf %656, %657 : vector<8x128xf32>
      %659 = arith.mulf %633, %584 : vector<8x128xf32>
      %660 = arith.mulf %637, %589 : vector<8x128xf32>
      %661 = arith.subf %659, %660 : vector<8x128xf32>
      %cst_252 = arith.constant 2.500000e+00 : f32
      %662 = vector.broadcast %cst_252 : f32 to vector<8x128xf32>
      %663 = arith.mulf %661, %662 : vector<8x128xf32>
      %664 = arith.mulf %635, %589 : vector<8x128xf32>
      %665 = arith.mulf %639, %594 : vector<8x128xf32>
      %666 = arith.subf %664, %665 : vector<8x128xf32>
      %cst_253 = arith.constant 2.500000e+00 : f32
      %667 = vector.broadcast %cst_253 : f32 to vector<8x128xf32>
      %668 = arith.mulf %666, %667 : vector<8x128xf32>
      %669 = arith.mulf %637, %594 : vector<8x128xf32>
      %670 = arith.mulf %641, %599 : vector<8x128xf32>
      %671 = arith.subf %669, %670 : vector<8x128xf32>
      %cst_254 = arith.constant 2.500000e+00 : f32
      %672 = vector.broadcast %cst_254 : f32 to vector<8x128xf32>
      %673 = arith.mulf %671, %672 : vector<8x128xf32>
      %674 = arith.mulf %639, %599 : vector<8x128xf32>
      %675 = arith.mulf %643, %604 : vector<8x128xf32>
      %676 = arith.subf %674, %675 : vector<8x128xf32>
      %cst_255 = arith.constant 2.500000e+00 : f32
      %677 = vector.broadcast %cst_255 : f32 to vector<8x128xf32>
      %678 = arith.mulf %676, %677 : vector<8x128xf32>
      %679 = arith.mulf %641, %604 : vector<8x128xf32>
      %680 = arith.mulf %645, %609 : vector<8x128xf32>
      %681 = arith.subf %679, %680 : vector<8x128xf32>
      %cst_256 = arith.constant 2.500000e+00 : f32
      %682 = vector.broadcast %cst_256 : f32 to vector<8x128xf32>
      %683 = arith.mulf %681, %682 : vector<8x128xf32>
      %684 = arith.mulf %643, %609 : vector<8x128xf32>
      %685 = arith.mulf %647, %614 : vector<8x128xf32>
      %686 = arith.subf %684, %685 : vector<8x128xf32>
      %cst_257 = arith.constant 2.500000e+00 : f32
      %687 = vector.broadcast %cst_257 : f32 to vector<8x128xf32>
      %688 = arith.mulf %686, %687 : vector<8x128xf32>
      %689 = arith.mulf %645, %614 : vector<8x128xf32>
      %690 = arith.mulf %649, %619 : vector<8x128xf32>
      %691 = arith.subf %689, %690 : vector<8x128xf32>
      %cst_258 = arith.constant 2.500000e+00 : f32
      %692 = vector.broadcast %cst_258 : f32 to vector<8x128xf32>
      %693 = arith.mulf %691, %692 : vector<8x128xf32>
      %694 = arith.mulf %647, %619 : vector<8x128xf32>
      %695 = arith.mulf %651, %624 : vector<8x128xf32>
      %696 = arith.subf %694, %695 : vector<8x128xf32>
      %cst_259 = arith.constant 2.500000e+00 : f32
      %697 = vector.broadcast %cst_259 : f32 to vector<8x128xf32>
      %698 = arith.mulf %696, %697 : vector<8x128xf32>
      %699 = arith.mulf %649, %624 : vector<8x128xf32>
      %700 = arith.mulf %653, %629 : vector<8x128xf32>
      %701 = arith.subf %699, %700 : vector<8x128xf32>
      %cst_260 = arith.constant 2.500000e+00 : f32
      %702 = vector.broadcast %cst_260 : f32 to vector<8x128xf32>
      %703 = arith.mulf %701, %702 : vector<8x128xf32>
      %704 = arith.mulf %631, %658 : vector<8x128xf32>
      %705 = arith.mulf %637, %663 : vector<8x128xf32>
      %706 = arith.subf %704, %705 : vector<8x128xf32>
      %cst_261 = arith.constant 1.250000e+00 : f32
      %707 = vector.broadcast %cst_261 : f32 to vector<8x128xf32>
      %708 = arith.mulf %706, %707 : vector<8x128xf32>
      %709 = arith.mulf %633, %663 : vector<8x128xf32>
      %710 = arith.mulf %639, %668 : vector<8x128xf32>
      %711 = arith.subf %709, %710 : vector<8x128xf32>
      %cst_262 = arith.constant 1.250000e+00 : f32
      %712 = vector.broadcast %cst_262 : f32 to vector<8x128xf32>
      %713 = arith.mulf %711, %712 : vector<8x128xf32>
      %714 = arith.mulf %635, %668 : vector<8x128xf32>
      %715 = arith.mulf %641, %673 : vector<8x128xf32>
      %716 = arith.subf %714, %715 : vector<8x128xf32>
      %cst_263 = arith.constant 1.250000e+00 : f32
      %717 = vector.broadcast %cst_263 : f32 to vector<8x128xf32>
      %718 = arith.mulf %716, %717 : vector<8x128xf32>
      %719 = arith.mulf %637, %673 : vector<8x128xf32>
      %720 = arith.mulf %643, %678 : vector<8x128xf32>
      %721 = arith.subf %719, %720 : vector<8x128xf32>
      %cst_264 = arith.constant 1.250000e+00 : f32
      %722 = vector.broadcast %cst_264 : f32 to vector<8x128xf32>
      %723 = arith.mulf %721, %722 : vector<8x128xf32>
      %724 = arith.mulf %639, %678 : vector<8x128xf32>
      %725 = arith.mulf %645, %683 : vector<8x128xf32>
      %726 = arith.subf %724, %725 : vector<8x128xf32>
      %cst_265 = arith.constant 1.250000e+00 : f32
      %727 = vector.broadcast %cst_265 : f32 to vector<8x128xf32>
      %728 = arith.mulf %726, %727 : vector<8x128xf32>
      %729 = arith.mulf %641, %683 : vector<8x128xf32>
      %730 = arith.mulf %647, %688 : vector<8x128xf32>
      %731 = arith.subf %729, %730 : vector<8x128xf32>
      %cst_266 = arith.constant 1.250000e+00 : f32
      %732 = vector.broadcast %cst_266 : f32 to vector<8x128xf32>
      %733 = arith.mulf %731, %732 : vector<8x128xf32>
      %734 = arith.mulf %643, %688 : vector<8x128xf32>
      %735 = arith.mulf %649, %693 : vector<8x128xf32>
      %736 = arith.subf %734, %735 : vector<8x128xf32>
      %cst_267 = arith.constant 1.250000e+00 : f32
      %737 = vector.broadcast %cst_267 : f32 to vector<8x128xf32>
      %738 = arith.mulf %736, %737 : vector<8x128xf32>
      %739 = arith.mulf %645, %693 : vector<8x128xf32>
      %740 = arith.mulf %651, %698 : vector<8x128xf32>
      %741 = arith.subf %739, %740 : vector<8x128xf32>
      %cst_268 = arith.constant 1.250000e+00 : f32
      %742 = vector.broadcast %cst_268 : f32 to vector<8x128xf32>
      %743 = arith.mulf %741, %742 : vector<8x128xf32>
      %744 = arith.mulf %647, %698 : vector<8x128xf32>
      %745 = arith.mulf %653, %703 : vector<8x128xf32>
      %746 = arith.subf %744, %745 : vector<8x128xf32>
      %cst_269 = arith.constant 1.250000e+00 : f32
      %747 = vector.broadcast %cst_269 : f32 to vector<8x128xf32>
      %748 = arith.mulf %746, %747 : vector<8x128xf32>
      %749 = arith.mulf %631, %708 : vector<8x128xf32>
      %750 = arith.mulf %639, %713 : vector<8x128xf32>
      %751 = arith.subf %749, %750 : vector<8x128xf32>
      %cst_270 = arith.constant 0.833333313 : f32
      %752 = vector.broadcast %cst_270 : f32 to vector<8x128xf32>
      %753 = arith.mulf %751, %752 : vector<8x128xf32>
      %754 = arith.mulf %633, %713 : vector<8x128xf32>
      %755 = arith.mulf %641, %718 : vector<8x128xf32>
      %756 = arith.subf %754, %755 : vector<8x128xf32>
      %cst_271 = arith.constant 0.833333313 : f32
      %757 = vector.broadcast %cst_271 : f32 to vector<8x128xf32>
      %758 = arith.mulf %756, %757 : vector<8x128xf32>
      %759 = arith.mulf %635, %718 : vector<8x128xf32>
      %760 = arith.mulf %643, %723 : vector<8x128xf32>
      %761 = arith.subf %759, %760 : vector<8x128xf32>
      %cst_272 = arith.constant 0.833333313 : f32
      %762 = vector.broadcast %cst_272 : f32 to vector<8x128xf32>
      %763 = arith.mulf %761, %762 : vector<8x128xf32>
      %764 = arith.mulf %637, %723 : vector<8x128xf32>
      %765 = arith.mulf %645, %728 : vector<8x128xf32>
      %766 = arith.subf %764, %765 : vector<8x128xf32>
      %cst_273 = arith.constant 0.833333313 : f32
      %767 = vector.broadcast %cst_273 : f32 to vector<8x128xf32>
      %768 = arith.mulf %766, %767 : vector<8x128xf32>
      %769 = arith.mulf %639, %728 : vector<8x128xf32>
      %770 = arith.mulf %647, %733 : vector<8x128xf32>
      %771 = arith.subf %769, %770 : vector<8x128xf32>
      %cst_274 = arith.constant 0.833333313 : f32
      %772 = vector.broadcast %cst_274 : f32 to vector<8x128xf32>
      %773 = arith.mulf %771, %772 : vector<8x128xf32>
      %774 = arith.mulf %641, %733 : vector<8x128xf32>
      %775 = arith.mulf %649, %738 : vector<8x128xf32>
      %776 = arith.subf %774, %775 : vector<8x128xf32>
      %cst_275 = arith.constant 0.833333313 : f32
      %777 = vector.broadcast %cst_275 : f32 to vector<8x128xf32>
      %778 = arith.mulf %776, %777 : vector<8x128xf32>
      %779 = arith.mulf %643, %738 : vector<8x128xf32>
      %780 = arith.mulf %651, %743 : vector<8x128xf32>
      %781 = arith.subf %779, %780 : vector<8x128xf32>
      %cst_276 = arith.constant 0.833333313 : f32
      %782 = vector.broadcast %cst_276 : f32 to vector<8x128xf32>
      %783 = arith.mulf %781, %782 : vector<8x128xf32>
      %784 = arith.mulf %645, %743 : vector<8x128xf32>
      %785 = arith.mulf %653, %748 : vector<8x128xf32>
      %786 = arith.subf %784, %785 : vector<8x128xf32>
      %cst_277 = arith.constant 0.833333313 : f32
      %787 = vector.broadcast %cst_277 : f32 to vector<8x128xf32>
      %788 = arith.mulf %786, %787 : vector<8x128xf32>
      %789 = arith.index_cast %540 : i32 to index
      %c128_278 = arith.constant 128 : index
      %790 = vector.load %arg5[%789, %c128_278] : memref<32x1152xf32, #tpu.memory_space<vmem>>, vector<8x128xf32>
      tpu.vector_store %arg5[%789, %c128_278], %753 {strides = array<i32>} : memref<32x1152xf32, #tpu.memory_space<vmem>>, vector<8x128xf32>,
      %791 = arith.index_cast %540 : i32 to index
      %c256_279 = arith.constant 256 : index
      %792 = vector.load %arg5[%791, %c256_279] : memref<32x1152xf32, #tpu.memory_space<vmem>>, vector<8x128xf32>
      tpu.vector_store %arg5[%791, %c256_279], %758 {strides = array<i32>} : memref<32x1152xf32, #tpu.memory_space<vmem>>, vector<8x128xf32>,
      %793 = arith.index_cast %540 : i32 to index
      %c384_280 = arith.constant 384 : index
      %794 = vector.load %arg5[%793, %c384_280] : memref<32x1152xf32, #tpu.memory_space<vmem>>, vector<8x128xf32>
      tpu.vector_store %arg5[%793, %c384_280], %763 {strides = array<i32>} : memref<32x1152xf32, #tpu.memory_space<vmem>>, vector<8x128xf32>,
      %795 = arith.index_cast %540 : i32 to index
      %c512_281 = arith.constant 512 : index
      %796 = vector.load %arg5[%795, %c512_281] : memref<32x1152xf32, #tpu.memory_space<vmem>>, vector<8x128xf32>
      tpu.vector_store %arg5[%795, %c512_281], %768 {strides = array<i32>} : memref<32x1152xf32, #tpu.memory_space<vmem>>, vector<8x128xf32>,
      %797 = arith.index_cast %540 : i32 to index
      %c640_282 = arith.constant 640 : index
      %798 = vector.load %arg5[%797, %c640_282] : memref<32x1152xf32, #tpu.memory_space<vmem>>, vector<8x128xf32>
      tpu.vector_store %arg5[%797, %c640_282], %773 {strides = array<i32>} : memref<32x1152xf32, #tpu.memory_space<vmem>>, vector<8x128xf32>,
      %799 = arith.index_cast %540 : i32 to index
      %c768_283 = arith.constant 768 : index
      %800 = vector.load %arg5[%799, %c768_283] : memref<32x1152xf32, #tpu.memory_space<vmem>>, vector<8x128xf32>
      tpu.vector_store %arg5[%799, %c768_283], %778 {strides = array<i32>} : memref<32x1152xf32, #tpu.memory_space<vmem>>, vector<8x128xf32>,
      %801 = arith.index_cast %540 : i32 to index
      %c896_284 = arith.constant 896 : index
      %802 = vector.load %arg5[%801, %c896_284] : memref<32x1152xf32, #tpu.memory_space<vmem>>, vector<8x128xf32>
      tpu.vector_store %arg5[%801, %c896_284], %783 {strides = array<i32>} : memref<32x1152xf32, #tpu.memory_space<vmem>>, vector<8x128xf32>,
      %803 = arith.index_cast %540 : i32 to index
      %c1024_285 = arith.constant 1024 : index
      %804 = vector.load %arg5[%803, %c1024_285] : memref<32x1152xf32, #tpu.memory_space<vmem>>, vector<8x128xf32>
      tpu.vector_store %arg5[%803, %c1024_285], %788 {strides = array<i32>} : memref<32x1152xf32, #tpu.memory_space<vmem>>, vector<8x128xf32>,
      %c3_i32 = arith.constant 3 : i32
      %c8_i32_286 = arith.constant 8 : i32
      %805 = arith.muli %c3_i32, %c8_i32_286 : i32
      %806 = tpu.assume_multiple %805, 8 : i32
      %807 = arith.index_cast %806 : i32 to index
      %c0_287 = arith.constant 0 : index
      %808 = vector.load %arg2[%807, %c0_287] : memref<32x128xf32, #tpu.memory_space<vmem>>, vector<8x128xf32>
      %809 = arith.negf %808 : vector<8x128xf32>
      %810 = math.exp %809 : vector<8x128xf32>
      %cst_288 = arith.constant 1.000000e+00 : f32
      %811 = vector.broadcast %cst_288 : f32 to vector<8x128xf32>
      %812 = arith.addf %811, %810 : vector<8x128xf32>
      %813 = arith.divf %811, %812 : vector<8x128xf32>
      %814 = arith.mulf %808, %813 : vector<8x128xf32>
      %815 = arith.index_cast %806 : i32 to index
      %c0_289 = arith.constant 0 : index
      %816 = vector.load %arg5[%815, %c0_289] : memref<32x1152xf32, #tpu.memory_space<vmem>>, vector<8x128xf32>
      tpu.vector_store %arg5[%815, %c0_289], %814 {strides = array<i32>} : memref<32x1152xf32, #tpu.memory_space<vmem>>, vector<8x128xf32>,
      %cst_290 = arith.constant -2.200000e+00 : f32
      %817 = vector.broadcast %cst_290 : f32 to vector<8x128xf32>
      %818 = arith.cmpf oge, %808, %817 : vector<8x128xf32>
      %cst_291 = arith.constant -1.800000e+00 : f32
      %819 = vector.broadcast %cst_291 : f32 to vector<8x128xf32>
      %820 = arith.cmpf oge, %808, %819 : vector<8x128xf32>
      %cst_292 = arith.constant -1.400000e+00 : f32
      %821 = vector.broadcast %cst_292 : f32 to vector<8x128xf32>
      %822 = arith.cmpf oge, %808, %821 : vector<8x128xf32>
      %cst_293 = arith.constant -1.000000e+00 : f32
      %823 = vector.broadcast %cst_293 : f32 to vector<8x128xf32>
      %824 = arith.cmpf oge, %808, %823 : vector<8x128xf32>
      %cst_294 = arith.constant -6.000000e-01 : f32
      %825 = vector.broadcast %cst_294 : f32 to vector<8x128xf32>
      %826 = arith.cmpf oge, %808, %825 : vector<8x128xf32>
      %cst_295 = arith.constant -2.000000e-01 : f32
      %827 = vector.broadcast %cst_295 : f32 to vector<8x128xf32>
      %828 = arith.cmpf oge, %808, %827 : vector<8x128xf32>
      %cst_296 = arith.constant 2.000000e-01 : f32
      %829 = vector.broadcast %cst_296 : f32 to vector<8x128xf32>
      %830 = arith.cmpf oge, %808, %829 : vector<8x128xf32>
      %cst_297 = arith.constant 6.000000e-01 : f32
      %831 = vector.broadcast %cst_297 : f32 to vector<8x128xf32>
      %832 = arith.cmpf oge, %808, %831 : vector<8x128xf32>
      %cst_298 = arith.constant 1.000000e+00 : f32
      %833 = vector.broadcast %cst_298 : f32 to vector<8x128xf32>
      %834 = arith.cmpf oge, %808, %833 : vector<8x128xf32>
      %cst_299 = arith.constant 1.400000e+00 : f32
      %835 = vector.broadcast %cst_299 : f32 to vector<8x128xf32>
      %836 = arith.cmpf oge, %808, %835 : vector<8x128xf32>
      %cst_300 = arith.constant 1.800000e+00 : f32
      %837 = vector.broadcast %cst_300 : f32 to vector<8x128xf32>
      %838 = arith.cmpf oge, %808, %837 : vector<8x128xf32>
      %cst_301 = arith.constant 2.200000e+00 : f32
      %839 = vector.broadcast %cst_301 : f32 to vector<8x128xf32>
      %840 = arith.cmpf oge, %808, %839 : vector<8x128xf32>
      %cst_302 = arith.constant dense<true> : vector<8x128xi1>
      %841 = arith.xori %820, %cst_302 : vector<8x128xi1>
      %842 = arith.andi %818, %841 : vector<8x128xi1>
      %cst_303 = arith.constant 1.000000e+00 : f32
      %cst_304 = arith.constant 0.000000e+00 : f32
      %843 = vector.broadcast %cst_303 : f32 to vector<8x128xf32>
      %844 = vector.broadcast %cst_304 : f32 to vector<8x128xf32>
      %845 = arith.select %842, %843, %844 : vector<8x128xi1>, vector<8x128xf32>
      %cst_305 = arith.constant dense<true> : vector<8x128xi1>
      %846 = arith.xori %822, %cst_305 : vector<8x128xi1>
      %847 = arith.andi %820, %846 : vector<8x128xi1>
      %cst_306 = arith.constant 1.000000e+00 : f32
      %cst_307 = arith.constant 0.000000e+00 : f32
      %848 = vector.broadcast %cst_306 : f32 to vector<8x128xf32>
      %849 = vector.broadcast %cst_307 : f32 to vector<8x128xf32>
      %850 = arith.select %847, %848, %849 : vector<8x128xi1>, vector<8x128xf32>
      %cst_308 = arith.constant dense<true> : vector<8x128xi1>
      %851 = arith.xori %824, %cst_308 : vector<8x128xi1>
      %852 = arith.andi %822, %851 : vector<8x128xi1>
      %cst_309 = arith.constant 1.000000e+00 : f32
      %cst_310 = arith.constant 0.000000e+00 : f32
      %853 = vector.broadcast %cst_309 : f32 to vector<8x128xf32>
      %854 = vector.broadcast %cst_310 : f32 to vector<8x128xf32>
      %855 = arith.select %852, %853, %854 : vector<8x128xi1>, vector<8x128xf32>
      %cst_311 = arith.constant dense<true> : vector<8x128xi1>
      %856 = arith.xori %826, %cst_311 : vector<8x128xi1>
      %857 = arith.andi %824, %856 : vector<8x128xi1>
      %cst_312 = arith.constant 1.000000e+00 : f32
      %cst_313 = arith.constant 0.000000e+00 : f32
      %858 = vector.broadcast %cst_312 : f32 to vector<8x128xf32>
      %859 = vector.broadcast %cst_313 : f32 to vector<8x128xf32>
      %860 = arith.select %857, %858, %859 : vector<8x128xi1>, vector<8x128xf32>
      %cst_314 = arith.constant dense<true> : vector<8x128xi1>
      %861 = arith.xori %828, %cst_314 : vector<8x128xi1>
      %862 = arith.andi %826, %861 : vector<8x128xi1>
      %cst_315 = arith.constant 1.000000e+00 : f32
      %cst_316 = arith.constant 0.000000e+00 : f32
      %863 = vector.broadcast %cst_315 : f32 to vector<8x128xf32>
      %864 = vector.broadcast %cst_316 : f32 to vector<8x128xf32>
      %865 = arith.select %862, %863, %864 : vector<8x128xi1>, vector<8x128xf32>
      %cst_317 = arith.constant dense<true> : vector<8x128xi1>
      %866 = arith.xori %830, %cst_317 : vector<8x128xi1>
      %867 = arith.andi %828, %866 : vector<8x128xi1>
      %cst_318 = arith.constant 1.000000e+00 : f32
      %cst_319 = arith.constant 0.000000e+00 : f32
      %868 = vector.broadcast %cst_318 : f32 to vector<8x128xf32>
      %869 = vector.broadcast %cst_319 : f32 to vector<8x128xf32>
      %870 = arith.select %867, %868, %869 : vector<8x128xi1>, vector<8x128xf32>
      %cst_320 = arith.constant dense<true> : vector<8x128xi1>
      %871 = arith.xori %832, %cst_320 : vector<8x128xi1>
      %872 = arith.andi %830, %871 : vector<8x128xi1>
      %cst_321 = arith.constant 1.000000e+00 : f32
      %cst_322 = arith.constant 0.000000e+00 : f32
      %873 = vector.broadcast %cst_321 : f32 to vector<8x128xf32>
      %874 = vector.broadcast %cst_322 : f32 to vector<8x128xf32>
      %875 = arith.select %872, %873, %874 : vector<8x128xi1>, vector<8x128xf32>
      %cst_323 = arith.constant dense<true> : vector<8x128xi1>
      %876 = arith.xori %834, %cst_323 : vector<8x128xi1>
      %877 = arith.andi %832, %876 : vector<8x128xi1>
      %cst_324 = arith.constant 1.000000e+00 : f32
      %cst_325 = arith.constant 0.000000e+00 : f32
      %878 = vector.broadcast %cst_324 : f32 to vector<8x128xf32>
      %879 = vector.broadcast %cst_325 : f32 to vector<8x128xf32>
      %880 = arith.select %877, %878, %879 : vector<8x128xi1>, vector<8x128xf32>
      %cst_326 = arith.constant dense<true> : vector<8x128xi1>
      %881 = arith.xori %836, %cst_326 : vector<8x128xi1>
      %882 = arith.andi %834, %881 : vector<8x128xi1>
      %cst_327 = arith.constant 1.000000e+00 : f32
      %cst_328 = arith.constant 0.000000e+00 : f32
      %883 = vector.broadcast %cst_327 : f32 to vector<8x128xf32>
      %884 = vector.broadcast %cst_328 : f32 to vector<8x128xf32>
      %885 = arith.select %882, %883, %884 : vector<8x128xi1>, vector<8x128xf32>
      %cst_329 = arith.constant dense<true> : vector<8x128xi1>
      %886 = arith.xori %838, %cst_329 : vector<8x128xi1>
      %887 = arith.andi %836, %886 : vector<8x128xi1>
      %cst_330 = arith.constant 1.000000e+00 : f32
      %cst_331 = arith.constant 0.000000e+00 : f32
      %888 = vector.broadcast %cst_330 : f32 to vector<8x128xf32>
      %889 = vector.broadcast %cst_331 : f32 to vector<8x128xf32>
      %890 = arith.select %887, %888, %889 : vector<8x128xi1>, vector<8x128xf32>
      %cst_332 = arith.constant dense<true> : vector<8x128xi1>
      %891 = arith.xori %840, %cst_332 : vector<8x128xi1>
      %892 = arith.andi %838, %891 : vector<8x128xi1>
      %cst_333 = arith.constant 1.000000e+00 : f32
      %cst_334 = arith.constant 0.000000e+00 : f32
      %893 = vector.broadcast %cst_333 : f32 to vector<8x128xf32>
      %894 = vector.broadcast %cst_334 : f32 to vector<8x128xf32>
      %895 = arith.select %892, %893, %894 : vector<8x128xi1>, vector<8x128xf32>
      %cst_335 = arith.constant -2.200000e+00 : f32
      %896 = vector.broadcast %cst_335 : f32 to vector<8x128xf32>
      %897 = arith.subf %808, %896 : vector<8x128xf32>
      %cst_336 = arith.constant -1.800000e+00 : f32
      %898 = vector.broadcast %cst_336 : f32 to vector<8x128xf32>
      %899 = arith.subf %808, %898 : vector<8x128xf32>
      %cst_337 = arith.constant -1.400000e+00 : f32
      %900 = vector.broadcast %cst_337 : f32 to vector<8x128xf32>
      %901 = arith.subf %808, %900 : vector<8x128xf32>
      %cst_338 = arith.constant -1.000000e+00 : f32
      %902 = vector.broadcast %cst_338 : f32 to vector<8x128xf32>
      %903 = arith.subf %808, %902 : vector<8x128xf32>
      %cst_339 = arith.constant -6.000000e-01 : f32
      %904 = vector.broadcast %cst_339 : f32 to vector<8x128xf32>
      %905 = arith.subf %808, %904 : vector<8x128xf32>
      %cst_340 = arith.constant -2.000000e-01 : f32
      %906 = vector.broadcast %cst_340 : f32 to vector<8x128xf32>
      %907 = arith.subf %808, %906 : vector<8x128xf32>
      %cst_341 = arith.constant 2.000000e-01 : f32
      %908 = vector.broadcast %cst_341 : f32 to vector<8x128xf32>
      %909 = arith.subf %808, %908 : vector<8x128xf32>
      %cst_342 = arith.constant 6.000000e-01 : f32
      %910 = vector.broadcast %cst_342 : f32 to vector<8x128xf32>
      %911 = arith.subf %808, %910 : vector<8x128xf32>
      %cst_343 = arith.constant 1.000000e+00 : f32
      %912 = vector.broadcast %cst_343 : f32 to vector<8x128xf32>
      %913 = arith.subf %808, %912 : vector<8x128xf32>
      %cst_344 = arith.constant 1.400000e+00 : f32
      %914 = vector.broadcast %cst_344 : f32 to vector<8x128xf32>
      %915 = arith.subf %808, %914 : vector<8x128xf32>
      %cst_345 = arith.constant 1.800000e+00 : f32
      %916 = vector.broadcast %cst_345 : f32 to vector<8x128xf32>
      %917 = arith.subf %808, %916 : vector<8x128xf32>
      %cst_346 = arith.constant 2.200000e+00 : f32
      %918 = vector.broadcast %cst_346 : f32 to vector<8x128xf32>
      %919 = arith.subf %808, %918 : vector<8x128xf32>
      %920 = arith.mulf %897, %845 : vector<8x128xf32>
      %921 = arith.mulf %901, %850 : vector<8x128xf32>
      %922 = arith.subf %920, %921 : vector<8x128xf32>
      %cst_347 = arith.constant 2.500000e+00 : f32
      %923 = vector.broadcast %cst_347 : f32 to vector<8x128xf32>
      %924 = arith.mulf %922, %923 : vector<8x128xf32>
      %925 = arith.mulf %899, %850 : vector<8x128xf32>
      %926 = arith.mulf %903, %855 : vector<8x128xf32>
      %927 = arith.subf %925, %926 : vector<8x128xf32>
      %cst_348 = arith.constant 2.500000e+00 : f32
      %928 = vector.broadcast %cst_348 : f32 to vector<8x128xf32>
      %929 = arith.mulf %927, %928 : vector<8x128xf32>
      %930 = arith.mulf %901, %855 : vector<8x128xf32>
      %931 = arith.mulf %905, %860 : vector<8x128xf32>
      %932 = arith.subf %930, %931 : vector<8x128xf32>
      %cst_349 = arith.constant 2.500000e+00 : f32
      %933 = vector.broadcast %cst_349 : f32 to vector<8x128xf32>
      %934 = arith.mulf %932, %933 : vector<8x128xf32>
      %935 = arith.mulf %903, %860 : vector<8x128xf32>
      %936 = arith.mulf %907, %865 : vector<8x128xf32>
      %937 = arith.subf %935, %936 : vector<8x128xf32>
      %cst_350 = arith.constant 2.500000e+00 : f32
      %938 = vector.broadcast %cst_350 : f32 to vector<8x128xf32>
      %939 = arith.mulf %937, %938 : vector<8x128xf32>
      %940 = arith.mulf %905, %865 : vector<8x128xf32>
      %941 = arith.mulf %909, %870 : vector<8x128xf32>
      %942 = arith.subf %940, %941 : vector<8x128xf32>
      %cst_351 = arith.constant 2.500000e+00 : f32
      %943 = vector.broadcast %cst_351 : f32 to vector<8x128xf32>
      %944 = arith.mulf %942, %943 : vector<8x128xf32>
      %945 = arith.mulf %907, %870 : vector<8x128xf32>
      %946 = arith.mulf %911, %875 : vector<8x128xf32>
      %947 = arith.subf %945, %946 : vector<8x128xf32>
      %cst_352 = arith.constant 2.500000e+00 : f32
      %948 = vector.broadcast %cst_352 : f32 to vector<8x128xf32>
      %949 = arith.mulf %947, %948 : vector<8x128xf32>
      %950 = arith.mulf %909, %875 : vector<8x128xf32>
      %951 = arith.mulf %913, %880 : vector<8x128xf32>
      %952 = arith.subf %950, %951 : vector<8x128xf32>
      %cst_353 = arith.constant 2.500000e+00 : f32
      %953 = vector.broadcast %cst_353 : f32 to vector<8x128xf32>
      %954 = arith.mulf %952, %953 : vector<8x128xf32>
      %955 = arith.mulf %911, %880 : vector<8x128xf32>
      %956 = arith.mulf %915, %885 : vector<8x128xf32>
      %957 = arith.subf %955, %956 : vector<8x128xf32>
      %cst_354 = arith.constant 2.500000e+00 : f32
      %958 = vector.broadcast %cst_354 : f32 to vector<8x128xf32>
      %959 = arith.mulf %957, %958 : vector<8x128xf32>
      %960 = arith.mulf %913, %885 : vector<8x128xf32>
      %961 = arith.mulf %917, %890 : vector<8x128xf32>
      %962 = arith.subf %960, %961 : vector<8x128xf32>
      %cst_355 = arith.constant 2.500000e+00 : f32
      %963 = vector.broadcast %cst_355 : f32 to vector<8x128xf32>
      %964 = arith.mulf %962, %963 : vector<8x128xf32>
      %965 = arith.mulf %915, %890 : vector<8x128xf32>
      %966 = arith.mulf %919, %895 : vector<8x128xf32>
      %967 = arith.subf %965, %966 : vector<8x128xf32>
      %cst_356 = arith.constant 2.500000e+00 : f32
      %968 = vector.broadcast %cst_356 : f32 to vector<8x128xf32>
      %969 = arith.mulf %967, %968 : vector<8x128xf32>
      %970 = arith.mulf %897, %924 : vector<8x128xf32>
      %971 = arith.mulf %903, %929 : vector<8x128xf32>
      %972 = arith.subf %970, %971 : vector<8x128xf32>
      %cst_357 = arith.constant 1.250000e+00 : f32
      %973 = vector.broadcast %cst_357 : f32 to vector<8x128xf32>
      %974 = arith.mulf %972, %973 : vector<8x128xf32>
      %975 = arith.mulf %899, %929 : vector<8x128xf32>
      %976 = arith.mulf %905, %934 : vector<8x128xf32>
      %977 = arith.subf %975, %976 : vector<8x128xf32>
      %cst_358 = arith.constant 1.250000e+00 : f32
      %978 = vector.broadcast %cst_358 : f32 to vector<8x128xf32>
      %979 = arith.mulf %977, %978 : vector<8x128xf32>
      %980 = arith.mulf %901, %934 : vector<8x128xf32>
      %981 = arith.mulf %907, %939 : vector<8x128xf32>
      %982 = arith.subf %980, %981 : vector<8x128xf32>
      %cst_359 = arith.constant 1.250000e+00 : f32
      %983 = vector.broadcast %cst_359 : f32 to vector<8x128xf32>
      %984 = arith.mulf %982, %983 : vector<8x128xf32>
      %985 = arith.mulf %903, %939 : vector<8x128xf32>
      %986 = arith.mulf %909, %944 : vector<8x128xf32>
      %987 = arith.subf %985, %986 : vector<8x128xf32>
      %cst_360 = arith.constant 1.250000e+00 : f32
      %988 = vector.broadcast %cst_360 : f32 to vector<8x128xf32>
      %989 = arith.mulf %987, %988 : vector<8x128xf32>
      %990 = arith.mulf %905, %944 : vector<8x128xf32>
      %991 = arith.mulf %911, %949 : vector<8x128xf32>
      %992 = arith.subf %990, %991 : vector<8x128xf32>
      %cst_361 = arith.constant 1.250000e+00 : f32
      %993 = vector.broadcast %cst_361 : f32 to vector<8x128xf32>
      %994 = arith.mulf %992, %993 : vector<8x128xf32>
      %995 = arith.mulf %907, %949 : vector<8x128xf32>
      %996 = arith.mulf %913, %954 : vector<8x128xf32>
      %997 = arith.subf %995, %996 : vector<8x128xf32>
      %cst_362 = arith.constant 1.250000e+00 : f32
      %998 = vector.broadcast %cst_362 : f32 to vector<8x128xf32>
      %999 = arith.mulf %997, %998 : vector<8x128xf32>
      %1000 = arith.mulf %909, %954 : vector<8x128xf32>
      %1001 = arith.mulf %915, %959 : vector<8x128xf32>
      %1002 = arith.subf %1000, %1001 : vector<8x128xf32>
      %cst_363 = arith.constant 1.250000e+00 : f32
      %1003 = vector.broadcast %cst_363 : f32 to vector<8x128xf32>
      %1004 = arith.mulf %1002, %1003 : vector<8x128xf32>
      %1005 = arith.mulf %911, %959 : vector<8x128xf32>
      %1006 = arith.mulf %917, %964 : vector<8x128xf32>
      %1007 = arith.subf %1005, %1006 : vector<8x128xf32>
      %cst_364 = arith.constant 1.250000e+00 : f32
      %1008 = vector.broadcast %cst_364 : f32 to vector<8x128xf32>
      %1009 = arith.mulf %1007, %1008 : vector<8x128xf32>
      %1010 = arith.mulf %913, %964 : vector<8x128xf32>
      %1011 = arith.mulf %919, %969 : vector<8x128xf32>
      %1012 = arith.subf %1010, %1011 : vector<8x128xf32>
      %cst_365 = arith.constant 1.250000e+00 : f32
      %1013 = vector.broadcast %cst_365 : f32 to vector<8x128xf32>
      %1014 = arith.mulf %1012, %1013 : vector<8x128xf32>
      %1015 = arith.mulf %897, %974 : vector<8x128xf32>
      %1016 = arith.mulf %905, %979 : vector<8x128xf32>
      %1017 = arith.subf %1015, %1016 : vector<8x128xf32>
      %cst_366 = arith.constant 0.833333313 : f32
      %1018 = vector.broadcast %cst_366 : f32 to vector<8x128xf32>
      %1019 = arith.mulf %1017, %1018 : vector<8x128xf32>
      %1020 = arith.mulf %899, %979 : vector<8x128xf32>
      %1021 = arith.mulf %907, %984 : vector<8x128xf32>
      %1022 = arith.subf %1020, %1021 : vector<8x128xf32>
      %cst_367 = arith.constant 0.833333313 : f32
      %1023 = vector.broadcast %cst_367 : f32 to vector<8x128xf32>
      %1024 = arith.mulf %1022, %1023 : vector<8x128xf32>
      %1025 = arith.mulf %901, %984 : vector<8x128xf32>
      %1026 = arith.mulf %909, %989 : vector<8x128xf32>
      %1027 = arith.subf %1025, %1026 : vector<8x128xf32>
      %cst_368 = arith.constant 0.833333313 : f32
      %1028 = vector.broadcast %cst_368 : f32 to vector<8x128xf32>
      %1029 = arith.mulf %1027, %1028 : vector<8x128xf32>
      %1030 = arith.mulf %903, %989 : vector<8x128xf32>
      %1031 = arith.mulf %911, %994 : vector<8x128xf32>
      %1032 = arith.subf %1030, %1031 : vector<8x128xf32>
      %cst_369 = arith.constant 0.833333313 : f32
      %1033 = vector.broadcast %cst_369 : f32 to vector<8x128xf32>
      %1034 = arith.mulf %1032, %1033 : vector<8x128xf32>
      %1035 = arith.mulf %905, %994 : vector<8x128xf32>
      %1036 = arith.mulf %913, %999 : vector<8x128xf32>
      %1037 = arith.subf %1035, %1036 : vector<8x128xf32>
      %cst_370 = arith.constant 0.833333313 : f32
      %1038 = vector.broadcast %cst_370 : f32 to vector<8x128xf32>
      %1039 = arith.mulf %1037, %1038 : vector<8x128xf32>
      %1040 = arith.mulf %907, %999 : vector<8x128xf32>
      %1041 = arith.mulf %915, %1004 : vector<8x128xf32>
      %1042 = arith.subf %1040, %1041 : vector<8x128xf32>
      %cst_371 = arith.constant 0.833333313 : f32
      %1043 = vector.broadcast %cst_371 : f32 to vector<8x128xf32>
      %1044 = arith.mulf %1042, %1043 : vector<8x128xf32>
      %1045 = arith.mulf %909, %1004 : vector<8x128xf32>
      %1046 = arith.mulf %917, %1009 : vector<8x128xf32>
      %1047 = arith.subf %1045, %1046 : vector<8x128xf32>
      %cst_372 = arith.constant 0.833333313 : f32
      %1048 = vector.broadcast %cst_372 : f32 to vector<8x128xf32>
      %1049 = arith.mulf %1047, %1048 : vector<8x128xf32>
      %1050 = arith.mulf %911, %1009 : vector<8x128xf32>
      %1051 = arith.mulf %919, %1014 : vector<8x128xf32>
      %1052 = arith.subf %1050, %1051 : vector<8x128xf32>
      %cst_373 = arith.constant 0.833333313 : f32
      %1053 = vector.broadcast %cst_373 : f32 to vector<8x128xf32>
      %1054 = arith.mulf %1052, %1053 : vector<8x128xf32>
      %1055 = arith.index_cast %806 : i32 to index
      %c128_374 = arith.constant 128 : index
      %1056 = vector.load %arg5[%1055, %c128_374] : memref<32x1152xf32, #tpu.memory_space<vmem>>, vector<8x128xf32>
      tpu.vector_store %arg5[%1055, %c128_374], %1019 {strides = array<i32>} : memref<32x1152xf32, #tpu.memory_space<vmem>>, vector<8x128xf32>,
      %1057 = arith.index_cast %806 : i32 to index
      %c256_375 = arith.constant 256 : index
      %1058 = vector.load %arg5[%1057, %c256_375] : memref<32x1152xf32, #tpu.memory_space<vmem>>, vector<8x128xf32>
      tpu.vector_store %arg5[%1057, %c256_375], %1024 {strides = array<i32>} : memref<32x1152xf32, #tpu.memory_space<vmem>>, vector<8x128xf32>,
      %1059 = arith.index_cast %806 : i32 to index
      %c384_376 = arith.constant 384 : index
      %1060 = vector.load %arg5[%1059, %c384_376] : memref<32x1152xf32, #tpu.memory_space<vmem>>, vector<8x128xf32>
      tpu.vector_store %arg5[%1059, %c384_376], %1029 {strides = array<i32>} : memref<32x1152xf32, #tpu.memory_space<vmem>>, vector<8x128xf32>,
      %1061 = arith.index_cast %806 : i32 to index
      %c512_377 = arith.constant 512 : index
      %1062 = vector.load %arg5[%1061, %c512_377] : memref<32x1152xf32, #tpu.memory_space<vmem>>, vector<8x128xf32>
      tpu.vector_store %arg5[%1061, %c512_377], %1034 {strides = array<i32>} : memref<32x1152xf32, #tpu.memory_space<vmem>>, vector<8x128xf32>,
      %1063 = arith.index_cast %806 : i32 to index
      %c640_378 = arith.constant 640 : index
      %1064 = vector.load %arg5[%1063, %c640_378] : memref<32x1152xf32, #tpu.memory_space<vmem>>, vector<8x128xf32>
      tpu.vector_store %arg5[%1063, %c640_378], %1039 {strides = array<i32>} : memref<32x1152xf32, #tpu.memory_space<vmem>>, vector<8x128xf32>,
      %1065 = arith.index_cast %806 : i32 to index
      %c768_379 = arith.constant 768 : index
      %1066 = vector.load %arg5[%1065, %c768_379] : memref<32x1152xf32, #tpu.memory_space<vmem>>, vector<8x128xf32>
      tpu.vector_store %arg5[%1065, %c768_379], %1044 {strides = array<i32>} : memref<32x1152xf32, #tpu.memory_space<vmem>>, vector<8x128xf32>,
      %1067 = arith.index_cast %806 : i32 to index
      %c896_380 = arith.constant 896 : index
      %1068 = vector.load %arg5[%1067, %c896_380] : memref<32x1152xf32, #tpu.memory_space<vmem>>, vector<8x128xf32>
      tpu.vector_store %arg5[%1067, %c896_380], %1049 {strides = array<i32>} : memref<32x1152xf32, #tpu.memory_space<vmem>>, vector<8x128xf32>,
      %1069 = arith.index_cast %806 : i32 to index
      %c1024_381 = arith.constant 1024 : index
      %1070 = vector.load %arg5[%1069, %c1024_381] : memref<32x1152xf32, #tpu.memory_space<vmem>>, vector<8x128xf32>
      tpu.vector_store %arg5[%1069, %c1024_381], %1054 {strides = array<i32>} : memref<32x1152xf32, #tpu.memory_space<vmem>>, vector<8x128xf32>,
      %c4_i32 = arith.constant 4 : i32
    } else {
    }
    %c0 = arith.constant 0 : index
    %c0_1 = arith.constant 0 : index
    %3 = vector.load %arg5[%c0, %c0_1] : memref<32x1152xf32, #tpu.memory_space<vmem>>, vector<32x1152xf32>
    %c0_2 = arith.constant 0 : index
    %c0_3 = arith.constant 0 : index
    %4 = vector.load %arg3[%c0_2, %c0_3] : memref<1152x256xf32, #tpu.memory_space<vmem>>, vector<1152x256xf32>
    %cst = arith.constant dense<0.000000e+00> : vector<32x256xf32>
    %5 = tpu.matmul %3, %4, %cst {dimension_numbers = #tpu.dot_dimension_numbers<[1], [0], [0], [1], [0, 0, 1, 1], [], []>} : vector<32x1152xf32>, vector<1152x256xf32>, vector<32x256xf32> -> vector<32x256xf32>
    %c0_4 = arith.constant 0 : index
    %c0_5 = arith.constant 0 : index
    %6 = vector.load %arg4[%c0_4, %c0_5] : memref<32x256xf32, #tpu.memory_space<vmem>>, vector<32x256xf32>
    tpu.vector_store %arg4[%c0_4, %c0_5], %5 {strides = array<i32>} : memref<32x256xf32, #tpu.memory_space<vmem>>, vector<32x256xf32>,
    return
  }
  func.func @transform_0(%arg0: i32, %arg1: i32) -> (i32, i32) {
    %c0_i32 = arith.constant 0 : i32
    %c0_i32_0 = arith.constant 0 : i32
    return %arg0, %c0_i32 : i32, i32
  }
  func.func @transform_1(%arg0: i32, %arg1: i32) -> (i32, i32) {
    %c0_i32 = arith.constant 0 : i32
    %c0_i32_0 = arith.constant 0 : i32
    return %c0_i32, %arg1 : i32, i32
  }
  func.func @transform_2(%arg0: i32, %arg1: i32) -> (i32, i32) {
    %c0_i32 = arith.constant 0 : i32
    return %arg0, %arg1 : i32, i32
  }
}

</mosaic_0001>

<llo_original>
// kernel: spline_linear_forward.1
$region0: #{spline_linear_forward.1}
  #allocation0 [shape = 'u32[]', space=smem, size = 0x4, offset = 0x4, fixed_abs, tag = 'smem constant byte address 0x4 - core index']
  #allocation1 [shape = 'u32[144,128]{1,0:T(1,128)}', space=vmem, size = 0x12000, scoped, tag = 'internal scratch']
  #allocation2 [shape = 'f32[32,1152]{1,0:T(8,128)}', space=vmem, size = 0x24000, scoped, tag = 'scratch operand']
  %s0 = inlined_call_operand.vmem [shape: f32[32,128], index: 0, kind: input, shape index: {}]
  %s1 = inlined_call_operand.vmem [shape: f32[1152,256], index: 1, kind: input, shape index: {}]
  %s2 = inlined_call_operand.hbm [shape: f32[32,256], index: 2, kind: output, shape index: {}]
  %s3 = sld [smem:[#allocation0]]
  $region22: #{spline_linear_forward.1} parent=0
    _
  %s5 = ssub.s32 1, %s3
  %s6 = scalar_select 0, %s5, %s3
  $region1: #{spline_linear_forward.1} parent=0
    #allocation3 [shape = 'u8[32768]{0}', space=vmem, size = 0x8000, scoped, tag = 'output window, operand 0, single buffered']
    #allocation4 [shape = 's32[1]{0}', space=sflag, size = 0x4, scoped, tag = 'scoped memory for spline_linear_forward.1']
    %7 = vsyncpa [#allocation4], 0
    // Predicated region
    $region2: #{spline_linear_forward.1} parent=1 // pred_check
      _
    $region3: #{spline_linear_forward.1} parent=1 // pred_check_branch
      %9 = sbr.rel (0) target = $region5
    $region4: #{spline_linear_forward.1} parent=1 // pred_region
      _
    $region5: #{spline_linear_forward.1} parent=1 // pred_fallthru
      _
    // Predicated region
    $region6: #{spline_linear_forward.1} parent=1 // pred_check
      _
    $region7: #{spline_linear_forward.1} parent=1 // pred_check_branch
      %11 = sbr.rel (0) target = $region9
    $region8: #{spline_linear_forward.1} parent=1 // pred_region
      _
    $region9: #{spline_linear_forward.1} parent=1 // pred_fallthru
      _
    %p12 = scmp.eq.s32.totalorder 0, 0
    // Predicated region
    $region10: #{spline_linear_forward.1} parent=1 // pred_check
      %p13 = pneg %p12
    $region11: #{spline_linear_forward.1} parent=1 // pred_check_branch
      %15 = sbr.rel (%p13) target = $region13
    $region12: #{spline_linear_forward.1} parent=1 // pred_region
      %v16 = vld [vmem:[%s0] sm:$0xff]
      %v17 = vxor.u32 %v16, 2147483648
      %v18 = vmul.f32 %v17, 1.442695
      %v19 = vpow.pop %v18
      %v20 = vadd.f32 %v19, 1.0
      %v21 = vrcp.pop %v20
      %v22 = vmul.f32 1.0, %v21
      %v23 = vmul.f32 %v16, %v22
      %s24 = smul.u32 0, 9
      %s25 = smul.addr %s24, 8
      %s26 = scalar_lea.vmem [#allocation2], %s25
      %27 = vst [vmem:[%s26] sm:$0xff] %v23
      %vm28 = vcmp.ge.f32.partialorder %v16, -2.2
      %vm29 = vcmp.ge.f32.partialorder %v16, -1.8
      %vm30 = vcmp.ge.f32.partialorder %v16, -1.4
      %vm31 = vcmp.ge.f32.partialorder %v16, -1.0
      %vm32 = vcmp.ge.f32.partialorder %v16, -0.6
      %vm33 = vcmp.ge.f32.partialorder %v16, -0.2
      %vm34 = vcmp.ge.f32.partialorder %v16, 0.2
      %vm35 = vcmp.ge.f32.partialorder %v16, 0.6
      %vm36 = vcmp.ge.f32.partialorder %v16, 1.0
      %vm37 = vcmp.ge.f32.partialorder %v16, 1.4
      %vm38 = vcmp.ge.f32.partialorder %v16, 1.8
      %vm39 = vcmp.ge.f32.partialorder %v16, 2.2
      %vm40 = vmxor %vm29, 1
      %vm41 = vmand %vm28, %vm40
      %v42 = vsel %vm41, 1.0, 0.0
      %vm43 = vmxor %vm30, 1
      %vm44 = vmand %vm29, %vm43
      %v45 = vsel %vm44, 1.0, 0.0
      %vm46 = vmxor %vm31, 1
      %vm47 = vmand %vm30, %vm46
      %v48 = vsel %vm47, 1.0, 0.0
      %vm49 = vmxor %vm32, 1
      %vm50 = vmand %vm31, %vm49
      %v51 = vsel %vm50, 1.0, 0.0
      %vm52 = vmxor %vm33, 1
      %vm53 = vmand %vm32, %vm52
      %v54 = vsel %vm53, 1.0, 0.0
      %vm55 = vmxor %vm34, 1
      %vm56 = vmand %vm33, %vm55
      %v57 = vsel %vm56, 1.0, 0.0
      %vm58 = vmxor %vm35, 1
      %vm59 = vmand %vm34, %vm58
      %v60 = vsel %vm59, 1.0, 0.0
      %vm61 = vmxor %vm36, 1
      %vm62 = vmand %vm35, %vm61
      %v63 = vsel %vm62, 1.0, 0.0
      %vm64 = vmxor %vm37, 1
      %vm65 = vmand %vm36, %vm64
      %v66 = vsel %vm65, 1.0, 0.0
      %vm67 = vmxor %vm38, 1
      %vm68 = vmand %vm37, %vm67
      %v69 = vsel %vm68, 1.0, 0.0
      %vm70 = vmxor %vm39, 1
      %vm71 = vmand %vm38, %vm70
      %v72 = vsel %vm71, 1.0, 0.0
      %v73 = vsub.f32 %v16, -2.2
      %v74 = vsub.f32 %v16, -1.8
      %v75 = vsub.f32 %v16, -1.4
      %v76 = vsub.f32 %v16, -1.0
      %v77 = vsub.f32 %v16, -0.6
      %v78 = vsub.f32 %v16, -0.2
      %v79 = vsub.f32 %v16, 0.2
      %v80 = vsub.f32 %v16, 0.6
      %v81 = vsub.f32 %v16, 1.0
      %v82 = vsub.f32 %v16, 1.4
      %v83 = vsub.f32 %v16, 1.8
      %v84 = vsub.f32 %v16, 2.2
      %v85 = vmul.f32 %v73, %v42
      %v86 = vmul.f32 %v75, %v45
      %v87 = vsub.f32 %v85, %v86
      %v88 = vmul.f32 %v87, 2.5
      %v89 = vmul.f32 %v74, %v45
      %v90 = vmul.f32 %v76, %v48
      %v91 = vsub.f32 %v89, %v90
      %v92 = vmul.f32 %v91, 2.5
      %v93 = vmul.f32 %v75, %v48
      %v94 = vmul.f32 %v77, %v51
      %v95 = vsub.f32 %v93, %v94
      %v96 = vmul.f32 %v95, 2.5
      %v97 = vmul.f32 %v76, %v51
      %v98 = vmul.f32 %v78, %v54
      %v99 = vsub.f32 %v97, %v98
      %v100 = vmul.f32 %v99, 2.5
      %v101 = vmul.f32 %v77, %v54
      %v102 = vmul.f32 %v79, %v57
      %v103 = vsub.f32 %v101, %v102
      %v104 = vmul.f32 %v103, 2.5
      %v105 = vmul.f32 %v78, %v57
      %v106 = vmul.f32 %v80, %v60
      %v107 = vsub.f32 %v105, %v106
      %v108 = vmul.f32 %v107, 2.5
      %v109 = vmul.f32 %v79, %v60
      %v110 = vmul.f32 %v81, %v63
      %v111 = vsub.f32 %v109, %v110
      %v112 = vmul.f32 %v111, 2.5
      %v113 = vmul.f32 %v80, %v63
      %v114 = vmul.f32 %v82, %v66
      %v115 = vsub.f32 %v113, %v114
      %v116 = vmul.f32 %v115, 2.5
      %v117 = vmul.f32 %v81, %v66
      %v118 = vmul.f32 %v83, %v69
      %v119 = vsub.f32 %v117, %v118
      %v120 = vmul.f32 %v119, 2.5
      %v121 = vmul.f32 %v82, %v69
      %v122 = vmul.f32 %v84, %v72
      %v123 = vsub.f32 %v121, %v122
      %v124 = vmul.f32 %v123, 2.5
      %v125 = vmul.f32 %v73, %v88
      %v126 = vmul.f32 %v76, %v92
      %v127 = vsub.f32 %v125, %v126
      %v128 = vmul.f32 %v127, 1.25
      %v129 = vmul.f32 %v74, %v92
      %v130 = vmul.f32 %v77, %v96
      %v131 = vsub.f32 %v129, %v130
      %v132 = vmul.f32 %v131, 1.25
      %v133 = vmul.f32 %v75, %v96
      %v134 = vmul.f32 %v78, %v100
      %v135 = vsub.f32 %v133, %v134
      %v136 = vmul.f32 %v135, 1.25
      %v137 = vmul.f32 %v76, %v100
      %v138 = vmul.f32 %v79, %v104
      %v139 = vsub.f32 %v137, %v138
      %v140 = vmul.f32 %v139, 1.25
      %v141 = vmul.f32 %v77, %v104
      %v142 = vmul.f32 %v80, %v108
      %v143 = vsub.f32 %v141, %v142
      %v144 = vmul.f32 %v143, 1.25
      %v145 = vmul.f32 %v78, %v108
      %v146 = vmul.f32 %v81, %v112
      %v147 = vsub.f32 %v145, %v146
      %v148 = vmul.f32 %v147, 1.25
      %v149 = vmul.f32 %v79, %v112
      %v150 = vmul.f32 %v82, %v116
      %v151 = vsub.f32 %v149, %v150
      %v152 = vmul.f32 %v151, 1.25
      %v153 = vmul.f32 %v80, %v116
      %v154 = vmul.f32 %v83, %v120
      %v155 = vsub.f32 %v153, %v154
      %v156 = vmul.f32 %v155, 1.25
      %v157 = vmul.f32 %v81, %v120
      %v158 = vmul.f32 %v84, %v124
      %v159 = vsub.f32 %v157, %v158
      %v160 = vmul.f32 %v159, 1.25
      %v161 = vmul.f32 %v73, %v128
      %v162 = vmul.f32 %v77, %v132
      %v163 = vsub.f32 %v161, %v162
      %v164 = vmul.f32 %v163, 0.8333333
      %v165 = vmul.f32 %v74, %v132
      %v166 = vmul.f32 %v78, %v136
      %v167 = vsub.f32 %v165, %v166
      %v168 = vmul.f32 %v167, 0.8333333
      %v169 = vmul.f32 %v75, %v136
      %v170 = vmul.f32 %v79, %v140
      %v171 = vsub.f32 %v169, %v170
      %v172 = vmul.f32 %v171, 0.8333333
      %v173 = vmul.f32 %v76, %v140
      %v174 = vmul.f32 %v80, %v144
      %v175 = vsub.f32 %v173, %v174
      %v176 = vmul.f32 %v175, 0.8333333
      %v177 = vmul.f32 %v77, %v144
      %v178 = vmul.f32 %v81, %v148
      %v179 = vsub.f32 %v177, %v178
      %v180 = vmul.f32 %v179, 0.8333333
      %v181 = vmul.f32 %v78, %v148
      %v182 = vmul.f32 %v82, %v152
      %v183 = vsub.f32 %v181, %v182
      %v184 = vmul.f32 %v183, 0.8333333
      %v185 = vmul.f32 %v79, %v152
      %v186 = vmul.f32 %v83, %v156
      %v187 = vsub.f32 %v185, %v186
      %v188 = vmul.f32 %v187, 0.8333333
      %v189 = vmul.f32 %v80, %v156
      %v190 = vmul.f32 %v84, %v160
      %v191 = vsub.f32 %v189, %v190
      %v192 = vmul.f32 %v191, 0.8333333
      %193 = vst [vmem:[%s26 + $0x8] sm:$0xff] %v164
      %194 = vst [vmem:[%s26 + $0x10] sm:$0xff] %v168
      %195 = vst [vmem:[%s26 + $0x18] sm:$0xff] %v172
      %196 = vst [vmem:[%s26 + $0x20] sm:$0xff] %v176
      %197 = vst [vmem:[%s26 + $0x28] sm:$0xff] %v180
      %198 = vst [vmem:[%s26 + $0x30] sm:$0xff] %v184
      %199 = vst [vmem:[%s26 + $0x38] sm:$0xff] %v188
      %200 = vst [vmem:[%s26 + $0x40] sm:$0xff] %v192
      %s201 = scalar_lea.vmem %s0, 8
      %v202 = vld [vmem:[%s201] sm:$0xff]
      %v203 = vxor.u32 %v202, 2147483648
      %v204 = vmul.f32 %v203, 1.442695
      %v205 = vpow.pop %v204
      %v206 = vadd.f32 %v205, 1.0
      %v207 = vrcp.pop %v206
      %v208 = vmul.f32 1.0, %v207
      %v209 = vmul.f32 %v202, %v208
      %s210 = smul.u32 1, 9
      %s211 = smul.addr %s210, 8
      %s212 = scalar_lea.vmem [#allocation2], %s211
      %213 = vst [vmem:[%s212] sm:$0xff] %v209
      %vm214 = vcmp.ge.f32.partialorder %v202, -2.2
      %vm215 = vcmp.ge.f32.partialorder %v202, -1.8
      %vm216 = vcmp.ge.f32.partialorder %v202, -1.4
      %vm217 = vcmp.ge.f32.partialorder %v202, -1.0
      %vm218 = vcmp.ge.f32.partialorder %v202, -0.6
      %vm219 = vcmp.ge.f32.partialorder %v202, -0.2
      %vm220 = vcmp.ge.f32.partialorder %v202, 0.2
      %vm221 = vcmp.ge.f32.partialorder %v202, 0.6
      %vm222 = vcmp.ge.f32.partialorder %v202, 1.0
      %vm223 = vcmp.ge.f32.partialorder %v202, 1.4
      %vm224 = vcmp.ge.f32.partialorder %v202, 1.8
      %vm225 = vcmp.ge.f32.partialorder %v202, 2.2
      %vm226 = vmxor %vm215, 1
      %vm227 = vmand %vm214, %vm226
      %v228 = vsel %vm227, 1.0, 0.0
      %vm229 = vmxor %vm216, 1
      %vm230 = vmand %vm215, %vm229
      %v231 = vsel %vm230, 1.0, 0.0
      %vm232 = vmxor %vm217, 1
      %vm233 = vmand %vm216, %vm232
      %v234 = vsel %vm233, 1.0, 0.0
      %vm235 = vmxor %vm218, 1
      %vm236 = vmand %vm217, %vm235
      %v237 = vsel %vm236, 1.0, 0.0
      %vm238 = vmxor %vm219, 1
      %vm239 = vmand %vm218, %vm238
      %v240 = vsel %vm239, 1.0, 0.0
      %vm241 = vmxor %vm220, 1
      %vm242 = vmand %vm219, %vm241
      %v243 = vsel %vm242, 1.0, 0.0
      %vm244 = vmxor %vm221, 1
      %vm245 = vmand %vm220, %vm244
      %v246 = vsel %vm245, 1.0, 0.0
      %vm247 = vmxor %vm222, 1
      %vm248 = vmand %vm221, %vm247
      %v249 = vsel %vm248, 1.0, 0.0
      %vm250 = vmxor %vm223, 1
      %vm251 = vmand %vm222, %vm250
      %v252 = vsel %vm251, 1.0, 0.0
      %vm253 = vmxor %vm224, 1
      %vm254 = vmand %vm223, %vm253
      %v255 = vsel %vm254, 1.0, 0.0
      %vm256 = vmxor %vm225, 1
      %vm257 = vmand %vm224, %vm256
      %v258 = vsel %vm257, 1.0, 0.0
      %v259 = vsub.f32 %v202, -2.2
      %v260 = vsub.f32 %v202, -1.8
      %v261 = vsub.f32 %v202, -1.4
      %v262 = vsub.f32 %v202, -1.0
      %v263 = vsub.f32 %v202, -0.6
      %v264 = vsub.f32 %v202, -0.2
      %v265 = vsub.f32 %v202, 0.2
      %v266 = vsub.f32 %v202, 0.6
      %v267 = vsub.f32 %v202, 1.0
      %v268 = vsub.f32 %v202, 1.4
      %v269 = vsub.f32 %v202, 1.8
      %v270 = vsub.f32 %v202, 2.2
      %v271 = vmul.f32 %v259, %v228
      %v272 = vmul.f32 %v261, %v231
      %v273 = vsub.f32 %v271, %v272
      %v274 = vmul.f32 %v273, 2.5
      %v275 = vmul.f32 %v260, %v231
      %v276 = vmul.f32 %v262, %v234
      %v277 = vsub.f32 %v275, %v276
      %v278 = vmul.f32 %v277, 2.5
      %v279 = vmul.f32 %v261, %v234
      %v280 = vmul.f32 %v263, %v237
      %v281 = vsub.f32 %v279, %v280
      %v282 = vmul.f32 %v281, 2.5
      %v283 = vmul.f32 %v262, %v237
      %v284 = vmul.f32 %v264, %v240
      %v285 = vsub.f32 %v283, %v284
      %v286 = vmul.f32 %v285, 2.5
      %v287 = vmul.f32 %v263, %v240
      %v288 = vmul.f32 %v265, %v243
      %v289 = vsub.f32 %v287, %v288
      %v290 = vmul.f32 %v289, 2.5
      %v291 = vmul.f32 %v264, %v243
      %v292 = vmul.f32 %v266, %v246
      %v293 = vsub.f32 %v291, %v292
      %v294 = vmul.f32 %v293, 2.5
      %v295 = vmul.f32 %v265, %v246
      %v296 = vmul.f32 %v267, %v249
      %v297 = vsub.f32 %v295, %v296
      %v298 = vmul.f32 %v297, 2.5
      %v299 = vmul.f32 %v266, %v249
      %v300 = vmul.f32 %v268, %v252
      %v301 = vsub.f32 %v299, %v300
      %v302 = vmul.f32 %v301, 2.5
      %v303 = vmul.f32 %v267, %v252
      %v304 = vmul.f32 %v269, %v255
      %v305 = vsub.f32 %v303, %v304
      %v306 = vmul.f32 %v305, 2.5
      %v307 = vmul.f32 %v268, %v255
      %v308 = vmul.f32 %v270, %v258
      %v309 = vsub.f32 %v307, %v308
      %v310 = vmul.f32 %v309, 2.5
      %v311 = vmul.f32 %v259, %v274
      %v312 = vmul.f32 %v262, %v278
      %v313 = vsub.f32 %v311, %v312
      %v314 = vmul.f32 %v313, 1.25
      %v315 = vmul.f32 %v260, %v278
      %v316 = vmul.f32 %v263, %v282
      %v317 = vsub.f32 %v315, %v316
      %v318 = vmul.f32 %v317, 1.25
      %v319 = vmul.f32 %v261, %v282
      %v320 = vmul.f32 %v264, %v286
      %v321 = vsub.f32 %v319, %v320
      %v322 = vmul.f32 %v321, 1.25
      %v323 = vmul.f32 %v262, %v286
      %v324 = vmul.f32 %v265, %v290
      %v325 = vsub.f32 %v323, %v324
      %v326 = vmul.f32 %v325, 1.25
      %v327 = vmul.f32 %v263, %v290
      %v328 = vmul.f32 %v266, %v294
      %v329 = vsub.f32 %v327, %v328
      %v330 = vmul.f32 %v329, 1.25
      %v331 = vmul.f32 %v264, %v294
      %v332 = vmul.f32 %v267, %v298
      %v333 = vsub.f32 %v331, %v332
      %v334 = vmul.f32 %v333, 1.25
      %v335 = vmul.f32 %v265, %v298
      %v336 = vmul.f32 %v268, %v302
      %v337 = vsub.f32 %v335, %v336
      %v338 = vmul.f32 %v337, 1.25
      %v339 = vmul.f32 %v266, %v302
      %v340 = vmul.f32 %v269, %v306
      %v341 = vsub.f32 %v339, %v340
      %v342 = vmul.f32 %v341, 1.25
      %v343 = vmul.f32 %v267, %v306
      %v344 = vmul.f32 %v270, %v310
      %v345 = vsub.f32 %v343, %v344
      %v346 = vmul.f32 %v345, 1.25
      %v347 = vmul.f32 %v259, %v314
      %v348 = vmul.f32 %v263, %v318
      %v349 = vsub.f32 %v347, %v348
      %v350 = vmul.f32 %v349, 0.8333333
      %v351 = vmul.f32 %v260, %v318
      %v352 = vmul.f32 %v264, %v322
      %v353 = vsub.f32 %v351, %v352
      %v354 = vmul.f32 %v353, 0.8333333
      %v355 = vmul.f32 %v261, %v322
      %v356 = vmul.f32 %v265, %v326
      %v357 = vsub.f32 %v355, %v356
      %v358 = vmul.f32 %v357, 0.8333333
      %v359 = vmul.f32 %v262, %v326
      %v360 = vmul.f32 %v266, %v330
      %v361 = vsub.f32 %v359, %v360
      %v362 = vmul.f32 %v361, 0.8333333
      %v363 = vmul.f32 %v263, %v330
      %v364 = vmul.f32 %v267, %v334
      %v365 = vsub.f32 %v363, %v364
      %v366 = vmul.f32 %v365, 0.8333333
      %v367 = vmul.f32 %v264, %v334
      %v368 = vmul.f32 %v268, %v338
      %v369 = vsub.f32 %v367, %v368
      %v370 = vmul.f32 %v369, 0.8333333
      %v371 = vmul.f32 %v265, %v338
      %v372 = vmul.f32 %v269, %v342
      %v373 = vsub.f32 %v371, %v372
      %v374 = vmul.f32 %v373, 0.8333333
      %v375 = vmul.f32 %v266, %v342
      %v376 = vmul.f32 %v270, %v346
      %v377 = vsub.f32 %v375, %v376
      %v378 = vmul.f32 %v377, 0.8333333
      %379 = vst [vmem:[%s212 + $0x8] sm:$0xff] %v350
      %380 = vst [vmem:[%s212 + $0x10] sm:$0xff] %v354
      %381 = vst [vmem:[%s212 + $0x18] sm:$0xff] %v358
      %382 = vst [vmem:[%s212 + $0x20] sm:$0xff] %v362
      %383 = vst [vmem:[%s212 + $0x28] sm:$0xff] %v366
      %384 = vst [vmem:[%s212 + $0x30] sm:$0xff] %v370
      %385 = vst [vmem:[%s212 + $0x38] sm:$0xff] %v374
      %386 = vst [vmem:[%s212 + $0x40] sm:$0xff] %v378
      %s387 = scalar_lea.vmem %s0, 16
      %v388 = vld [vmem:[%s387] sm:$0xff]
      %v389 = vxor.u32 %v388, 2147483648
      %v390 = vmul.f32 %v389, 1.442695
      %v391 = vpow.pop %v390
      %v392 = vadd.f32 %v391, 1.0
      %v393 = vrcp.pop %v392
      %v394 = vmul.f32 1.0, %v393
      %v395 = vmul.f32 %v388, %v394
      %s396 = smul.u32 2, 9
      %s397 = smul.addr %s396, 8
      %s398 = scalar_lea.vmem [#allocation2], %s397
      %399 = vst [vmem:[%s398] sm:$0xff] %v395
      %vm400 = vcmp.ge.f32.partialorder %v388, -2.2
      %vm401 = vcmp.ge.f32.partialorder %v388, -1.8
      %vm402 = vcmp.ge.f32.partialorder %v388, -1.4
      %vm403 = vcmp.ge.f32.partialorder %v388, -1.0
      %vm404 = vcmp.ge.f32.partialorder %v388, -0.6
      %vm405 = vcmp.ge.f32.partialorder %v388, -0.2
      %vm406 = vcmp.ge.f32.partialorder %v388, 0.2
      %vm407 = vcmp.ge.f32.partialorder %v388, 0.6
      %vm408 = vcmp.ge.f32.partialorder %v388, 1.0
      %vm409 = vcmp.ge.f32.partialorder %v388, 1.4
      %vm410 = vcmp.ge.f32.partialorder %v388, 1.8
      %vm411 = vcmp.ge.f32.partialorder %v388, 2.2
      %vm412 = vmxor %vm401, 1
      %vm413 = vmand %vm400, %vm412
      %v414 = vsel %vm413, 1.0, 0.0
      %vm415 = vmxor %vm402, 1
      %vm416 = vmand %vm401, %vm415
      %v417 = vsel %vm416, 1.0, 0.0
      %vm418 = vmxor %vm403, 1
      %vm419 = vmand %vm402, %vm418
      %v420 = vsel %vm419, 1.0, 0.0
      %vm421 = vmxor %vm404, 1
      %vm422 = vmand %vm403, %vm421
      %v423 = vsel %vm422, 1.0, 0.0
      %vm424 = vmxor %vm405, 1
      %vm425 = vmand %vm404, %vm424
      %v426 = vsel %vm425, 1.0, 0.0
      %vm427 = vmxor %vm406, 1
      %vm428 = vmand %vm405, %vm427
      %v429 = vsel %vm428, 1.0, 0.0
      %vm430 = vmxor %vm407, 1
      %vm431 = vmand %vm406, %vm430
      %v432 = vsel %vm431, 1.0, 0.0
      %vm433 = vmxor %vm408, 1
      %vm434 = vmand %vm407, %vm433
      %v435 = vsel %vm434, 1.0, 0.0
      %vm436 = vmxor %vm409, 1
      %vm437 = vmand %vm408, %vm436
      %v438 = vsel %vm437, 1.0, 0.0
      %vm439 = vmxor %vm410, 1
      %vm440 = vmand %vm409, %vm439
      %v441 = vsel %vm440, 1.0, 0.0
      %vm442 = vmxor %vm411, 1
      %vm443 = vmand %vm410, %vm442
      %v444 = vsel %vm443, 1.0, 0.0
      %v445 = vsub.f32 %v388, -2.2
      %v446 = vsub.f32 %v388, -1.8
      %v447 = vsub.f32 %v388, -1.4
      %v448 = vsub.f32 %v388, -1.0
      %v449 = vsub.f32 %v388, -0.6
      %v450 = vsub.f32 %v388, -0.2
      %v451 = vsub.f32 %v388, 0.2
      %v452 = vsub.f32 %v388, 0.6
      %v453 = vsub.f32 %v388, 1.0
      %v454 = vsub.f32 %v388, 1.4
      %v455 = vsub.f32 %v388, 1.8
      %v456 = vsub.f32 %v388, 2.2
      %v457 = vmul.f32 %v445, %v414
      %v458 = vmul.f32 %v447, %v417
      %v459 = vsub.f32 %v457, %v458
      %v460 = vmul.f32 %v459, 2.5
      %v461 = vmul.f32 %v446, %v417
      %v462 = vmul.f32 %v448, %v420
      %v463 = vsub.f32 %v461, %v462
      %v464 = vmul.f32 %v463, 2.5
      %v465 = vmul.f32 %v447, %v420
      %v466 = vmul.f32 %v449, %v423
      %v467 = vsub.f32 %v465, %v466
      %v468 = vmul.f32 %v467, 2.5
      %v469 = vmul.f32 %v448, %v423
      %v470 = vmul.f32 %v450, %v426
      %v471 = vsub.f32 %v469, %v470
      %v472 = vmul.f32 %v471, 2.5
      %v473 = vmul.f32 %v449, %v426
      %v474 = vmul.f32 %v451, %v429
      %v475 = vsub.f32 %v473, %v474
      %v476 = vmul.f32 %v475, 2.5
      %v477 = vmul.f32 %v450, %v429
      %v478 = vmul.f32 %v452, %v432
      %v479 = vsub.f32 %v477, %v478
      %v480 = vmul.f32 %v479, 2.5
      %v481 = vmul.f32 %v451, %v432
      %v482 = vmul.f32 %v453, %v435
      %v483 = vsub.f32 %v481, %v482
      %v484 = vmul.f32 %v483, 2.5
      %v485 = vmul.f32 %v452, %v435
      %v486 = vmul.f32 %v454, %v438
      %v487 = vsub.f32 %v485, %v486
      %v488 = vmul.f32 %v487, 2.5
      %v489 = vmul.f32 %v453, %v438
      %v490 = vmul.f32 %v455, %v441
      %v491 = vsub.f32 %v489, %v490
      %v492 = vmul.f32 %v491, 2.5
      %v493 = vmul.f32 %v454, %v441
      %v494 = vmul.f32 %v456, %v444
      %v495 = vsub.f32 %v493, %v494
      %v496 = vmul.f32 %v495, 2.5
      %v497 = vmul.f32 %v445, %v460
      %v498 = vmul.f32 %v448, %v464
      %v499 = vsub.f32 %v497, %v498
      %v500 = vmul.f32 %v499, 1.25
      %v501 = vmul.f32 %v446, %v464
      %v502 = vmul.f32 %v449, %v468
      %v503 = vsub.f32 %v501, %v502
      %v504 = vmul.f32 %v503, 1.25
      %v505 = vmul.f32 %v447, %v468
      %v506 = vmul.f32 %v450, %v472
      %v507 = vsub.f32 %v505, %v506
      %v508 = vmul.f32 %v507, 1.25
      %v509 = vmul.f32 %v448, %v472
      %v510 = vmul.f32 %v451, %v476
      %v511 = vsub.f32 %v509, %v510
      %v512 = vmul.f32 %v511, 1.25
      %v513 = vmul.f32 %v449, %v476
      %v514 = vmul.f32 %v452, %v480
      %v515 = vsub.f32 %v513, %v514
      %v516 = vmul.f32 %v515, 1.25
      %v517 = vmul.f32 %v450, %v480
      %v518 = vmul.f32 %v453, %v484
      %v519 = vsub.f32 %v517, %v518
      %v520 = vmul.f32 %v519, 1.25
      %v521 = vmul.f32 %v451, %v484
      %v522 = vmul.f32 %v454, %v488
      %v523 = vsub.f32 %v521, %v522
      %v524 = vmul.f32 %v523, 1.25
      %v525 = vmul.f32 %v452, %v488
      %v526 = vmul.f32 %v455, %v492
      %v527 = vsub.f32 %v525, %v526
      %v528 = vmul.f32 %v527, 1.25
      %v529 = vmul.f32 %v453, %v492
      %v530 = vmul.f32 %v456, %v496
      %v531 = vsub.f32 %v529, %v530
      %v532 = vmul.f32 %v531, 1.25
      %v533 = vmul.f32 %v445, %v500
      %v534 = vmul.f32 %v449, %v504
      %v535 = vsub.f32 %v533, %v534
      %v536 = vmul.f32 %v535, 0.8333333
      %v537 = vmul.f32 %v446, %v504
      %v538 = vmul.f32 %v450, %v508
      %v539 = vsub.f32 %v537, %v538
      %v540 = vmul.f32 %v539, 0.8333333
      %v541 = vmul.f32 %v447, %v508
      %v542 = vmul.f32 %v451, %v512
      %v543 = vsub.f32 %v541, %v542
      %v544 = vmul.f32 %v543, 0.8333333
      %v545 = vmul.f32 %v448, %v512
      %v546 = vmul.f32 %v452, %v516
      %v547 = vsub.f32 %v545, %v546
      %v548 = vmul.f32 %v547, 0.8333333
      %v549 = vmul.f32 %v449, %v516
      %v550 = vmul.f32 %v453, %v520
      %v551 = vsub.f32 %v549, %v550
      %v552 = vmul.f32 %v551, 0.8333333
      %v553 = vmul.f32 %v450, %v520
      %v554 = vmul.f32 %v454, %v524
      %v555 = vsub.f32 %v553, %v554
      %v556 = vmul.f32 %v555, 0.8333333
      %v557 = vmul.f32 %v451, %v524
      %v558 = vmul.f32 %v455, %v528
      %v559 = vsub.f32 %v557, %v558
      %v560 = vmul.f32 %v559, 0.8333333
      %v561 = vmul.f32 %v452, %v528
      %v562 = vmul.f32 %v456, %v532
      %v563 = vsub.f32 %v561, %v562
      %v564 = vmul.f32 %v563, 0.8333333
      %565 = vst [vmem:[%s398 + $0x8] sm:$0xff] %v536
      %566 = vst [vmem:[%s398 + $0x10] sm:$0xff] %v540
      %567 = vst [vmem:[%s398 + $0x18] sm:$0xff] %v544
      %568 = vst [vmem:[%s398 + $0x20] sm:$0xff] %v548
      %569 = vst [vmem:[%s398 + $0x28] sm:$0xff] %v552
      %570 = vst [vmem:[%s398 + $0x30] sm:$0xff] %v556
      %571 = vst [vmem:[%s398 + $0x38] sm:$0xff] %v560
      %572 = vst [vmem:[%s398 + $0x40] sm:$0xff] %v564
      %s573 = scalar_lea.vmem %s0, 24
      %v574 = vld [vmem:[%s573] sm:$0xff]
      %v575 = vxor.u32 %v574, 2147483648
      %v576 = vmul.f32 %v575, 1.442695
      %v577 = vpow.pop %v576
      %v578 = vadd.f32 %v577, 1.0
      %v579 = vrcp.pop %v578
      %v580 = vmul.f32 1.0, %v579
      %v581 = vmul.f32 %v574, %v580
      %s582 = smul.u32 3, 9
      %s583 = smul.addr %s582, 8
      %s584 = scalar_lea.vmem [#allocation2], %s583
      %585 = vst [vmem:[%s584] sm:$0xff] %v581
      %vm586 = vcmp.ge.f32.partialorder %v574, -2.2
      %vm587 = vcmp.ge.f32.partialorder %v574, -1.8
      %vm588 = vcmp.ge.f32.partialorder %v574, -1.4
      %vm589 = vcmp.ge.f32.partialorder %v574, -1.0
      %vm590 = vcmp.ge.f32.partialorder %v574, -0.6
      %vm591 = vcmp.ge.f32.partialorder %v574, -0.2
      %vm592 = vcmp.ge.f32.partialorder %v574, 0.2
      %vm593 = vcmp.ge.f32.partialorder %v574, 0.6
      %vm594 = vcmp.ge.f32.partialorder %v574, 1.0
      %vm595 = vcmp.ge.f32.partialorder %v574, 1.4
      %vm596 = vcmp.ge.f32.partialorder %v574, 1.8
      %vm597 = vcmp.ge.f32.partialorder %v574, 2.2
      %vm598 = vmxor %vm587, 1
      %vm599 = vmand %vm586, %vm598
      %v600 = vsel %vm599, 1.0, 0.0
      %vm601 = vmxor %vm588, 1
      %vm602 = vmand %vm587, %vm601
      %v603 = vsel %vm602, 1.0, 0.0
      %vm604 = vmxor %vm589, 1
      %vm605 = vmand %vm588, %vm604
      %v606 = vsel %vm605, 1.0, 0.0
      %vm607 = vmxor %vm590, 1
      %vm608 = vmand %vm589, %vm607
      %v609 = vsel %vm608, 1.0, 0.0
      %vm610 = vmxor %vm591, 1
      %vm611 = vmand %vm590, %vm610
      %v612 = vsel %vm611, 1.0, 0.0
      %vm613 = vmxor %vm592, 1
      %vm614 = vmand %vm591, %vm613
      %v615 = vsel %vm614, 1.0, 0.0
      %vm616 = vmxor %vm593, 1
      %vm617 = vmand %vm592, %vm616
      %v618 = vsel %vm617, 1.0, 0.0
      %vm619 = vmxor %vm594, 1
      %vm620 = vmand %vm593, %vm619
      %v621 = vsel %vm620, 1.0, 0.0
      %vm622 = vmxor %vm595, 1
      %vm623 = vmand %vm594, %vm622
      %v624 = vsel %vm623, 1.0, 0.0
      %vm625 = vmxor %vm596, 1
      %vm626 = vmand %vm595, %vm625
      %v627 = vsel %vm626, 1.0, 0.0
      %vm628 = vmxor %vm597, 1
      %vm629 = vmand %vm596, %vm628
      %v630 = vsel %vm629, 1.0, 0.0
      %v631 = vsub.f32 %v574, -2.2
      %v632 = vsub.f32 %v574, -1.8
      %v633 = vsub.f32 %v574, -1.4
      %v634 = vsub.f32 %v574, -1.0
      %v635 = vsub.f32 %v574, -0.6
      %v636 = vsub.f32 %v574, -0.2
      %v637 = vsub.f32 %v574, 0.2
      %v638 = vsub.f32 %v574, 0.6
      %v639 = vsub.f32 %v574, 1.0
      %v640 = vsub.f32 %v574, 1.4
      %v641 = vsub.f32 %v574, 1.8
      %v642 = vsub.f32 %v574, 2.2
      %v643 = vmul.f32 %v631, %v600
      %v644 = vmul.f32 %v633, %v603
      %v645 = vsub.f32 %v643, %v644
      %v646 = vmul.f32 %v645, 2.5
      %v647 = vmul.f32 %v632, %v603
      %v648 = vmul.f32 %v634, %v606
      %v649 = vsub.f32 %v647, %v648
      %v650 = vmul.f32 %v649, 2.5
      %v651 = vmul.f32 %v633, %v606
      %v652 = vmul.f32 %v635, %v609
      %v653 = vsub.f32 %v651, %v652
      %v654 = vmul.f32 %v653, 2.5
      %v655 = vmul.f32 %v634, %v609
      %v656 = vmul.f32 %v636, %v612
      %v657 = vsub.f32 %v655, %v656
      %v658 = vmul.f32 %v657, 2.5
      %v659 = vmul.f32 %v635, %v612
      %v660 = vmul.f32 %v637, %v615
      %v661 = vsub.f32 %v659, %v660
      %v662 = vmul.f32 %v661, 2.5
      %v663 = vmul.f32 %v636, %v615
      %v664 = vmul.f32 %v638, %v618
      %v665 = vsub.f32 %v663, %v664
      %v666 = vmul.f32 %v665, 2.5
      %v667 = vmul.f32 %v637, %v618
      %v668 = vmul.f32 %v639, %v621
      %v669 = vsub.f32 %v667, %v668
      %v670 = vmul.f32 %v669, 2.5
      %v671 = vmul.f32 %v638, %v621
      %v672 = vmul.f32 %v640, %v624
      %v673 = vsub.f32 %v671, %v672
      %v674 = vmul.f32 %v673, 2.5
      %v675 = vmul.f32 %v639, %v624
      %v676 = vmul.f32 %v641, %v627
      %v677 = vsub.f32 %v675, %v676
      %v678 = vmul.f32 %v677, 2.5
      %v679 = vmul.f32 %v640, %v627
      %v680 = vmul.f32 %v642, %v630
      %v681 = vsub.f32 %v679, %v680
      %v682 = vmul.f32 %v681, 2.5
      %v683 = vmul.f32 %v631, %v646
      %v684 = vmul.f32 %v634, %v650
      %v685 = vsub.f32 %v683, %v684
      %v686 = vmul.f32 %v685, 1.25
      %v687 = vmul.f32 %v632, %v650
      %v688 = vmul.f32 %v635, %v654
      %v689 = vsub.f32 %v687, %v688
      %v690 = vmul.f32 %v689, 1.25
      %v691 = vmul.f32 %v633, %v654
      %v692 = vmul.f32 %v636, %v658
      %v693 = vsub.f32 %v691, %v692
      %v694 = vmul.f32 %v693, 1.25
      %v695 = vmul.f32 %v634, %v658
      %v696 = vmul.f32 %v637, %v662
      %v697 = vsub.f32 %v695, %v696
      %v698 = vmul.f32 %v697, 1.25
      %v699 = vmul.f32 %v635, %v662
      %v700 = vmul.f32 %v638, %v666
      %v701 = vsub.f32 %v699, %v700
      %v702 = vmul.f32 %v701, 1.25
      %v703 = vmul.f32 %v636, %v666
      %v704 = vmul.f32 %v639, %v670
      %v705 = vsub.f32 %v703, %v704
      %v706 = vmul.f32 %v705, 1.25
      %v707 = vmul.f32 %v637, %v670
      %v708 = vmul.f32 %v640, %v674
      %v709 = vsub.f32 %v707, %v708
      %v710 = vmul.f32 %v709, 1.25
      %v711 = vmul.f32 %v638, %v674
      %v712 = vmul.f32 %v641, %v678
      %v713 = vsub.f32 %v711, %v712
      %v714 = vmul.f32 %v713, 1.25
      %v715 = vmul.f32 %v639, %v678
      %v716 = vmul.f32 %v642, %v682
      %v717 = vsub.f32 %v715, %v716
      %v718 = vmul.f32 %v717, 1.25
      %v719 = vmul.f32 %v631, %v686
      %v720 = vmul.f32 %v635, %v690
      %v721 = vsub.f32 %v719, %v720
      %v722 = vmul.f32 %v721, 0.8333333
      %v723 = vmul.f32 %v632, %v690
      %v724 = vmul.f32 %v636, %v694
      %v725 = vsub.f32 %v723, %v724
      %v726 = vmul.f32 %v725, 0.8333333
      %v727 = vmul.f32 %v633, %v694
      %v728 = vmul.f32 %v637, %v698
      %v729 = vsub.f32 %v727, %v728
      %v730 = vmul.f32 %v729, 0.8333333
      %v731 = vmul.f32 %v634, %v698
      %v732 = vmul.f32 %v638, %v702
      %v733 = vsub.f32 %v731, %v732
      %v734 = vmul.f32 %v733, 0.8333333
      %v735 = vmul.f32 %v635, %v702
      %v736 = vmul.f32 %v639, %v706
      %v737 = vsub.f32 %v735, %v736
      %v738 = vmul.f32 %v737, 0.8333333
      %v739 = vmul.f32 %v636, %v706
      %v740 = vmul.f32 %v640, %v710
      %v741 = vsub.f32 %v739, %v740
      %v742 = vmul.f32 %v741, 0.8333333
      %v743 = vmul.f32 %v637, %v710
      %v744 = vmul.f32 %v641, %v714
      %v745 = vsub.f32 %v743, %v744
      %v746 = vmul.f32 %v745, 0.8333333
      %v747 = vmul.f32 %v638, %v714
      %v748 = vmul.f32 %v642, %v718
      %v749 = vsub.f32 %v747, %v748
      %v750 = vmul.f32 %v749, 0.8333333
      %751 = vst [vmem:[%s584 + $0x8] sm:$0xff] %v722
      %752 = vst [vmem:[%s584 + $0x10] sm:$0xff] %v726
      %753 = vst [vmem:[%s584 + $0x18] sm:$0xff] %v730
      %754 = vst [vmem:[%s584 + $0x20] sm:$0xff] %v734
      %755 = vst [vmem:[%s584 + $0x28] sm:$0xff] %v738
      %756 = vst [vmem:[%s584 + $0x30] sm:$0xff] %v742
      %757 = vst [vmem:[%s584 + $0x38] sm:$0xff] %v746
      %758 = vst [vmem:[%s584 + $0x40] sm:$0xff] %v750
    $region13: #{spline_linear_forward.1} parent=1 // pred_fallthru
      _
    %v759 = vld [vmem:[#allocation2] sm:$0xff]
    %v760 = vld [vmem:[#allocation2 + $0x8] sm:$0xff]
    %v761 = vld [vmem:[#allocation2 + $0x10] sm:$0xff]
    %v762 = vld [vmem:[#allocation2 + $0x18] sm:$0xff]
    %v763 = vld [vmem:[#allocation2 + $0x20] sm:$0xff]
    %v764 = vld [vmem:[#allocation2 + $0x28] sm:$0xff]
    %v765 = vld [vmem:[#allocation2 + $0x30] sm:$0xff]
    %v766 = vld [vmem:[#allocation2 + $0x38] sm:$0xff]
    %v767 = vld [vmem:[#allocation2 + $0x40] sm:$0xff]
    %v768 = vld [vmem:[#allocation2 + $0x48] sm:$0xff]
    %v769 = vld [vmem:[#allocation2 + $0x50] sm:$0xff]
    %v770 = vld [vmem:[#allocation2 + $0x58] sm:$0xff]
    %v771 = vld [vmem:[#allocation2 + $0x60] sm:$0xff]
    %v772 = vld [vmem:[#allocation2 + $0x68] sm:$0xff]
    %v773 = vld [vmem:[#allocation2 + $0x70] sm:$0xff]
    %v774 = vld [vmem:[#allocation2 + $0x78] sm:$0xff]
    %v775 = vld [vmem:[#allocation2 + $0x80] sm:$0xff]
    %v776 = vld [vmem:[#allocation2 + $0x88] sm:$0xff]
    %v777 = vld [vmem:[#allocation2 + $0x90] sm:$0xff]
    %v778 = vld [vmem:[#allocation2 + $0x98] sm:$0xff]
    %v779 = vld [vmem:[#allocation2 + $0xa0] sm:$0xff]
    %v780 = vld [vmem:[#allocation2 + $0xa8] sm:$0xff]
    %v781 = vld [vmem:[#allocation2 + $0xb0] sm:$0xff]
    %v782 = vld [vmem:[#allocation2 + $0xb8] sm:$0xff]
    %v783 = vld [vmem:[#allocation2 + $0xc0] sm:$0xff]
    %v784 = vld [vmem:[#allocation2 + $0xc8] sm:$0xff]
    %v785 = vld [vmem:[#allocation2 + $0xd0] sm:$0xff]
    %v786 = vld [vmem:[#allocation2 + $0xd8] sm:$0xff]
    %v787 = vld [vmem:[#allocation2 + $0xe0] sm:$0xff]
    %v788 = vld [vmem:[#allocation2 + $0xe8] sm:$0xff]
    %v789 = vld [vmem:[#allocation2 + $0xf0] sm:$0xff]
    %v790 = vld [vmem:[#allocation2 + $0xf8] sm:$0xff]
    %v791 = vld [vmem:[#allocation2 + $0x100] sm:$0xff]
    %v792 = vld [vmem:[#allocation2 + $0x108] sm:$0xff]
    %v793 = vld [vmem:[#allocation2 + $0x110] sm:$0xff]
    %v794 = vld [vmem:[#allocation2 + $0x118] sm:$0xff]
    %v795 = vld [vmem:[%s1] sm:$0xff]
    %v796 = vld [vmem:[%s1 + $0x8] sm:$0xff]
    %v797 = vld [vmem:[%s1 + $0x10] sm:$0xff]
    %v798 = vld [vmem:[%s1 + $0x18] sm:$0xff]
    %v799 = vld [vmem:[%s1 + $0x20] sm:$0xff]
    %v800 = vld [vmem:[%s1 + $0x28] sm:$0xff]
    %v801 = vld [vmem:[%s1 + $0x30] sm:$0xff]
    %v802 = vld [vmem:[%s1 + $0x38] sm:$0xff]
    %v803 = vld [vmem:[%s1 + $0x40] sm:$0xff]
    %v804 = vld [vmem:[%s1 + $0x48] sm:$0xff]
    %v805 = vld [vmem:[%s1 + $0x50] sm:$0xff]
    %v806 = vld [vmem:[%s1 + $0x58] sm:$0xff]
    %v807 = vld [vmem:[%s1 + $0x60] sm:$0xff]
    %v808 = vld [vmem:[%s1 + $0x68] sm:$0xff]
    %v809 = vld [vmem:[%s1 + $0x70] sm:$0xff]
    %v810 = vld [vmem:[%s1 + $0x78] sm:$0xff]
    %v811 = vld [vmem:[%s1 + $0x80] sm:$0xff]
    %v812 = vld [vmem:[%s1 + $0x88] sm:$0xff]
    %v813 = vld [vmem:[%s1 + $0x90] sm:$0xff]
    %v814 = vld [vmem:[%s1 + $0x98] sm:$0xff]
    %v815 = vld [vmem:[%s1 + $0xa0] sm:$0xff]
    %v816 = vld [vmem:[%s1 + $0xa8] sm:$0xff]
    %v817 = vld [vmem:[%s1 + $0xb0] sm:$0xff]
    %v818 = vld [vmem:[%s1 + $0xb8] sm:$0xff]
    %v819 = vld [vmem:[%s1 + $0xc0] sm:$0xff]
    %v820 = vld [vmem:[%s1 + $0xc8] sm:$0xff]
    %v821 = vld [vmem:[%s1 + $0xd0] sm:$0xff]
    %v822 = vld [vmem:[%s1 + $0xd8] sm:$0xff]
    %v823 = vld [vmem:[%s1 + $0xe0] sm:$0xff]
    %v824 = vld [vmem:[%s1 + $0xe8] sm:$0xff]
    %v825 = vld [vmem:[%s1 + $0xf0] sm:$0xff]
    %v826 = vld [vmem:[%s1 + $0xf8] sm:$0xff]
    %v827 = vld [vmem:[%s1 + $0x100] sm:$0xff]
    %v828 = vld [vmem:[%s1 + $0x108] sm:$0xff]
    %v829 = vld [vmem:[%s1 + $0x110] sm:$0xff]
    %v830 = vld [vmem:[%s1 + $0x118] sm:$0xff]
    %v831 = vld [vmem:[%s1 + $0x120] sm:$0xff]
    %v832 = vld [vmem:[%s1 + $0x128] sm:$0xff]
    %v833 = vld [vmem:[%s1 + $0x130] sm:$0xff]
    %v834 = vld [vmem:[%s1 + $0x138] sm:$0xff]
    %v835 = vld [vmem:[%s1 + $0x140] sm:$0xff]
    %v836 = vld [vmem:[%s1 + $0x148] sm:$0xff]
    %v837 = vld [vmem:[%s1 + $0x150] sm:$0xff]
    %v838 = vld [vmem:[%s1 + $0x158] sm:$0xff]
    %v839 = vld [vmem:[%s1 + $0x160] sm:$0xff]
    %v840 = vld [vmem:[%s1 + $0x168] sm:$0xff]
    %v841 = vld [vmem:[%s1 + $0x170] sm:$0xff]
    %v842 = vld [vmem:[%s1 + $0x178] sm:$0xff]
    %v843 = vld [vmem:[%s1 + $0x180] sm:$0xff]
    %v844 = vld [vmem:[%s1 + $0x188] sm:$0xff]
    %v845 = vld [vmem:[%s1 + $0x190] sm:$0xff]
    %v846 = vld [vmem:[%s1 + $0x198] sm:$0xff]
    %v847 = vld [vmem:[%s1 + $0x1a0] sm:$0xff]
    %v848 = vld [vmem:[%s1 + $0x1a8] sm:$0xff]
    %v849 = vld [vmem:[%s1 + $0x1b0] sm:$0xff]
    %v850 = vld [vmem:[%s1 + $0x1b8] sm:$0xff]
    %v851 = vld [vmem:[%s1 + $0x1c0] sm:$0xff]
    %v852 = vld [vmem:[%s1 + $0x1c8] sm:$0xff]
    %v853 = vld [vmem:[%s1 + $0x1d0] sm:$0xff]
    %v854 = vld [vmem:[%s1 + $0x1d8] sm:$0xff]
    %v855 = vld [vmem:[%s1 + $0x1e0] sm:$0xff]
    %v856 = vld [vmem:[%s1 + $0x1e8] sm:$0xff]
    %v857 = vld [vmem:[%s1 + $0x1f0] sm:$0xff]
    %v858 = vld [vmem:[%s1 + $0x1f8] sm:$0xff]
    %v859 = vld [vmem:[%s1 + $0x200] sm:$0xff]
    %v860 = vld [vmem:[%s1 + $0x208] sm:$0xff]
    %v861 = vld [vmem:[%s1 + $0x210] sm:$0xff]
    %v862 = vld [vmem:[%s1 + $0x218] sm:$0xff]
    %v863 = vld [vmem:[%s1 + $0x220] sm:$0xff]
    %v864 = vld [vmem:[%s1 + $0x228] sm:$0xff]
    %v865 = vld [vmem:[%s1 + $0x230] sm:$0xff]
    %v866 = vld [vmem:[%s1 + $0x238] sm:$0xff]
    %v867 = vld [vmem:[%s1 + $0x240] sm:$0xff]
    %v868 = vld [vmem:[%s1 + $0x248] sm:$0xff]
    %v869 = vld [vmem:[%s1 + $0x250] sm:$0xff]
    %v870 = vld [vmem:[%s1 + $0x258] sm:$0xff]
    %v871 = vld [vmem:[%s1 + $0x260] sm:$0xff]
    %v872 = vld [vmem:[%s1 + $0x268] sm:$0xff]
    %v873 = vld [vmem:[%s1 + $0x270] sm:$0xff]
    %v874 = vld [vmem:[%s1 + $0x278] sm:$0xff]
    %v875 = vld [vmem:[%s1 + $0x280] sm:$0xff]
    %v876 = vld [vmem:[%s1 + $0x288] sm:$0xff]
    %v877 = vld [vmem:[%s1 + $0x290] sm:$0xff]
    %v878 = vld [vmem:[%s1 + $0x298] sm:$0xff]
    %v879 = vld [vmem:[%s1 + $0x2a0] sm:$0xff]
    %v880 = vld [vmem:[%s1 + $0x2a8] sm:$0xff]
    %v881 = vld [vmem:[%s1 + $0x2b0] sm:$0xff]
    %v882 = vld [vmem:[%s1 + $0x2b8] sm:$0xff]
    %v883 = vld [vmem:[%s1 + $0x2c0] sm:$0xff]
    %v884 = vld [vmem:[%s1 + $0x2c8] sm:$0xff]
    %v885 = vld [vmem:[%s1 + $0x2d0] sm:$0xff]
    %v886 = vld [vmem:[%s1 + $0x2d8] sm:$0xff]
    %v887 = vld [vmem:[%s1 + $0x2e0] sm:$0xff]
    %v888 = vld [vmem:[%s1 + $0x2e8] sm:$0xff]
    %v889 = vld [vmem:[%s1 + $0x2f0] sm:$0xff]
    %v890 = vld [vmem:[%s1 + $0x2f8] sm:$0xff]
    %v891 = vld [vmem:[%s1 + $0x300] sm:$0xff]
    %v892 = vld [vmem:[%s1 + $0x308] sm:$0xff]
    %v893 = vld [vmem:[%s1 + $0x310] sm:$0xff]
    %v894 = vld [vmem:[%s1 + $0x318] sm:$0xff]
    %v895 = vld [vmem:[%s1 + $0x320] sm:$0xff]
    %v896 = vld [vmem:[%s1 + $0x328] sm:$0xff]
    %v897 = vld [vmem:[%s1 + $0x330] sm:$0xff]
    %v898 = vld [vmem:[%s1 + $0x338] sm:$0xff]
    %v899 = vld [vmem:[%s1 + $0x340] sm:$0xff]
    %v900 = vld [vmem:[%s1 + $0x348] sm:$0xff]
    %v901 = vld [vmem:[%s1 + $0x350] sm:$0xff]
    %v902 = vld [vmem:[%s1 + $0x358] sm:$0xff]
    %v903 = vld [vmem:[%s1 + $0x360] sm:$0xff]
    %v904 = vld [vmem:[%s1 + $0x368] sm:$0xff]
    %v905 = vld [vmem:[%s1 + $0x370] sm:$0xff]
    %v906 = vld [vmem:[%s1 + $0x378] sm:$0xff]
    %v907 = vld [vmem:[%s1 + $0x380] sm:$0xff]
    %v908 = vld [vmem:[%s1 + $0x388] sm:$0xff]
    %v909 = vld [vmem:[%s1 + $0x390] sm:$0xff]
    %v910 = vld [vmem:[%s1 + $0x398] sm:$0xff]
    %v911 = vld [vmem:[%s1 + $0x3a0] sm:$0xff]
    %v912 = vld [vmem:[%s1 + $0x3a8] sm:$0xff]
    %v913 = vld [vmem:[%s1 + $0x3b0] sm:$0xff]
    %v914 = vld [vmem:[%s1 + $0x3b8] sm:$0xff]
    %v915 = vld [vmem:[%s1 + $0x3c0] sm:$0xff]
    %v916 = vld [vmem:[%s1 + $0x3c8] sm:$0xff]
    %v917 = vld [vmem:[%s1 + $0x3d0] sm:$0xff]
    %v918 = vld [vmem:[%s1 + $0x3d8] sm:$0xff]
    %v919 = vld [vmem:[%s1 + $0x3e0] sm:$0xff]
    %v920 = vld [vmem:[%s1 + $0x3e8] sm:$0xff]
    %v921 = vld [vmem:[%s1 + $0x3f0] sm:$0xff]
    %v922 = vld [vmem:[%s1 + $0x3f8] sm:$0xff]
    %v923 = vld [vmem:[%s1 + $0x400] sm:$0xff]
    %v924 = vld [vmem:[%s1 + $0x408] sm:$0xff]
    %v925 = vld [vmem:[%s1 + $0x410] sm:$0xff]
    %v926 = vld [vmem:[%s1 + $0x418] sm:$0xff]
    %v927 = vld [vmem:[%s1 + $0x420] sm:$0xff]
    %v928 = vld [vmem:[%s1 + $0x428] sm:$0xff]
    %v929 = vld [vmem:[%s1 + $0x430] sm:$0xff]
    %v930 = vld [vmem:[%s1 + $0x438] sm:$0xff]
    %v931 = vld [vmem:[%s1 + $0x440] sm:$0xff]
    %v932 = vld [vmem:[%s1 + $0x448] sm:$0xff]
    %v933 = vld [vmem:[%s1 + $0x450] sm:$0xff]
    %v934 = vld [vmem:[%s1 + $0x458] sm:$0xff]
    %v935 = vld [vmem:[%s1 + $0x460] sm:$0xff]
    %v936 = vld [vmem:[%s1 + $0x468] sm:$0xff]
    %v937 = vld [vmem:[%s1 + $0x470] sm:$0xff]
    %v938 = vld [vmem:[%s1 + $0x478] sm:$0xff]
    %v939 = vld [vmem:[%s1 + $0x480] sm:$0xff]
    %v940 = vld [vmem:[%s1 + $0x488] sm:$0xff]
    %v941 = vld [vmem:[%s1 + $0x490] sm:$0xff]
    %v942 = vld [vmem:[%s1 + $0x498] sm:$0xff]
    %v943 = vld [vmem:[%s1 + $0x4a0] sm:$0xff]
    %v944 = vld [vmem:[%s1 + $0x4a8] sm:$0xff]
    %v945 = vld [vmem:[%s1 + $0x4b0] sm:$0xff]
    %v946 = vld [vmem:[%s1 + $0x4b8] sm:$0xff]
    %v947 = vld [vmem:[%s1 + $0x4c0] sm:$0xff]
    %v948 = vld [vmem:[%s1 + $0x4c8] sm:$0xff]
    %v949 = vld [vmem:[%s1 + $0x4d0] sm:$0xff]
    %v950 = vld [vmem:[%s1 + $0x4d8] sm:$0xff]
    %v951 = vld [vmem:[%s1 + $0x4e0] sm:$0xff]
    %v952 = vld [vmem:[%s1 + $0x4e8] sm:$0xff]
    %v953 = vld [vmem:[%s1 + $0x4f0] sm:$0xff]
    %v954 = vld [vmem:[%s1 + $0x4f8] sm:$0xff]
    %v955 = vld [vmem:[%s1 + $0x500] sm:$0xff]
    %v956 = vld [vmem:[%s1 + $0x508] sm:$0xff]
    %v957 = vld [vmem:[%s1 + $0x510] sm:$0xff]
    %v958 = vld [vmem:[%s1 + $0x518] sm:$0xff]
    %v959 = vld [vmem:[%s1 + $0x520] sm:$0xff]
    %v960 = vld [vmem:[%s1 + $0x528] sm:$0xff]
    %v961 = vld [vmem:[%s1 + $0x530] sm:$0xff]
    %v962 = vld [vmem:[%s1 + $0x538] sm:$0xff]
    %v963 = vld [vmem:[%s1 + $0x540] sm:$0xff]
    %v964 = vld [vmem:[%s1 + $0x548] sm:$0xff]
    %v965 = vld [vmem:[%s1 + $0x550] sm:$0xff]
    %v966 = vld [vmem:[%s1 + $0x558] sm:$0xff]
    %v967 = vld [vmem:[%s1 + $0x560] sm:$0xff]
    %v968 = vld [vmem:[%s1 + $0x568] sm:$0xff]
    %v969 = vld [vmem:[%s1 + $0x570] sm:$0xff]
    %v970 = vld [vmem:[%s1 + $0x578] sm:$0xff]
    %v971 = vld [vmem:[%s1 + $0x580] sm:$0xff]
    %v972 = vld [vmem:[%s1 + $0x588] sm:$0xff]
    %v973 = vld [vmem:[%s1 + $0x590] sm:$0xff]
    %v974 = vld [vmem:[%s1 + $0x598] sm:$0xff]
    %v975 = vld [vmem:[%s1 + $0x5a0] sm:$0xff]
    %v976 = vld [vmem:[%s1 + $0x5a8] sm:$0xff]
    %v977 = vld [vmem:[%s1 + $0x5b0] sm:$0xff]
    %v978 = vld [vmem:[%s1 + $0x5b8] sm:$0xff]
    %v979 = vld [vmem:[%s1 + $0x5c0] sm:$0xff]
    %v980 = vld [vmem:[%s1 + $0x5c8] sm:$0xff]
    %v981 = vld [vmem:[%s1 + $0x5d0] sm:$0xff]
    %v982 = vld [vmem:[%s1 + $0x5d8] sm:$0xff]
    %v983 = vld [vmem:[%s1 + $0x5e0] sm:$0xff]
    %v984 = vld [vmem:[%s1 + $0x5e8] sm:$0xff]
    %v985 = vld [vmem:[%s1 + $0x5f0] sm:$0xff]
    %v986 = vld [vmem:[%s1 + $0x5f8] sm:$0xff]
    %v987 = vld [vmem:[%s1 + $0x600] sm:$0xff]
    %v988 = vld [vmem:[%s1 + $0x608] sm:$0xff]
    %v989 = vld [vmem:[%s1 + $0x610] sm:$0xff]
    %v990 = vld [vmem:[%s1 + $0x618] sm:$0xff]
    %v991 = vld [vmem:[%s1 + $0x620] sm:$0xff]
    %v992 = vld [vmem:[%s1 + $0x628] sm:$0xff]
    %v993 = vld [vmem:[%s1 + $0x630] sm:$0xff]
    %v994 = vld [vmem:[%s1 + $0x638] sm:$0xff]
    %v995 = vld [vmem:[%s1 + $0x640] sm:$0xff]
    %v996 = vld [vmem:[%s1 + $0x648] sm:$0xff]
    %v997 = vld [vmem:[%s1 + $0x650] sm:$0xff]
    %v998 = vld [vmem:[%s1 + $0x658] sm:$0xff]
    %v999 = vld [vmem:[%s1 + $0x660] sm:$0xff]
    %v1000 = vld [vmem:[%s1 + $0x668] sm:$0xff]
    %v1001 = vld [vmem:[%s1 + $0x670] sm:$0xff]
    %v1002 = vld [vmem:[%s1 + $0x678] sm:$0xff]
    %v1003 = vld [vmem:[%s1 + $0x680] sm:$0xff]
    %v1004 = vld [vmem:[%s1 + $0x688] sm:$0xff]
    %v1005 = vld [vmem:[%s1 + $0x690] sm:$0xff]
    %v1006 = vld [vmem:[%s1 + $0x698] sm:$0xff]
    %v1007 = vld [vmem:[%s1 + $0x6a0] sm:$0xff]
    %v1008 = vld [vmem:[%s1 + $0x6a8] sm:$0xff]
    %v1009 = vld [vmem:[%s1 + $0x6b0] sm:$0xff]
    %v1010 = vld [vmem:[%s1 + $0x6b8] sm:$0xff]
    %v1011 = vld [vmem:[%s1 + $0x6c0] sm:$0xff]
    %v1012 = vld [vmem:[%s1 + $0x6c8] sm:$0xff]
    %v1013 = vld [vmem:[%s1 + $0x6d0] sm:$0xff]
    %v1014 = vld [vmem:[%s1 + $0x6d8] sm:$0xff]
    %v1015 = vld [vmem:[%s1 + $0x6e0] sm:$0xff]
    %v1016 = vld [vmem:[%s1 + $0x6e8] sm:$0xff]
    %v1017 = vld [vmem:[%s1 + $0x6f0] sm:$0xff]
    %v1018 = vld [vmem:[%s1 + $0x6f8] sm:$0xff]
    %v1019 = vld [vmem:[%s1 + $0x700] sm:$0xff]
    %v1020 = vld [vmem:[%s1 + $0x708] sm:$0xff]
    %v1021 = vld [vmem:[%s1 + $0x710] sm:$0xff]
    %v1022 = vld [vmem:[%s1 + $0x718] sm:$0xff]
    %v1023 = vld [vmem:[%s1 + $0x720] sm:$0xff]
    %v1024 = vld [vmem:[%s1 + $0x728] sm:$0xff]
    %v1025 = vld [vmem:[%s1 + $0x730] sm:$0xff]
    %v1026 = vld [vmem:[%s1 + $0x738] sm:$0xff]
    %v1027 = vld [vmem:[%s1 + $0x740] sm:$0xff]
    %v1028 = vld [vmem:[%s1 + $0x748] sm:$0xff]
    %v1029 = vld [vmem:[%s1 + $0x750] sm:$0xff]
    %v1030 = vld [vmem:[%s1 + $0x758] sm:$0xff]
    %v1031 = vld [vmem:[%s1 + $0x760] sm:$0xff]
    %v1032 = vld [vmem:[%s1 + $0x768] sm:$0xff]
    %v1033 = vld [vmem:[%s1 + $0x770] sm:$0xff]
    %v1034 = vld [vmem:[%s1 + $0x778] sm:$0xff]
    %v1035 = vld [vmem:[%s1 + $0x780] sm:$0xff]
    %v1036 = vld [vmem:[%s1 + $0x788] sm:$0xff]
    %v1037 = vld [vmem:[%s1 + $0x790] sm:$0xff]
    %v1038 = vld [vmem:[%s1 + $0x798] sm:$0xff]
    %v1039 = vld [vmem:[%s1 + $0x7a0] sm:$0xff]
    %v1040 = vld [vmem:[%s1 + $0x7a8] sm:$0xff]
    %v1041 = vld [vmem:[%s1 + $0x7b0] sm:$0xff]
    %v1042 = vld [vmem:[%s1 + $0x7b8] sm:$0xff]
    %v1043 = vld [vmem:[%s1 + $0x7c0] sm:$0xff]
    %v1044 = vld [vmem:[%s1 + $0x7c8] sm:$0xff]
    %v1045 = vld [vmem:[%s1 + $0x7d0] sm:$0xff]
    %v1046 = vld [vmem:[%s1 + $0x7d8] sm:$0xff]
    %v1047 = vld [vmem:[%s1 + $0x7e0] sm:$0xff]
    %v1048 = vld [vmem:[%s1 + $0x7e8] sm:$0xff]
    %v1049 = vld [vmem:[%s1 + $0x7f0] sm:$0xff]
    %v1050 = vld [vmem:[%s1 + $0x7f8] sm:$0xff]
    %v1051 = vld [vmem:[%s1 + $0x800] sm:$0xff]
    %v1052 = vld [vmem:[%s1 + $0x808] sm:$0xff]
    %v1053 = vld [vmem:[%s1 + $0x810] sm:$0xff]
    %v1054 = vld [vmem:[%s1 + $0x818] sm:$0xff]
    %v1055 = vld [vmem:[%s1 + $0x820] sm:$0xff]
    %v1056 = vld [vmem:[%s1 + $0x828] sm:$0xff]
    %v1057 = vld [vmem:[%s1 + $0x830] sm:$0xff]
    %v1058 = vld [vmem:[%s1 + $0x838] sm:$0xff]
    %v1059 = vld [vmem:[%s1 + $0x840] sm:$0xff]
    %v1060 = vld [vmem:[%s1 + $0x848] sm:$0xff]
    %v1061 = vld [vmem:[%s1 + $0x850] sm:$0xff]
    %v1062 = vld [vmem:[%s1 + $0x858] sm:$0xff]
    %v1063 = vld [vmem:[%s1 + $0x860] sm:$0xff]
    %v1064 = vld [vmem:[%s1 + $0x868] sm:$0xff]
    %v1065 = vld [vmem:[%s1 + $0x870] sm:$0xff]
    %v1066 = vld [vmem:[%s1 + $0x878] sm:$0xff]
    %v1067 = vld [vmem:[%s1 + $0x880] sm:$0xff]
    %v1068 = vld [vmem:[%s1 + $0x888] sm:$0xff]
    %v1069 = vld [vmem:[%s1 + $0x890] sm:$0xff]
    %v1070 = vld [vmem:[%s1 + $0x898] sm:$0xff]
    %v1071 = vld [vmem:[%s1 + $0x8a0] sm:$0xff]
    %v1072 = vld [vmem:[%s1 + $0x8a8] sm:$0xff]
    %v1073 = vld [vmem:[%s1 + $0x8b0] sm:$0xff]
    %v1074 = vld [vmem:[%s1 + $0x8b8] sm:$0xff]
    %v1075 = vld [vmem:[%s1 + $0x8c0] sm:$0xff]
    %v1076 = vld [vmem:[%s1 + $0x8c8] sm:$0xff]
    %v1077 = vld [vmem:[%s1 + $0x8d0] sm:$0xff]
    %v1078 = vld [vmem:[%s1 + $0x8d8] sm:$0xff]
    %v1079 = vld [vmem:[%s1 + $0x8e0] sm:$0xff]
    %v1080 = vld [vmem:[%s1 + $0x8e8] sm:$0xff]
    %v1081 = vld [vmem:[%s1 + $0x8f0] sm:$0xff]
    %v1082 = vld [vmem:[%s1 + $0x8f8] sm:$0xff]
    %1083 = vmatprep.subr.mxu0 %v796
    %1084 = vmatpush1.msra.mxu0 %v795
    %1085 = vmatprep.subr.mxu0 %v798
    %1086 = vmatpush1.msra.mxu0 %v797
    %1087 = vmatprep.subr.mxu0 %v800
    %1088 = vmatpush1.msra.mxu0 %v799
    %1089 = vmatprep.subr.mxu0 %v802
    %1090 = vmatpush1.msra.mxu0 %v801
    %1091 = vmatprep.subr.mxu0 %v804
    %1092 = vmatpush1.msra.mxu0 %v803
    %1093 = vmatprep.subr.mxu0 %v806
    %1094 = vmatpush1.msra.mxu0 %v805
    %1095 = vmatprep.subr.mxu0 %v808
    %1096 = vmatpush1.msra.mxu0 %v807
    %1097 = vmatprep.subr.mxu0 %v810
    %1098 = vmatpush1.msra.mxu0 %v809
    %1099 = vmatprep.subr.mxu0 %v812
    %1100 = vmatpush1.msra.mxu0 %v811
    %1101 = vmatprep.subr.mxu0 %v814
    %1102 = vmatpush1.msra.mxu0 %v813
    %1103 = vmatprep.subr.mxu0 %v816
    %1104 = vmatpush1.msra.mxu0 %v815
    %1105 = vmatprep.subr.mxu0 %v818
    %1106 = vmatpush1.msra.mxu0 %v817
    %1107 = vmatprep.subr.mxu0 %v820
    %1108 = vmatpush1.msra.mxu0 %v819
    %1109 = vmatprep.subr.mxu0 %v822
    %1110 = vmatpush1.msra.mxu0 %v821
    %1111 = vmatprep.subr.mxu0 %v824
    %1112 = vmatpush1.msra.mxu0 %v823
    %1113 = vmatprep.subr.mxu0 %v826
    %1114 = vmatpush1.msra.mxu0 %v825
    %1115 = vmatprep.subr.mxu0 %v828
    %1116 = vmatpush1.msra.mxu0 %v827
    %1117 = vmatprep.subr.mxu0 %v830
    %1118 = vmatpush1.msra.mxu0 %v829
    %1119 = vmatprep.subr.mxu0 %v832
    %1120 = vmatpush1.msra.mxu0 %v831
    %1121 = vmatprep.subr.mxu0 %v834
    %1122 = vmatpush1.msra.mxu0 %v833
    %1123 = vmatprep.subr.mxu0 %v836
    %1124 = vmatpush1.msra.mxu0 %v835
    %1125 = vmatprep.subr.mxu0 %v838
    %1126 = vmatpush1.msra.mxu0 %v837
    %1127 = vmatprep.subr.mxu0 %v840
    %1128 = vmatpush1.msra.mxu0 %v839
    %1129 = vmatprep.subr.mxu0 %v842
    %1130 = vmatpush1.msra.mxu0 %v841
    %1131 = vmatprep.subr.mxu0 %v844
    %1132 = vmatpush1.msra.mxu0 %v843
    %1133 = vmatprep.subr.mxu0 %v846
    %1134 = vmatpush1.msra.mxu0 %v845
    %1135 = vmatprep.subr.mxu0 %v848
    %1136 = vmatpush1.msra.mxu0 %v847
    %1137 = vmatprep.subr.mxu0 %v850
    %1138 = vmatpush1.msra.mxu0 %v849
    %1139 = vmatprep.subr.mxu0 %v852
    %1140 = vmatpush1.msra.mxu0 %v851
    %1141 = vmatprep.subr.mxu0 %v854
    %1142 = vmatpush1.msra.mxu0 %v853
    %1143 = vmatprep.subr.mxu0 %v856
    %1144 = vmatpush1.msra.mxu0 %v855
    %1145 = vmatprep.subr.mxu0 %v858
    %1146 = vmatpush1.msra.mxu0 %v857
    %1147 = vmatprep.mubr.f32.mxu0 %v760
    %1148 = vmatmul.mubr.f32.gmra.mrb[0].mxu0 %v759
    %v1149 = vpop.f32.mrb[0].mxu0
    %v1150 = vadd.f32 0.0, %v1149
    %v1151 = vpop.f32.mrb[0].mxu0
    %v1152 = vadd.f32 0.0, %v1151
    %1153 = vmatprep.mubr.f32.mxu0 %v769
    %1154 = vmatmul.mubr.f32.gmra.mrb[0].mxu0 %v768
    %v1155 = vpop.f32.mrb[0].mxu0
    %v1156 = vadd.f32 0.0, %v1155
    %v1157 = vpop.f32.mrb[0].mxu0
    %v1158 = vadd.f32 0.0, %v1157
    %1159 = vmatprep.mubr.f32.mxu0 %v778
    %1160 = vmatmul.mubr.f32.gmra.mrb[0].mxu0 %v777
    %v1161 = vpop.f32.mrb[0].mxu0
    %v1162 = vadd.f32 0.0, %v1161
    %v1163 = vpop.f32.mrb[0].mxu0
    %v1164 = vadd.f32 0.0, %v1163
    %1165 = vmatprep.mubr.f32.mxu0 %v787
    %1166 = vmatmul.mubr.f32.gmra.mrb[0].mxu0 %v786
    %v1167 = vpop.f32.mrb[0].mxu0
    %v1168 = vadd.f32 0.0, %v1167
    %v1169 = vpop.f32.mrb[0].mxu0
    %v1170 = vadd.f32 0.0, %v1169
    %1171 = vdwg.mxu0
    %1172 = vmatprep.subr.mxu0 %v860
    %1173 = vmatpush1.msra.mxu0 %v859
    %1174 = vmatprep.subr.mxu0 %v862
    %1175 = vmatpush1.msra.mxu0 %v861
    %1176 = vmatprep.subr.mxu0 %v864
    %1177 = vmatpush1.msra.mxu0 %v863
    %1178 = vmatprep.subr.mxu0 %v866
    %1179 = vmatpush1.msra.mxu0 %v865
    %1180 = vmatprep.subr.mxu0 %v868
    %1181 = vmatpush1.msra.mxu0 %v867
    %1182 = vmatprep.subr.mxu0 %v870
    %1183 = vmatpush1.msra.mxu0 %v869
    %1184 = vmatprep.subr.mxu0 %v872
    %1185 = vmatpush1.msra.mxu0 %v871
    %1186 = vmatprep.subr.mxu0 %v874
    %1187 = vmatpush1.msra.mxu0 %v873
    %1188 = vmatprep.subr.mxu0 %v876
    %1189 = vmatpush1.msra.mxu0 %v875
    %1190 = vmatprep.subr.mxu0 %v878
    %1191 = vmatpush1.msra.mxu0 %v877
    %1192 = vmatprep.subr.mxu0 %v880
    %1193 = vmatpush1.msra.mxu0 %v879
    %1194 = vmatprep.subr.mxu0 %v882
    %1195 = vmatpush1.msra.mxu0 %v881
    %1196 = vmatprep.subr.mxu0 %v884
    %1197 = vmatpush1.msra.mxu0 %v883
    %1198 = vmatprep.subr.mxu0 %v886
    %1199 = vmatpush1.msra.mxu0 %v885
    %1200 = vmatprep.subr.mxu0 %v888
    %1201 = vmatpush1.msra.mxu0 %v887
    %1202 = vmatprep.subr.mxu0 %v890
    %1203 = vmatpush1.msra.mxu0 %v889
    %1204 = vmatprep.subr.mxu0 %v892
    %1205 = vmatpush1.msra.mxu0 %v891
    %1206 = vmatprep.subr.mxu0 %v894
    %1207 = vmatpush1.msra.mxu0 %v893
    %1208 = vmatprep.subr.mxu0 %v896
    %1209 = vmatpush1.msra.mxu0 %v895
    %1210 = vmatprep.subr.mxu0 %v898
    %1211 = vmatpush1.msra.mxu0 %v897
    %1212 = vmatprep.subr.mxu0 %v900
    %1213 = vmatpush1.msra.mxu0 %v899
    %1214 = vmatprep.subr.mxu0 %v902
    %1215 = vmatpush1.msra.mxu0 %v901
    %1216 = vmatprep.subr.mxu0 %v904
    %1217 = vmatpush1.msra.mxu0 %v903
    %1218 = vmatprep.subr.mxu0 %v906
    %1219 = vmatpush1.msra.mxu0 %v905
    %1220 = vmatprep.subr.mxu0 %v908
    %1221 = vmatpush1.msra.mxu0 %v907
    %1222 = vmatprep.subr.mxu0 %v910
    %1223 = vmatpush1.msra.mxu0 %v909
    %1224 = vmatprep.subr.mxu0 %v912
    %1225 = vmatpush1.msra.mxu0 %v911
    %1226 = vmatprep.subr.mxu0 %v914
    %1227 = vmatpush1.msra.mxu0 %v913
    %1228 = vmatprep.subr.mxu0 %v916
    %1229 = vmatpush1.msra.mxu0 %v915
    %1230 = vmatprep.subr.mxu0 %v918
    %1231 = vmatpush1.msra.mxu0 %v917
    %1232 = vmatprep.subr.mxu0 %v920
    %1233 = vmatpush1.msra.mxu0 %v919
    %1234 = vmatprep.subr.mxu0 %v922
    %1235 = vmatpush1.msra.mxu0 %v921
    %1236 = vmatprep.mubr.f32.mxu0 %v762
    %1237 = vmatmul.mubr.f32.gmra.mrb[0].mxu0 %v761
    %v1238 = vpop.f32.mrb[0].mxu0
    %v1239 = vadd.f32 %v1150, %v1238
    %v1240 = vpop.f32.mrb[0].mxu0
    %v1241 = vadd.f32 %v1152, %v1240
    %1242 = vmatprep.mubr.f32.mxu0 %v771
    %1243 = vmatmul.mubr.f32.gmra.mrb[0].mxu0 %v770
    %v1244 = vpop.f32.mrb[0].mxu0
    %v1245 = vadd.f32 %v1156, %v1244
    %v1246 = vpop.f32.mrb[0].mxu0
    %v1247 = vadd.f32 %v1158, %v1246
    %1248 = vmatprep.mubr.f32.mxu0 %v780
    %1249 = vmatmul.mubr.f32.gmra.mrb[0].mxu0 %v779
    %v1250 = vpop.f32.mrb[0].mxu0
    %v1251 = vadd.f32 %v1162, %v1250
    %v1252 = vpop.f32.mrb[0].mxu0
    %v1253 = vadd.f32 %v1164, %v1252
    %1254 = vmatprep.mubr.f32.mxu0 %v789
    %1255 = vmatmul.mubr.f32.gmra.mrb[0].mxu0 %v788
    %v1256 = vpop.f32.mrb[0].mxu0
    %v1257 = vadd.f32 %v1168, %v1256
    %v1258 = vpop.f32.mrb[0].mxu0
    %v1259 = vadd.f32 %v1170, %v1258
    %1260 = vdwg.mxu0
    %1261 = vmatprep.subr.mxu0 %v924
    %1262 = vmatpush1.msra.mxu0 %v923
    %1263 = vmatprep.subr.mxu0 %v926
    %1264 = vmatpush1.msra.mxu0 %v925
    %1265 = vmatprep.subr.mxu0 %v928
    %1266 = vmatpush1.msra.mxu0 %v927
    %1267 = vmatprep.subr.mxu0 %v930
    %1268 = vmatpush1.msra.mxu0 %v929
    %1269 = vmatprep.subr.mxu0 %v932
    %1270 = vmatpush1.msra.mxu0 %v931
    %1271 = vmatprep.subr.mxu0 %v934
    %1272 = vmatpush1.msra.mxu0 %v933
    %1273 = vmatprep.subr.mxu0 %v936
    %1274 = vmatpush1.msra.mxu0 %v935
    %1275 = vmatprep.subr.mxu0 %v938
    %1276 = vmatpush1.msra.mxu0 %v937
    %1277 = vmatprep.subr.mxu0 %v940
    %1278 = vmatpush1.msra.mxu0 %v939
    %1279 = vmatprep.subr.mxu0 %v942
    %1280 = vmatpush1.msra.mxu0 %v941
    %1281 = vmatprep.subr.mxu0 %v944
    %1282 = vmatpush1.msra.mxu0 %v943
    %1283 = vmatprep.subr.mxu0 %v946
    %1284 = vmatpush1.msra.mxu0 %v945
    %1285 = vmatprep.subr.mxu0 %v948
    %1286 = vmatpush1.msra.mxu0 %v947
    %1287 = vmatprep.subr.mxu0 %v950
    %1288 = vmatpush1.msra.mxu0 %v949
    %1289 = vmatprep.subr.mxu0 %v952
    %1290 = vmatpush1.msra.mxu0 %v951
    %1291 = vmatprep.subr.mxu0 %v954
    %1292 = vmatpush1.msra.mxu0 %v953
    %1293 = vmatprep.subr.mxu0 %v956
    %1294 = vmatpush1.msra.mxu0 %v955
    %1295 = vmatprep.subr.mxu0 %v958
    %1296 = vmatpush1.msra.mxu0 %v957
    %1297 = vmatprep.subr.mxu0 %v960
    %1298 = vmatpush1.msra.mxu0 %v959
    %1299 = vmatprep.subr.mxu0 %v962
    %1300 = vmatpush1.msra.mxu0 %v961
    %1301 = vmatprep.subr.mxu0 %v964
    %1302 = vmatpush1.msra.mxu0 %v963
    %1303 = vmatprep.subr.mxu0 %v966
    %1304 = vmatpush1.msra.mxu0 %v965
    %1305 = vmatprep.subr.mxu0 %v968
    %1306 = vmatpush1.msra.mxu0 %v967
    %1307 = vmatprep.subr.mxu0 %v970
    %1308 = vmatpush1.msra.mxu0 %v969
    %1309 = vmatprep.subr.mxu0 %v972
    %1310 = vmatpush1.msra.mxu0 %v971
    %1311 = vmatprep.subr.mxu0 %v974
    %1312 = vmatpush1.msra.mxu0 %v973
    %1313 = vmatprep.subr.mxu0 %v976
    %1314 = vmatpush1.msra.mxu0 %v975
    %1315 = vmatprep.subr.mxu0 %v978
    %1316 = vmatpush1.msra.mxu0 %v977
    %1317 = vmatprep.subr.mxu0 %v980
    %1318 = vmatpush1.msra.mxu0 %v979
    %1319 = vmatprep.subr.mxu0 %v982
    %1320 = vmatpush1.msra.mxu0 %v981
    %1321 = vmatprep.subr.mxu0 %v984
    %1322 = vmatpush1.msra.mxu0 %v983
    %1323 = vmatprep.subr.mxu0 %v986
    %1324 = vmatpush1.msra.mxu0 %v985
    %1325 = vmatprep.mubr.f32.mxu0 %v764
    %1326 = vmatmul.mubr.f32.gmra.mrb[0].mxu0 %v763
    %v1327 = vpop.f32.mrb[0].mxu0
    %v1328 = vadd.f32 %v1239, %v1327
    %v1329 = vpop.f32.mrb[0].mxu0
    %v1330 = vadd.f32 %v1241, %v1329
    %1331 = vmatprep.mubr.f32.mxu0 %v773
    %1332 = vmatmul.mubr.f32.gmra.mrb[0].mxu0 %v772
    %v1333 = vpop.f32.mrb[0].mxu0
    %v1334 = vadd.f32 %v1245, %v1333
    %v1335 = vpop.f32.mrb[0].mxu0
    %v1336 = vadd.f32 %v1247, %v1335
    %1337 = vmatprep.mubr.f32.mxu0 %v782
    %1338 = vmatmul.mubr.f32.gmra.mrb[0].mxu0 %v781
    %v1339 = vpop.f32.mrb[0].mxu0
    %v1340 = vadd.f32 %v1251, %v1339
    %v1341 = vpop.f32.mrb[0].mxu0
    %v1342 = vadd.f32 %v1253, %v1341
    %1343 = vmatprep.mubr.f32.mxu0 %v791
    %1344 = vmatmul.mubr.f32.gmra.mrb[0].mxu0 %v790
    %v1345 = vpop.f32.mrb[0].mxu0
    %v1346 = vadd.f32 %v1257, %v1345
    %v1347 = vpop.f32.mrb[0].mxu0
    %v1348 = vadd.f32 %v1259, %v1347
    %1349 = vdwg.mxu0
    %1350 = vmatprep.subr.mxu0 %v988
    %1351 = vmatpush1.msra.mxu0 %v987
    %1352 = vmatprep.subr.mxu0 %v990
    %1353 = vmatpush1.msra.mxu0 %v989
    %1354 = vmatprep.subr.mxu0 %v992
    %1355 = vmatpush1.msra.mxu0 %v991
    %1356 = vmatprep.subr.mxu0 %v994
    %1357 = vmatpush1.msra.mxu0 %v993
    %1358 = vmatprep.subr.mxu0 %v996
    %1359 = vmatpush1.msra.mxu0 %v995
    %1360 = vmatprep.subr.mxu0 %v998
    %1361 = vmatpush1.msra.mxu0 %v997
    %1362 = vmatprep.subr.mxu0 %v1000
    %1363 = vmatpush1.msra.mxu0 %v999
    %1364 = vmatprep.subr.mxu0 %v1002
    %1365 = vmatpush1.msra.mxu0 %v1001
    %1366 = vmatprep.subr.mxu0 %v1004
    %1367 = vmatpush1.msra.mxu0 %v1003
    %1368 = vmatprep.subr.mxu0 %v1006
    %1369 = vmatpush1.msra.mxu0 %v1005
    %1370 = vmatprep.subr.mxu0 %v1008
    %1371 = vmatpush1.msra.mxu0 %v1007
    %1372 = vmatprep.subr.mxu0 %v1010
    %1373 = vmatpush1.msra.mxu0 %v1009
    %1374 = vmatprep.subr.mxu0 %v1012
    %1375 = vmatpush1.msra.mxu0 %v1011
    %1376 = vmatprep.subr.mxu0 %v1014
    %1377 = vmatpush1.msra.mxu0 %v1013
    %1378 = vmatprep.subr.mxu0 %v1016
    %1379 = vmatpush1.msra.mxu0 %v1015
    %1380 = vmatprep.subr.mxu0 %v1018
    %1381 = vmatpush1.msra.mxu0 %v1017
    %1382 = vmatprep.subr.mxu0 %v1020
    %1383 = vmatpush1.msra.mxu0 %v1019
    %1384 = vmatprep.subr.mxu0 %v1022
    %1385 = vmatpush1.msra.mxu0 %v1021
    %1386 = vmatprep.subr.mxu0 %v1024
    %1387 = vmatpush1.msra.mxu0 %v1023
    %1388 = vmatprep.subr.mxu0 %v1026
    %1389 = vmatpush1.msra.mxu0 %v1025
    %1390 = vmatprep.subr.mxu0 %v1028
    %1391 = vmatpush1.msra.mxu0 %v1027
    %1392 = vmatprep.subr.mxu0 %v1030
    %1393 = vmatpush1.msra.mxu0 %v1029
    %1394 = vmatprep.subr.mxu0 %v1032
    %1395 = vmatpush1.msra.mxu0 %v1031
    %1396 = vmatprep.subr.mxu0 %v1034
    %1397 = vmatpush1.msra.mxu0 %v1033
    %1398 = vmatprep.subr.mxu0 %v1036
    %1399 = vmatpush1.msra.mxu0 %v1035
    %1400 = vmatprep.subr.mxu0 %v1038
    %1401 = vmatpush1.msra.mxu0 %v1037
    %1402 = vmatprep.subr.mxu0 %v1040
    %1403 = vmatpush1.msra.mxu0 %v1039
    %1404 = vmatprep.subr.mxu0 %v1042
    %1405 = vmatpush1.msra.mxu0 %v1041
    %1406 = vmatprep.subr.mxu0 %v1044
    %1407 = vmatpush1.msra.mxu0 %v1043
    %1408 = vmatprep.subr.mxu0 %v1046
    %1409 = vmatpush1.msra.mxu0 %v1045
    %1410 = vmatprep.subr.mxu0 %v1048
    %1411 = vmatpush1.msra.mxu0 %v1047
    %1412 = vmatprep.subr.mxu0 %v1050
    %1413 = vmatpush1.msra.mxu0 %v1049
    %1414 = vmatprep.mubr.f32.mxu0 %v766
    %1415 = vmatmul.mubr.f32.gmra.mrb[0].mxu0 %v765
    %v1416 = vpop.f32.mrb[0].mxu0
    %v1417 = vadd.f32 %v1328, %v1416
    %v1418 = vpop.f32.mrb[0].mxu0
    %v1419 = vadd.f32 %v1330, %v1418
    %1420 = vmatprep.mubr.f32.mxu0 %v775
    %1421 = vmatmul.mubr.f32.gmra.mrb[0].mxu0 %v774
    %v1422 = vpop.f32.mrb[0].mxu0
    %v1423 = vadd.f32 %v1334, %v1422
    %v1424 = vpop.f32.mrb[0].mxu0
    %v1425 = vadd.f32 %v1336, %v1424
    %1426 = vmatprep.mubr.f32.mxu0 %v784
    %1427 = vmatmul.mubr.f32.gmra.mrb[0].mxu0 %v783
    %v1428 = vpop.f32.mrb[0].mxu0
    %v1429 = vadd.f32 %v1340, %v1428
    %v1430 = vpop.f32.mrb[0].mxu0
    %v1431 = vadd.f32 %v1342, %v1430
    %1432 = vmatprep.mubr.f32.mxu0 %v793
    %1433 = vmatmul.mubr.f32.gmra.mrb[0].mxu0 %v792
    %v1434 = vpop.f32.mrb[0].mxu0
    %v1435 = vadd.f32 %v1346, %v1434
    %v1436 = vpop.f32.mrb[0].mxu0
    %v1437 = vadd.f32 %v1348, %v1436
    %1438 = vdwg.mxu0
    %1439 = vmatprep.subr.mxu0 %v1052
    %1440 = vmatpush1.msra.mxu0 %v1051
    %1441 = vmatprep.subr.mxu0 %v1054
    %1442 = vmatpush1.msra.mxu0 %v1053
    %1443 = vmatprep.subr.mxu0 %v1056
    %1444 = vmatpush1.msra.mxu0 %v1055
    %1445 = vmatprep.subr.mxu0 %v1058
    %1446 = vmatpush1.msra.mxu0 %v1057
    %1447 = vmatprep.subr.mxu0 %v1060
    %1448 = vmatpush1.msra.mxu0 %v1059
    %1449 = vmatprep.subr.mxu0 %v1062
    %1450 = vmatpush1.msra.mxu0 %v1061
    %1451 = vmatprep.subr.mxu0 %v1064
    %1452 = vmatpush1.msra.mxu0 %v1063
    %1453 = vmatprep.subr.mxu0 %v1066
    %1454 = vmatpush1.msra.mxu0 %v1065
    %1455 = vmatprep.subr.mxu0 %v1068
    %1456 = vmatpush1.msra.mxu0 %v1067
    %1457 = vmatprep.subr.mxu0 %v1070
    %1458 = vmatpush1.msra.mxu0 %v1069
    %1459 = vmatprep.subr.mxu0 %v1072
    %1460 = vmatpush1.msra.mxu0 %v1071
    %1461 = vmatprep.subr.mxu0 %v1074
    %1462 = vmatpush1.msra.mxu0 %v1073
    %1463 = vmatprep.subr.mxu0 %v1076
    %1464 = vmatpush1.msra.mxu0 %v1075
    %1465 = vmatprep.subr.mxu0 %v1078
    %1466 = vmatpush1.msra.mxu0 %v1077
    %1467 = vmatprep.subr.mxu0 %v1080
    %1468 = vmatpush1.msra.mxu0 %v1079
    %1469 = vmatprep.subr.mxu0 %v1082
    %1470 = vmatpush1.msra.mxu0 %v1081
    %1471 = vmatprep.subr.mxu0 0.0
    %1472 = vmatpush1.msra.mxu0 0.0
    %1473 = vmatprep.subr.mxu0 0.0
    %1474 = vmatpush1.msra.mxu0 0.0
    %1475 = vmatprep.subr.mxu0 0.0
    %1476 = vmatpush1.msra.mxu0 0.0
    %1477 = vmatprep.subr.mxu0 0.0
    %1478 = vmatpush1.msra.mxu0 0.0
    %1479 = vmatprep.subr.mxu0 0.0
    %1480 = vmatpush1.msra.mxu0 0.0
    %1481 = vmatprep.subr.mxu0 0.0
    %1482 = vmatpush1.msra.mxu0 0.0
    %1483 = vmatprep.subr.mxu0 0.0
    %1484 = vmatpush1.msra.mxu0 0.0
    %1485 = vmatprep.subr.mxu0 0.0
    %1486 = vmatpush1.msra.mxu0 0.0
    %1487 = vmatprep.subr.mxu0 0.0
    %1488 = vmatpush1.msra.mxu0 0.0
    %1489 = vmatprep.subr.mxu0 0.0
    %1490 = vmatpush1.msra.mxu0 0.0
    %1491 = vmatprep.subr.mxu0 0.0
    %1492 = vmatpush1.msra.mxu0 0.0
    %1493 = vmatprep.subr.mxu0 0.0
    %1494 = vmatpush1.msra.mxu0 0.0
    %1495 = vmatprep.subr.mxu0 0.0
    %1496 = vmatpush1.msra.mxu0 0.0
    %1497 = vmatprep.subr.mxu0 0.0
    %1498 = vmatpush1.msra.mxu0 0.0
    %1499 = vmatprep.subr.mxu0 0.0
    %1500 = vmatpush1.msra.mxu0 0.0
    %1501 = vmatprep.subr.mxu0 0.0
    %1502 = vmatpush1.msra.mxu0 0.0
    %1503 = vmatprep.mubr.f32.mxu0 0.0
    %1504 = vmatmul.mubr.f32.gmra.mrb[0].mxu0 %v767
    %v1505 = vpop.f32.mrb[0].mxu0
    %v1506 = vadd.f32 %v1417, %v1505
    %v1507 = vpop.f32.mrb[0].mxu0
    %v1508 = vadd.f32 %v1419, %v1507
    %1509 = vmatprep.mubr.f32.mxu0 0.0
    %1510 = vmatmul.mubr.f32.gmra.mrb[0].mxu0 %v776
    %v1511 = vpop.f32.mrb[0].mxu0
    %v1512 = vadd.f32 %v1423, %v1511
    %v1513 = vpop.f32.mrb[0].mxu0
    %v1514 = vadd.f32 %v1425, %v1513
    %1515 = vmatprep.mubr.f32.mxu0 0.0
    %1516 = vmatmul.mubr.f32.gmra.mrb[0].mxu0 %v785
    %v1517 = vpop.f32.mrb[0].mxu0
    %v1518 = vadd.f32 %v1429, %v1517
    %v1519 = vpop.f32.mrb[0].mxu0
    %v1520 = vadd.f32 %v1431, %v1519
    %1521 = vmatprep.mubr.f32.mxu0 0.0
    %1522 = vmatmul.mubr.f32.gmra.mrb[0].mxu0 %v794
    %v1523 = vpop.f32.mrb[0].mxu0
    %v1524 = vadd.f32 %v1435, %v1523
    %v1525 = vpop.f32.mrb[0].mxu0
    %v1526 = vadd.f32 %v1437, %v1525
    %1527 = vdwg.mxu0
    %1528 = vst [vmem:[#allocation3] sm:$0xff] %v1506
    %1529 = vst [vmem:[#allocation3 + $0x8] sm:$0xff] %v1508
    %1530 = vst [vmem:[#allocation3 + $0x10] sm:$0xff] %v1512
    %1531 = vst [vmem:[#allocation3 + $0x18] sm:$0xff] %v1514
    %1532 = vst [vmem:[#allocation3 + $0x20] sm:$0xff] %v1518
    %1533 = vst [vmem:[#allocation3 + $0x28] sm:$0xff] %v1520
    %1534 = vst [vmem:[#allocation3 + $0x30] sm:$0xff] %v1524
    %1535 = vst [vmem:[#allocation3 + $0x38] sm:$0xff] %v1526
    // Predicated region
    $region14: #{spline_linear_forward.1} parent=1 // pred_check
      _
    $region15: #{spline_linear_forward.1} parent=1 // pred_check_branch
      %1537 = sbr.rel (0) target = $region17
    $region16: #{spline_linear_forward.1} parent=1 // pred_region
      %s1539 = ssub.s32 1024, 1024
      %1540 = vsyncadd [#allocation4], %s1539
      %s1541 = sshll.u32 [#allocation3], 4
      %s1542 = int_to_ptr.vmem [resolvable:$true] %s1541
      %1547 = dma.vmem_to_hbm [thread:$0]  %s1542, 1024, %s2, [#allocation4], 256, 256, 16
    $region17: #{spline_linear_forward.1} parent=1 // pred_fallthru
      _
    // Predicated region
    $region18: #{spline_linear_forward.1} parent=1 // pred_check
      _
    $region19: #{spline_linear_forward.1} parent=1 // pred_check_branch
      %1549 = sbr.rel (0) target = $region21
    $region20: #{spline_linear_forward.1} parent=1 // pred_region
      %1550 = dma.done [#allocation4], 1024
    $region21: #{spline_linear_forward.1} parent=1 // pred_fallthru
      _
    %1551 = vsyncpa [#allocation4], 1

</llo_original>
